<compile_context>
chip_gen: v7x
topology: tpu7x:2x2x1
jax: 0.10.0
libtpu: 0.0.40
codegen_flags: <defaults>
</compile_context>

<pallas_src>
import functools

import jax
import jax.numpy as jnp
import numpy as np
from jax.experimental import pallas as pl
from jax.experimental.pallas import tpu as pltpu

EPS = 1e-5  # nn.LayerNorm default eps


def _layer_norm(y, w, b):
    # w, b are (1, D); y is (BS, D); biased variance like torch.layer_norm
    mu = jnp.mean(y, axis=-1, keepdims=True)
    var = jnp.mean((y - mu) ** 2, axis=-1, keepdims=True)
    return (y - mu) * jax.lax.rsqrt(var + EPS) * w + b


def _head_matrices(d_model, nhead):
    """0/1 segment matrices (built host-side with numpy):
    head_sum (D, H) sums each head's hd lanes, head_expand (H, D) broadcasts a
    per-head scalar back over its hd lanes."""
    hd = d_model // nhead
    head_of = np.arange(d_model) // hd
    head_sum = (head_of[:, None] == np.arange(nhead)[None, :]).astype(np.float32)
    head_expand = np.ascontiguousarray(head_sum.T)
    return jnp.asarray(head_sum), jnp.asarray(head_expand)


def _encoder_layer_2d(x, wqkv, wo, w1, w2,
                      bqkv, bo, b1, b2,
                      ln1w, ln1b, ln2w, ln2b,
                      head_sum, head_expand, *, nhead, batch):
    """One nn.TransformerEncoderLayer (post-norm, ReLU, dropout=identity).

    x: (B*S, D) f32, rows grouped by b (rows [b*S, (b+1)*S)).  Attention mixes
    rows sharing the same s across b (batch_first=False semantics).
    Weights are pre-transposed (K, N) bf16 -> single-pass MXU matmuls with f32
    accumulation; elementwise math stays in f32.
    """
    BS, D = x.shape
    S = BS // batch
    hd = D // nhead
    scale = 1.0 / float(np.sqrt(hd))
    f32 = jnp.float32
    # HIGHEST only on the two tiny 0/1 segment matmuls -> exact f32 head sums.
    exact = jax.lax.Precision.HIGHEST

    # --- fused QKV projection: one (BS, D) @ (D, 3D) matmul ------------------
    xb = x.astype(jnp.bfloat16)
    qkv = jnp.dot(xb, wqkv, preferred_element_type=f32) + bqkv      # (BS, 3D)
    q = qkv[:, 0:D]
    k = qkv[:, D:2 * D]
    v = qkv[:, 2 * D:3 * D]

    qs = [q[i * S:(i + 1) * S, :] for i in range(batch)]
    ks = [k[i * S:(i + 1) * S, :] for i in range(batch)]
    vs = [v[i * S:(i + 1) * S, :] for i in range(batch)]

    # --- attention over the (tiny) b axis ------------------------------------
    # All B^2 q_i*k_j products are stacked row-wise and reduced per head with
    # ONE segment-sum matmul; all B^2 probability blocks are expanded back to
    # lane width with ONE segment-expand matmul.
    prod = jnp.concatenate(
        [qs[i] * ks[j] for i in range(batch) for j in range(batch)], axis=0)
    sc = jnp.dot(prod, head_sum, precision=exact,
                 preferred_element_type=f32) * scale                # (B*B*S, H)

    pw_blocks = []
    for i in range(batch):
        sci = [sc[(i * batch + j) * S:(i * batch + j + 1) * S, :]
               for j in range(batch)]
        m = sci[0]
        for j in range(1, batch):
            m = jnp.maximum(m, sci[j])
        e = [jnp.exp(s - m) for s in sci]
        denom = e[0]
        for j in range(1, batch):
            denom = denom + e[j]
        inv = 1.0 / denom
        pw_blocks.extend([ej * inv for ej in e])
    pw = jnp.concatenate(pw_blocks, axis=0)                         # (B*B*S, H)
    wj = jnp.dot(pw, head_expand, precision=exact,
                 preferred_element_type=f32)                        # (B*B*S, D)

    ctx = []
    for i in range(batch):
        acc = wj[(i * batch) * S:(i * batch + 1) * S, :] * vs[0]
        for j in range(1, batch):
            acc = acc + wj[(i * batch + j) * S:(i * batch + j + 1) * S, :] * vs[j]
        ctx.append(acc)
    attn = ctx[0] if batch == 1 else jnp.concatenate(ctx, axis=0)   # (BS, D)

    attn = jnp.dot(attn.astype(jnp.bfloat16), wo,
                   preferred_element_type=f32) + bo
    x = _layer_norm(x + attn, ln1w, ln1b)

    # --- feed-forward ---------------------------------------------------------
    h = jnp.maximum(jnp.dot(x.astype(jnp.bfloat16), w1,
                            preferred_element_type=f32) + b1, 0.0)
    y = jnp.dot(h.astype(jnp.bfloat16), w2, preferred_element_type=f32) + b2
    x = _layer_norm(x + y, ln2w, ln2b)
    return x


def encoder_kernel(tok_ref, w_ref, const_ref, out_ref,
                   *, nhead, batch, d_model, dim_ff, num_layers):
    """Single invocation (no grid): all layers unrolled; everything VMEM
    resident.  tok_ref is the (B*S, 1) f32 token column; the (B*S, D)
    activation is created in-kernel (no HBM activation input)."""
    D, F = d_model, dim_ff
    BS = out_ref.shape[0]

    # tokens.float().unsqueeze(-1).expand(-1, -1, D), flattened to (B*S, D)
    x = jnp.broadcast_to(tok_ref[...], (BS, D))

    cbuf = const_ref[...]                               # (L*8 + D + H, W) f32
    hs_off = num_layers * 8
    head_sum = cbuf[hs_off:hs_off + D, 0:nhead]         # (D, H)
    head_expand = cbuf[hs_off + D:hs_off + D + nhead, 0:D]  # (H, D)

    for l in range(num_layers):                         # static unroll
        wl = w_ref[l]                                   # (3D + F, W) bf16
        cl = cbuf[l * 8:(l + 1) * 8, :]                 # (8, W) f32
        x = _encoder_layer_2d(
            x,
            wl[0:D, 0:3 * D],                           # wqkv  (D, 3D)
            wl[2 * D:3 * D, 0:D],                       # wo    (D, D)
            wl[D:2 * D, 0:F],                           # w1    (D, F)
            wl[3 * D:3 * D + F, 0:D],                   # w2    (F, D)
            cl[0:1, 0:3 * D], cl[1:2, 0:D],             # bqkv, bo
            cl[2:3, 0:F], cl[3:4, 0:D],                 # b1, b2
            cl[4:5, 0:D], cl[5:6, 0:D],                 # ln1w, ln1b
            cl[6:7, 0:D], cl[7:8, 0:D],                 # ln2w, ln2b
            head_sum, head_expand, nhead=nhead, batch=batch)
    out_ref[...] = x


def _pack_params(params, d_model, dim_ff, nhead):
    """Pack everything into two buffers:
      * w_packed  (L, 3D+F, W) bf16 : rows [0,D)=wqkv^T, [D,2D)=w1^T,
                                      [2D,3D)=wo^T, [3D,3D+F)=w2^T
      * const     (L*8 + D + H, W) f32 : per-layer rows
                  [bqkv, bo, b1, b2, ln1w, ln1b, ln2w, ln2b] then head_sum and
                  head_expand.
    All blocks start at lane 0; row offsets are multiples of the sublane tile
    for this config (D, F multiples of 16)."""
    L = params['wqkv'].shape[0]
    D, F = d_model, dim_ff
    W = max(3 * D, F, D)

    def padw(a):
        return jnp.pad(a, ((0, 0), (0, 0), (0, W - a.shape[-1])))

    wqkv_t = jnp.transpose(params['wqkv'], (0, 2, 1))   # (L, D, 3D)
    w1_t = jnp.transpose(params['w1'], (0, 2, 1))       # (L, D, F)
    wo_t = jnp.transpose(params['wo'], (0, 2, 1))       # (L, D, D)
    w2_t = jnp.transpose(params['w2'], (0, 2, 1))       # (L, F, D)
    w_packed = jnp.concatenate(
        [padw(wqkv_t), padw(w1_t), padw(wo_t), padw(w2_t)],
        axis=1).astype(jnp.bfloat16)                    # (L, 3D+F, W)

    def padr(a):
        return jnp.pad(a, ((0, 0), (0, W - a.shape[-1])))

    rows = [params['bqkv'], params['bo'], params['b1'], params['b2'],
            params['ln1w'], params['ln1b'], params['ln2w'], params['ln2b']]
    layer_rows = jnp.stack([padr(r) for r in rows], axis=1)   # (L, 8, W)
    layer_rows = layer_rows.reshape(L * 8, W)

    head_sum, head_expand = _head_matrices(D, nhead)
    hs = jnp.pad(head_sum, ((0, 0), (0, W - nhead)))
    he = jnp.pad(head_expand, ((0, 0), (0, W - D)))
    const = jnp.concatenate([layer_rows, hs, he],
                            axis=0).astype(jnp.float32)       # (L*8+D+H, W)
    return w_packed, const


def transformer_encoder_forward(tokens, params, d_model, nhead):
    B, S = tokens.shape
    D = d_model
    F = params['w1'].shape[1]
    L = params['wqkv'].shape[0]
    w_packed, const = _pack_params(params, D, F, nhead)

    # Tokens enter as a thin (B*S, 1) column; broadcast happens in the kernel.
    tok = tokens.astype(jnp.float32).reshape(B * S, 1)

    vmem = pltpu.MemorySpace.VMEM
    out2d = pl.pallas_call(
        functools.partial(encoder_kernel, nhead=nhead, batch=B,
                          d_model=D, dim_ff=F, num_layers=L),
        out_shape=jax.ShapeDtypeStruct((B * S, D), jnp.float32),
        in_specs=[pl.BlockSpec(memory_space=vmem) for _ in range(3)],
        out_specs=pl.BlockSpec(memory_space=vmem),
    )(tok, w_packed, const)
    return out2d.reshape(B, S, D)


def reference_forward(tokens, params, d_model, nhead):
    """Pure-JAX reference: identical math run outside Pallas."""
    B, S = tokens.shape
    D = d_model
    F = params['w1'].shape[1]
    L = params['wqkv'].shape[0]
    w_packed, const = _pack_params(params, D, F, nhead)

    x = jnp.broadcast_to(tokens.astype(jnp.float32).reshape(B * S, 1),
                         (B * S, D))
    hs_off = L * 8
    head_sum = const[hs_off:hs_off + D, 0:nhead]
    head_expand = const[hs_off + D:hs_off + D + nhead, 0:D]
    for l in range(L):
        wl = w_packed[l]
        cl = const[l * 8:(l + 1) * 8, :]
        x = _encoder_layer_2d(
            x,
            wl[0:D, 0:3 * D], wl[2 * D:3 * D, 0:D],
            wl[D:2 * D, 0:F], wl[3 * D:3 * D + F, 0:D],
            cl[0:1, 0:3 * D], cl[1:2, 0:D], cl[2:3, 0:F], cl[3:4, 0:D],
            cl[4:5, 0:D], cl[5:6, 0:D], cl[6:7, 0:D], cl[7:8, 0:D],
            head_sum, head_expand, nhead=nhead, batch=B)
    return x.reshape(B, S, D)


def init_params(key, num_layers, d_model, dim_feedforward):
    """Deterministic synthetic parameters (torch nn.TransformerEncoderLayer shapes)."""
    D, F = d_model, dim_feedforward
    ks = jax.random.split(key, 12)

    def u(k, shape, scale):
        return jax.random.uniform(k, shape, jnp.float32, -scale, scale)

    s = 0.05
    return dict(
        wqkv=u(ks[0], (num_layers, 3 * D, D), s),
        bqkv=u(ks[1], (num_layers, 3 * D), s),
        wo=u(ks[2], (num_layers, D, D), s),
        bo=u(ks[3], (num_layers, D), s),
        w1=u(ks[4], (num_layers, F, D), s),
        b1=u(ks[5], (num_layers, F), s),
        w2=u(ks[6], (num_layers, D, F), s),
        b2=u(ks[7], (num_layers, D), s),
        ln1w=1.0 + u(ks[8], (num_layers, D), 0.1),
        ln1b=u(ks[9], (num_layers, D), 0.1),
        ln2w=1.0 + u(ks[10], (num_layers, D), 0.1),
        ln2b=u(ks[11], (num_layers, D), 0.1),
    )


if __name__ == "__main__":
    # Module hyper-params (small): num_transformer_layers=2, d_model=32,
    # nhead=4, dim_feedforward=64, dropout=0.1 (inactive in eval mode).
    B, S = 2, 8
    d_model, nhead, dim_ff, num_layers = 32, 4, 64, 2

    key = jax.random.PRNGKey(0)
    k_tok, k_par = jax.random.split(key)
    tokens = jax.random.randint(k_tok, (B, S), 0, 10, dtype=jnp.int32)
    params = init_params(k_par, num_layers, d_model, dim_ff)

    out = transformer_encoder_forward(tokens, params, d_model, nhead)
    out = jax.block_until_ready(out)

    ref = reference_forward(tokens, params, d_model, nhead)
    assert out.shape == (B, S, d_model)
    np.testing.assert_allclose(np.asarray(out), np.asarray(ref),
                               rtol=2e-3, atol=2e-3)
    print("KERNEL_OK")
</pallas_src>

<mosaic_0001>
module attributes {stable_mosaic.version = 11 : i64} {
  func.func @encoder_kernel(%arg0: memref<16x1xf32, #tpu.memory_space<vmem>>, %arg1: memref<2x160x96xbf16, #tpu.memory_space<vmem>>, %arg2: memref<52x96xf32, #tpu.memory_space<vmem>>, %arg3: memref<16x32xf32, #tpu.memory_space<vmem>>) attributes {dimension_semantics = [], scalar_prefetch = 0 : i64, scratch_operands = 0 : i64, tpu.core_type = #tpu.core_type<tc>} {
    %c0 = arith.constant 0 : index
    %c0_0 = arith.constant 0 : index
    %0 = vector.load %arg0[%c0, %c0_0] : memref<16x1xf32, #tpu.memory_space<vmem>>, vector<16x1xf32>
    %1 = vector.shape_cast %0 : vector<16x1xf32> to vector<16x1xf32>
    %2 = vector.broadcast %1 : vector<16x1xf32> to vector<16x32xf32>
    %c0_1 = arith.constant 0 : index
    %c0_2 = arith.constant 0 : index
    %3 = vector.load %arg2[%c0_1, %c0_2] : memref<52x96xf32, #tpu.memory_space<vmem>>, vector<52x96xf32>
    %4 = vector.extract_strided_slice %3 {offsets = [16, 0], sizes = [32, 4], strides = [1, 1]} : vector<52x96xf32> to vector<32x4xf32>
    %5 = vector.extract_strided_slice %3 {offsets = [48, 0], sizes = [4, 32], strides = [1, 1]} : vector<52x96xf32> to vector<4x32xf32>
    %c0_3 = arith.constant 0 : index
    %c0_4 = arith.constant 0 : index
    %c0_5 = arith.constant 0 : index
    %6 = vector.load %arg1[%c0_3, %c0_4, %c0_5] : memref<2x160x96xbf16, #tpu.memory_space<vmem>>, vector<1x160x96xbf16>
    %7 = vector.shape_cast %6 : vector<1x160x96xbf16> to vector<160x96xbf16>
    %8 = vector.extract_strided_slice %3 {offsets = [0, 0], sizes = [8, 96], strides = [1, 1]} : vector<52x96xf32> to vector<8x96xf32>
    %9 = vector.extract_strided_slice %7 {offsets = [0, 0], sizes = [32, 96], strides = [1, 1]} : vector<160x96xbf16> to vector<32x96xbf16>
    %10 = vector.extract_strided_slice %7 {offsets = [64, 0], sizes = [32, 32], strides = [1, 1]} : vector<160x96xbf16> to vector<32x32xbf16>
    %11 = vector.extract_strided_slice %7 {offsets = [32, 0], sizes = [32, 64], strides = [1, 1]} : vector<160x96xbf16> to vector<32x64xbf16>
    %12 = vector.extract_strided_slice %7 {offsets = [96, 0], sizes = [64, 32], strides = [1, 1]} : vector<160x96xbf16> to vector<64x32xbf16>
    %13 = vector.extract_strided_slice %8 {offsets = [0, 0], sizes = [1, 96], strides = [1, 1]} : vector<8x96xf32> to vector<1x96xf32>
    %14 = vector.extract_strided_slice %8 {offsets = [1, 0], sizes = [1, 32], strides = [1, 1]} : vector<8x96xf32> to vector<1x32xf32>
    %15 = vector.extract_strided_slice %8 {offsets = [2, 0], sizes = [1, 64], strides = [1, 1]} : vector<8x96xf32> to vector<1x64xf32>
    %16 = vector.extract_strided_slice %8 {offsets = [3, 0], sizes = [1, 32], strides = [1, 1]} : vector<8x96xf32> to vector<1x32xf32>
    %17 = vector.extract_strided_slice %8 {offsets = [4, 0], sizes = [1, 32], strides = [1, 1]} : vector<8x96xf32> to vector<1x32xf32>
    %18 = vector.extract_strided_slice %8 {offsets = [5, 0], sizes = [1, 32], strides = [1, 1]} : vector<8x96xf32> to vector<1x32xf32>
    %19 = vector.extract_strided_slice %8 {offsets = [6, 0], sizes = [1, 32], strides = [1, 1]} : vector<8x96xf32> to vector<1x32xf32>
    %20 = vector.extract_strided_slice %8 {offsets = [7, 0], sizes = [1, 32], strides = [1, 1]} : vector<8x96xf32> to vector<1x32xf32>
    %21 = arith.truncf %2 : vector<16x32xf32> to vector<16x32xbf16>
    %cst = arith.constant dense<0.000000e+00> : vector<16x96xf32>
    %22 = tpu.matmul %21, %9, %cst {dimension_numbers = #tpu.dot_dimension_numbers<[1], [0], [0], [1], [0, 0, 1, 1], [], []>} : vector<16x32xbf16>, vector<32x96xbf16>, vector<16x96xf32> -> vector<16x96xf32>
    %23 = vector.broadcast %13 : vector<1x96xf32> to vector<16x96xf32>
    %24 = arith.addf %22, %23 : vector<16x96xf32>
    %25 = vector.extract_strided_slice %24 {offsets = [0, 0], sizes = [16, 32], strides = [1, 1]} : vector<16x96xf32> to vector<16x32xf32>
    %26 = vector.extract_strided_slice %24 {offsets = [0, 32], sizes = [16, 32], strides = [1, 1]} : vector<16x96xf32> to vector<16x32xf32>
    %27 = vector.extract_strided_slice %24 {offsets = [0, 64], sizes = [16, 32], strides = [1, 1]} : vector<16x96xf32> to vector<16x32xf32>
    %28 = vector.extract_strided_slice %25 {offsets = [0, 0], sizes = [8, 32], strides = [1, 1]} : vector<16x32xf32> to vector<8x32xf32>
    %29 = vector.extract_strided_slice %25 {offsets = [8, 0], sizes = [8, 32], strides = [1, 1]} : vector<16x32xf32> to vector<8x32xf32>
    %30 = vector.extract_strided_slice %26 {offsets = [0, 0], sizes = [8, 32], strides = [1, 1]} : vector<16x32xf32> to vector<8x32xf32>
    %31 = vector.extract_strided_slice %26 {offsets = [8, 0], sizes = [8, 32], strides = [1, 1]} : vector<16x32xf32> to vector<8x32xf32>
    %32 = vector.extract_strided_slice %27 {offsets = [0, 0], sizes = [8, 32], strides = [1, 1]} : vector<16x32xf32> to vector<8x32xf32>
    %33 = vector.extract_strided_slice %27 {offsets = [8, 0], sizes = [8, 32], strides = [1, 1]} : vector<16x32xf32> to vector<8x32xf32>
    %34 = arith.mulf %28, %30 : vector<8x32xf32>
    %35 = arith.mulf %28, %31 : vector<8x32xf32>
    %36 = arith.mulf %29, %30 : vector<8x32xf32>
    %37 = arith.mulf %29, %31 : vector<8x32xf32>
    %38 = tpu.concatenate %34, %35, %36, %37 in 0 : vector<8x32xf32>, vector<8x32xf32>, vector<8x32xf32>, vector<8x32xf32> -> vector<32x32xf32>
    %cst_6 = arith.constant dense<0.000000e+00> : vector<32x4xf32>
    %39 = tpu.matmul %38, %4, %cst_6 {dimension_numbers = #tpu.dot_dimension_numbers<[1], [0], [0], [1], [0, 0, 1, 1], [], []>, precision = #tpu.contract_precision<fp32>} : vector<32x32xf32>, vector<32x4xf32>, vector<32x4xf32> -> vector<32x4xf32>
    %cst_7 = arith.constant 0.353553385 : f32
    %40 = vector.broadcast %cst_7 : f32 to vector<32x4xf32>
    %41 = arith.mulf %39, %40 : vector<32x4xf32>
    %42 = vector.extract_strided_slice %41 {offsets = [0, 0], sizes = [8, 4], strides = [1, 1]} : vector<32x4xf32> to vector<8x4xf32>
    %43 = vector.extract_strided_slice %41 {offsets = [8, 0], sizes = [8, 4], strides = [1, 1]} : vector<32x4xf32> to vector<8x4xf32>
    %44 = arith.maximumf %42, %43 : vector<8x4xf32>
    %45 = arith.subf %42, %44 : vector<8x4xf32>
    %46 = math.exp %45 : vector<8x4xf32>
    %47 = arith.subf %43, %44 : vector<8x4xf32>
    %48 = math.exp %47 : vector<8x4xf32>
    %49 = arith.addf %46, %48 : vector<8x4xf32>
    %cst_8 = arith.constant 1.000000e+00 : f32
    %50 = vector.broadcast %cst_8 : f32 to vector<8x4xf32>
    %51 = arith.divf %50, %49 : vector<8x4xf32>
    %52 = arith.mulf %46, %51 : vector<8x4xf32>
    %53 = arith.mulf %48, %51 : vector<8x4xf32>
    %54 = vector.extract_strided_slice %41 {offsets = [16, 0], sizes = [8, 4], strides = [1, 1]} : vector<32x4xf32> to vector<8x4xf32>
    %55 = vector.extract_strided_slice %41 {offsets = [24, 0], sizes = [8, 4], strides = [1, 1]} : vector<32x4xf32> to vector<8x4xf32>
    %56 = arith.maximumf %54, %55 : vector<8x4xf32>
    %57 = arith.subf %54, %56 : vector<8x4xf32>
    %58 = math.exp %57 : vector<8x4xf32>
    %59 = arith.subf %55, %56 : vector<8x4xf32>
    %60 = math.exp %59 : vector<8x4xf32>
    %61 = arith.addf %58, %60 : vector<8x4xf32>
    %cst_9 = arith.constant 1.000000e+00 : f32
    %62 = vector.broadcast %cst_9 : f32 to vector<8x4xf32>
    %63 = arith.divf %62, %61 : vector<8x4xf32>
    %64 = arith.mulf %58, %63 : vector<8x4xf32>
    %65 = arith.mulf %60, %63 : vector<8x4xf32>
    %66 = tpu.concatenate %52, %53, %64, %65 in 0 : vector<8x4xf32>, vector<8x4xf32>, vector<8x4xf32>, vector<8x4xf32> -> vector<32x4xf32>
    %cst_10 = arith.constant dense<0.000000e+00> : vector<32x32xf32>
    %67 = tpu.matmul %66, %5, %cst_10 {dimension_numbers = #tpu.dot_dimension_numbers<[1], [0], [0], [1], [0, 0, 1, 1], [], []>, precision = #tpu.contract_precision<fp32>} : vector<32x4xf32>, vector<4x32xf32>, vector<32x32xf32> -> vector<32x32xf32>
    %68 = vector.extract_strided_slice %67 {offsets = [0, 0], sizes = [8, 32], strides = [1, 1]} : vector<32x32xf32> to vector<8x32xf32>
    %69 = arith.mulf %68, %32 : vector<8x32xf32>
    %70 = vector.extract_strided_slice %67 {offsets = [8, 0], sizes = [8, 32], strides = [1, 1]} : vector<32x32xf32> to vector<8x32xf32>
    %71 = arith.mulf %70, %33 : vector<8x32xf32>
    %72 = arith.addf %69, %71 : vector<8x32xf32>
    %73 = vector.extract_strided_slice %67 {offsets = [16, 0], sizes = [8, 32], strides = [1, 1]} : vector<32x32xf32> to vector<8x32xf32>
    %74 = arith.mulf %73, %32 : vector<8x32xf32>
    %75 = vector.extract_strided_slice %67 {offsets = [24, 0], sizes = [8, 32], strides = [1, 1]} : vector<32x32xf32> to vector<8x32xf32>
    %76 = arith.mulf %75, %33 : vector<8x32xf32>
    %77 = arith.addf %74, %76 : vector<8x32xf32>
    %78 = tpu.concatenate %72, %77 in 0 : vector<8x32xf32>, vector<8x32xf32> -> vector<16x32xf32>
    %79 = arith.truncf %78 : vector<16x32xf32> to vector<16x32xbf16>
    %cst_11 = arith.constant dense<0.000000e+00> : vector<16x32xf32>
    %80 = tpu.matmul %79, %10, %cst_11 {dimension_numbers = #tpu.dot_dimension_numbers<[1], [0], [0], [1], [0, 0, 1, 1], [], []>} : vector<16x32xbf16>, vector<32x32xbf16>, vector<16x32xf32> -> vector<16x32xf32>
    %81 = vector.broadcast %14 : vector<1x32xf32> to vector<16x32xf32>
    %82 = arith.addf %80, %81 : vector<16x32xf32>
    %83 = arith.addf %2, %82 : vector<16x32xf32>
    %cst_12 = arith.constant dense<0.000000e+00> : vector<16xf32>
    %84 = vector.multi_reduction <add>, %83, %cst_12 [1] : vector<16x32xf32> to vector<16xf32>
    %85 = vector.shape_cast %84 : vector<16xf32> to vector<16x1xf32>
    %cst_13 = arith.constant 3.200000e+01 : f32
    %86 = vector.broadcast %cst_13 : f32 to vector<16x1xf32>
    %87 = arith.divf %85, %86 : vector<16x1xf32>
    %88 = vector.broadcast %87 : vector<16x1xf32> to vector<16x32xf32>
    %89 = arith.subf %83, %88 : vector<16x32xf32>
    %90 = arith.mulf %89, %89 : vector<16x32xf32>
    %cst_14 = arith.constant dense<0.000000e+00> : vector<16xf32>
    %91 = vector.multi_reduction <add>, %90, %cst_14 [1] : vector<16x32xf32> to vector<16xf32>
    %92 = vector.shape_cast %91 : vector<16xf32> to vector<16x1xf32>
    %cst_15 = arith.constant 3.200000e+01 : f32
    %93 = vector.broadcast %cst_15 : f32 to vector<16x1xf32>
    %94 = arith.divf %92, %93 : vector<16x1xf32>
    %95 = vector.broadcast %87 : vector<16x1xf32> to vector<16x32xf32>
    %96 = arith.subf %83, %95 : vector<16x32xf32>
    %cst_16 = arith.constant 9.99999974E-6 : f32
    %97 = vector.broadcast %cst_16 : f32 to vector<16x1xf32>
    %98 = arith.addf %94, %97 : vector<16x1xf32>
    %99 = math.rsqrt %98 : vector<16x1xf32>
    %100 = vector.broadcast %99 : vector<16x1xf32> to vector<16x32xf32>
    %101 = arith.mulf %96, %100 : vector<16x32xf32>
    %102 = vector.broadcast %17 : vector<1x32xf32> to vector<16x32xf32>
    %103 = arith.mulf %101, %102 : vector<16x32xf32>
    %104 = vector.broadcast %18 : vector<1x32xf32> to vector<16x32xf32>
    %105 = arith.addf %103, %104 : vector<16x32xf32>
    %106 = arith.truncf %105 : vector<16x32xf32> to vector<16x32xbf16>
    %cst_17 = arith.constant dense<0.000000e+00> : vector<16x64xf32>
    %107 = tpu.matmul %106, %11, %cst_17 {dimension_numbers = #tpu.dot_dimension_numbers<[1], [0], [0], [1], [0, 0, 1, 1], [], []>} : vector<16x32xbf16>, vector<32x64xbf16>, vector<16x64xf32> -> vector<16x64xf32>
    %108 = vector.broadcast %15 : vector<1x64xf32> to vector<16x64xf32>
    %109 = arith.addf %107, %108 : vector<16x64xf32>
    %cst_18 = arith.constant 0.000000e+00 : f32
    %110 = vector.broadcast %cst_18 : f32 to vector<16x64xf32>
    %111 = arith.maximumf %109, %110 : vector<16x64xf32>
    %112 = arith.truncf %111 : vector<16x64xf32> to vector<16x64xbf16>
    %cst_19 = arith.constant dense<0.000000e+00> : vector<16x32xf32>
    %113 = tpu.matmul %112, %12, %cst_19 {dimension_numbers = #tpu.dot_dimension_numbers<[1], [0], [0], [1], [0, 0, 1, 1], [], []>} : vector<16x64xbf16>, vector<64x32xbf16>, vector<16x32xf32> -> vector<16x32xf32>
    %114 = vector.broadcast %16 : vector<1x32xf32> to vector<16x32xf32>
    %115 = arith.addf %113, %114 : vector<16x32xf32>
    %116 = arith.addf %105, %115 : vector<16x32xf32>
    %cst_20 = arith.constant dense<0.000000e+00> : vector<16xf32>
    %117 = vector.multi_reduction <add>, %116, %cst_20 [1] : vector<16x32xf32> to vector<16xf32>
    %118 = vector.shape_cast %117 : vector<16xf32> to vector<16x1xf32>
    %cst_21 = arith.constant 3.200000e+01 : f32
    %119 = vector.broadcast %cst_21 : f32 to vector<16x1xf32>
    %120 = arith.divf %118, %119 : vector<16x1xf32>
    %121 = vector.broadcast %120 : vector<16x1xf32> to vector<16x32xf32>
    %122 = arith.subf %116, %121 : vector<16x32xf32>
    %123 = arith.mulf %122, %122 : vector<16x32xf32>
    %cst_22 = arith.constant dense<0.000000e+00> : vector<16xf32>
    %124 = vector.multi_reduction <add>, %123, %cst_22 [1] : vector<16x32xf32> to vector<16xf32>
    %125 = vector.shape_cast %124 : vector<16xf32> to vector<16x1xf32>
    %cst_23 = arith.constant 3.200000e+01 : f32
    %126 = vector.broadcast %cst_23 : f32 to vector<16x1xf32>
    %127 = arith.divf %125, %126 : vector<16x1xf32>
    %128 = vector.broadcast %120 : vector<16x1xf32> to vector<16x32xf32>
    %129 = arith.subf %116, %128 : vector<16x32xf32>
    %cst_24 = arith.constant 9.99999974E-6 : f32
    %130 = vector.broadcast %cst_24 : f32 to vector<16x1xf32>
    %131 = arith.addf %127, %130 : vector<16x1xf32>
    %132 = math.rsqrt %131 : vector<16x1xf32>
    %133 = vector.broadcast %132 : vector<16x1xf32> to vector<16x32xf32>
    %134 = arith.mulf %129, %133 : vector<16x32xf32>
    %135 = vector.broadcast %19 : vector<1x32xf32> to vector<16x32xf32>
    %136 = arith.mulf %134, %135 : vector<16x32xf32>
    %137 = vector.broadcast %20 : vector<1x32xf32> to vector<16x32xf32>
    %138 = arith.addf %136, %137 : vector<16x32xf32>
    %c1 = arith.constant 1 : index
    %c0_25 = arith.constant 0 : index
    %c0_26 = arith.constant 0 : index
    %139 = vector.load %arg1[%c1, %c0_25, %c0_26] : memref<2x160x96xbf16, #tpu.memory_space<vmem>>, vector<1x160x96xbf16>
    %140 = vector.shape_cast %139 : vector<1x160x96xbf16> to vector<160x96xbf16>
    %141 = vector.extract_strided_slice %3 {offsets = [8, 0], sizes = [8, 96], strides = [1, 1]} : vector<52x96xf32> to vector<8x96xf32>
    %142 = vector.extract_strided_slice %140 {offsets = [0, 0], sizes = [32, 96], strides = [1, 1]} : vector<160x96xbf16> to vector<32x96xbf16>
    %143 = vector.extract_strided_slice %140 {offsets = [64, 0], sizes = [32, 32], strides = [1, 1]} : vector<160x96xbf16> to vector<32x32xbf16>
    %144 = vector.extract_strided_slice %140 {offsets = [32, 0], sizes = [32, 64], strides = [1, 1]} : vector<160x96xbf16> to vector<32x64xbf16>
    %145 = vector.extract_strided_slice %140 {offsets = [96, 0], sizes = [64, 32], strides = [1, 1]} : vector<160x96xbf16> to vector<64x32xbf16>
    %146 = vector.extract_strided_slice %141 {offsets = [0, 0], sizes = [1, 96], strides = [1, 1]} : vector<8x96xf32> to vector<1x96xf32>
    %147 = vector.extract_strided_slice %141 {offsets = [1, 0], sizes = [1, 32], strides = [1, 1]} : vector<8x96xf32> to vector<1x32xf32>
    %148 = vector.extract_strided_slice %141 {offsets = [2, 0], sizes = [1, 64], strides = [1, 1]} : vector<8x96xf32> to vector<1x64xf32>
    %149 = vector.extract_strided_slice %141 {offsets = [3, 0], sizes = [1, 32], strides = [1, 1]} : vector<8x96xf32> to vector<1x32xf32>
    %150 = vector.extract_strided_slice %141 {offsets = [4, 0], sizes = [1, 32], strides = [1, 1]} : vector<8x96xf32> to vector<1x32xf32>
    %151 = vector.extract_strided_slice %141 {offsets = [5, 0], sizes = [1, 32], strides = [1, 1]} : vector<8x96xf32> to vector<1x32xf32>
    %152 = vector.extract_strided_slice %141 {offsets = [6, 0], sizes = [1, 32], strides = [1, 1]} : vector<8x96xf32> to vector<1x32xf32>
    %153 = vector.extract_strided_slice %141 {offsets = [7, 0], sizes = [1, 32], strides = [1, 1]} : vector<8x96xf32> to vector<1x32xf32>
    %154 = arith.truncf %138 : vector<16x32xf32> to vector<16x32xbf16>
    %cst_27 = arith.constant dense<0.000000e+00> : vector<16x96xf32>
    %155 = tpu.matmul %154, %142, %cst_27 {dimension_numbers = #tpu.dot_dimension_numbers<[1], [0], [0], [1], [0, 0, 1, 1], [], []>} : vector<16x32xbf16>, vector<32x96xbf16>, vector<16x96xf32> -> vector<16x96xf32>
    %156 = vector.broadcast %146 : vector<1x96xf32> to vector<16x96xf32>
    %157 = arith.addf %155, %156 : vector<16x96xf32>
    %158 = vector.extract_strided_slice %157 {offsets = [0, 0], sizes = [16, 32], strides = [1, 1]} : vector<16x96xf32> to vector<16x32xf32>
    %159 = vector.extract_strided_slice %157 {offsets = [0, 32], sizes = [16, 32], strides = [1, 1]} : vector<16x96xf32> to vector<16x32xf32>
    %160 = vector.extract_strided_slice %157 {offsets = [0, 64], sizes = [16, 32], strides = [1, 1]} : vector<16x96xf32> to vector<16x32xf32>
    %161 = vector.extract_strided_slice %158 {offsets = [0, 0], sizes = [8, 32], strides = [1, 1]} : vector<16x32xf32> to vector<8x32xf32>
    %162 = vector.extract_strided_slice %158 {offsets = [8, 0], sizes = [8, 32], strides = [1, 1]} : vector<16x32xf32> to vector<8x32xf32>
    %163 = vector.extract_strided_slice %159 {offsets = [0, 0], sizes = [8, 32], strides = [1, 1]} : vector<16x32xf32> to vector<8x32xf32>
    %164 = vector.extract_strided_slice %159 {offsets = [8, 0], sizes = [8, 32], strides = [1, 1]} : vector<16x32xf32> to vector<8x32xf32>
    %165 = vector.extract_strided_slice %160 {offsets = [0, 0], sizes = [8, 32], strides = [1, 1]} : vector<16x32xf32> to vector<8x32xf32>
    %166 = vector.extract_strided_slice %160 {offsets = [8, 0], sizes = [8, 32], strides = [1, 1]} : vector<16x32xf32> to vector<8x32xf32>
    %167 = arith.mulf %161, %163 : vector<8x32xf32>
    %168 = arith.mulf %161, %164 : vector<8x32xf32>
    %169 = arith.mulf %162, %163 : vector<8x32xf32>
    %170 = arith.mulf %162, %164 : vector<8x32xf32>
    %171 = tpu.concatenate %167, %168, %169, %170 in 0 : vector<8x32xf32>, vector<8x32xf32>, vector<8x32xf32>, vector<8x32xf32> -> vector<32x32xf32>
    %cst_28 = arith.constant dense<0.000000e+00> : vector<32x4xf32>
    %172 = tpu.matmul %171, %4, %cst_28 {dimension_numbers = #tpu.dot_dimension_numbers<[1], [0], [0], [1], [0, 0, 1, 1], [], []>, precision = #tpu.contract_precision<fp32>} : vector<32x32xf32>, vector<32x4xf32>, vector<32x4xf32> -> vector<32x4xf32>
    %cst_29 = arith.constant 0.353553385 : f32
    %173 = vector.broadcast %cst_29 : f32 to vector<32x4xf32>
    %174 = arith.mulf %172, %173 : vector<32x4xf32>
    %175 = vector.extract_strided_slice %174 {offsets = [0, 0], sizes = [8, 4], strides = [1, 1]} : vector<32x4xf32> to vector<8x4xf32>
    %176 = vector.extract_strided_slice %174 {offsets = [8, 0], sizes = [8, 4], strides = [1, 1]} : vector<32x4xf32> to vector<8x4xf32>
    %177 = arith.maximumf %175, %176 : vector<8x4xf32>
    %178 = arith.subf %175, %177 : vector<8x4xf32>
    %179 = math.exp %178 : vector<8x4xf32>
    %180 = arith.subf %176, %177 : vector<8x4xf32>
    %181 = math.exp %180 : vector<8x4xf32>
    %182 = arith.addf %179, %181 : vector<8x4xf32>
    %cst_30 = arith.constant 1.000000e+00 : f32
    %183 = vector.broadcast %cst_30 : f32 to vector<8x4xf32>
    %184 = arith.divf %183, %182 : vector<8x4xf32>
    %185 = arith.mulf %179, %184 : vector<8x4xf32>
    %186 = arith.mulf %181, %184 : vector<8x4xf32>
    %187 = vector.extract_strided_slice %174 {offsets = [16, 0], sizes = [8, 4], strides = [1, 1]} : vector<32x4xf32> to vector<8x4xf32>
    %188 = vector.extract_strided_slice %174 {offsets = [24, 0], sizes = [8, 4], strides = [1, 1]} : vector<32x4xf32> to vector<8x4xf32>
    %189 = arith.maximumf %187, %188 : vector<8x4xf32>
    %190 = arith.subf %187, %189 : vector<8x4xf32>
    %191 = math.exp %190 : vector<8x4xf32>
    %192 = arith.subf %188, %189 : vector<8x4xf32>
    %193 = math.exp %192 : vector<8x4xf32>
    %194 = arith.addf %191, %193 : vector<8x4xf32>
    %cst_31 = arith.constant 1.000000e+00 : f32
    %195 = vector.broadcast %cst_31 : f32 to vector<8x4xf32>
    %196 = arith.divf %195, %194 : vector<8x4xf32>
    %197 = arith.mulf %191, %196 : vector<8x4xf32>
    %198 = arith.mulf %193, %196 : vector<8x4xf32>
    %199 = tpu.concatenate %185, %186, %197, %198 in 0 : vector<8x4xf32>, vector<8x4xf32>, vector<8x4xf32>, vector<8x4xf32> -> vector<32x4xf32>
    %cst_32 = arith.constant dense<0.000000e+00> : vector<32x32xf32>
    %200 = tpu.matmul %199, %5, %cst_32 {dimension_numbers = #tpu.dot_dimension_numbers<[1], [0], [0], [1], [0, 0, 1, 1], [], []>, precision = #tpu.contract_precision<fp32>} : vector<32x4xf32>, vector<4x32xf32>, vector<32x32xf32> -> vector<32x32xf32>
    %201 = vector.extract_strided_slice %200 {offsets = [0, 0], sizes = [8, 32], strides = [1, 1]} : vector<32x32xf32> to vector<8x32xf32>
    %202 = arith.mulf %201, %165 : vector<8x32xf32>
    %203 = vector.extract_strided_slice %200 {offsets = [8, 0], sizes = [8, 32], strides = [1, 1]} : vector<32x32xf32> to vector<8x32xf32>
    %204 = arith.mulf %203, %166 : vector<8x32xf32>
    %205 = arith.addf %202, %204 : vector<8x32xf32>
    %206 = vector.extract_strided_slice %200 {offsets = [16, 0], sizes = [8, 32], strides = [1, 1]} : vector<32x32xf32> to vector<8x32xf32>
    %207 = arith.mulf %206, %165 : vector<8x32xf32>
    %208 = vector.extract_strided_slice %200 {offsets = [24, 0], sizes = [8, 32], strides = [1, 1]} : vector<32x32xf32> to vector<8x32xf32>
    %209 = arith.mulf %208, %166 : vector<8x32xf32>
    %210 = arith.addf %207, %209 : vector<8x32xf32>
    %211 = tpu.concatenate %205, %210 in 0 : vector<8x32xf32>, vector<8x32xf32> -> vector<16x32xf32>
    %212 = arith.truncf %211 : vector<16x32xf32> to vector<16x32xbf16>
    %cst_33 = arith.constant dense<0.000000e+00> : vector<16x32xf32>
    %213 = tpu.matmul %212, %143, %cst_33 {dimension_numbers = #tpu.dot_dimension_numbers<[1], [0], [0], [1], [0, 0, 1, 1], [], []>} : vector<16x32xbf16>, vector<32x32xbf16>, vector<16x32xf32> -> vector<16x32xf32>
    %214 = vector.broadcast %147 : vector<1x32xf32> to vector<16x32xf32>
    %215 = arith.addf %213, %214 : vector<16x32xf32>
    %216 = arith.addf %138, %215 : vector<16x32xf32>
    %cst_34 = arith.constant dense<0.000000e+00> : vector<16xf32>
    %217 = vector.multi_reduction <add>, %216, %cst_34 [1] : vector<16x32xf32> to vector<16xf32>
    %218 = vector.shape_cast %217 : vector<16xf32> to vector<16x1xf32>
    %cst_35 = arith.constant 3.200000e+01 : f32
    %219 = vector.broadcast %cst_35 : f32 to vector<16x1xf32>
    %220 = arith.divf %218, %219 : vector<16x1xf32>
    %221 = vector.broadcast %220 : vector<16x1xf32> to vector<16x32xf32>
    %222 = arith.subf %216, %221 : vector<16x32xf32>
    %223 = arith.mulf %222, %222 : vector<16x32xf32>
    %cst_36 = arith.constant dense<0.000000e+00> : vector<16xf32>
    %224 = vector.multi_reduction <add>, %223, %cst_36 [1] : vector<16x32xf32> to vector<16xf32>
    %225 = vector.shape_cast %224 : vector<16xf32> to vector<16x1xf32>
    %cst_37 = arith.constant 3.200000e+01 : f32
    %226 = vector.broadcast %cst_37 : f32 to vector<16x1xf32>
    %227 = arith.divf %225, %226 : vector<16x1xf32>
    %228 = vector.broadcast %220 : vector<16x1xf32> to vector<16x32xf32>
    %229 = arith.subf %216, %228 : vector<16x32xf32>
    %cst_38 = arith.constant 9.99999974E-6 : f32
    %230 = vector.broadcast %cst_38 : f32 to vector<16x1xf32>
    %231 = arith.addf %227, %230 : vector<16x1xf32>
    %232 = math.rsqrt %231 : vector<16x1xf32>
    %233 = vector.broadcast %232 : vector<16x1xf32> to vector<16x32xf32>
    %234 = arith.mulf %229, %233 : vector<16x32xf32>
    %235 = vector.broadcast %150 : vector<1x32xf32> to vector<16x32xf32>
    %236 = arith.mulf %234, %235 : vector<16x32xf32>
    %237 = vector.broadcast %151 : vector<1x32xf32> to vector<16x32xf32>
    %238 = arith.addf %236, %237 : vector<16x32xf32>
    %239 = arith.truncf %238 : vector<16x32xf32> to vector<16x32xbf16>
    %cst_39 = arith.constant dense<0.000000e+00> : vector<16x64xf32>
    %240 = tpu.matmul %239, %144, %cst_39 {dimension_numbers = #tpu.dot_dimension_numbers<[1], [0], [0], [1], [0, 0, 1, 1], [], []>} : vector<16x32xbf16>, vector<32x64xbf16>, vector<16x64xf32> -> vector<16x64xf32>
    %241 = vector.broadcast %148 : vector<1x64xf32> to vector<16x64xf32>
    %242 = arith.addf %240, %241 : vector<16x64xf32>
    %cst_40 = arith.constant 0.000000e+00 : f32
    %243 = vector.broadcast %cst_40 : f32 to vector<16x64xf32>
    %244 = arith.maximumf %242, %243 : vector<16x64xf32>
    %245 = arith.truncf %244 : vector<16x64xf32> to vector<16x64xbf16>
    %cst_41 = arith.constant dense<0.000000e+00> : vector<16x32xf32>
    %246 = tpu.matmul %245, %145, %cst_41 {dimension_numbers = #tpu.dot_dimension_numbers<[1], [0], [0], [1], [0, 0, 1, 1], [], []>} : vector<16x64xbf16>, vector<64x32xbf16>, vector<16x32xf32> -> vector<16x32xf32>
    %247 = vector.broadcast %149 : vector<1x32xf32> to vector<16x32xf32>
    %248 = arith.addf %246, %247 : vector<16x32xf32>
    %249 = arith.addf %238, %248 : vector<16x32xf32>
    %cst_42 = arith.constant dense<0.000000e+00> : vector<16xf32>
    %250 = vector.multi_reduction <add>, %249, %cst_42 [1] : vector<16x32xf32> to vector<16xf32>
    %251 = vector.shape_cast %250 : vector<16xf32> to vector<16x1xf32>
    %cst_43 = arith.constant 3.200000e+01 : f32
    %252 = vector.broadcast %cst_43 : f32 to vector<16x1xf32>
    %253 = arith.divf %251, %252 : vector<16x1xf32>
    %254 = vector.broadcast %253 : vector<16x1xf32> to vector<16x32xf32>
    %255 = arith.subf %249, %254 : vector<16x32xf32>
    %256 = arith.mulf %255, %255 : vector<16x32xf32>
    %cst_44 = arith.constant dense<0.000000e+00> : vector<16xf32>
    %257 = vector.multi_reduction <add>, %256, %cst_44 [1] : vector<16x32xf32> to vector<16xf32>
    %258 = vector.shape_cast %257 : vector<16xf32> to vector<16x1xf32>
    %cst_45 = arith.constant 3.200000e+01 : f32
    %259 = vector.broadcast %cst_45 : f32 to vector<16x1xf32>
    %260 = arith.divf %258, %259 : vector<16x1xf32>
    %261 = vector.broadcast %253 : vector<16x1xf32> to vector<16x32xf32>
    %262 = arith.subf %249, %261 : vector<16x32xf32>
    %cst_46 = arith.constant 9.99999974E-6 : f32
    %263 = vector.broadcast %cst_46 : f32 to vector<16x1xf32>
    %264 = arith.addf %260, %263 : vector<16x1xf32>
    %265 = math.rsqrt %264 : vector<16x1xf32>
    %266 = vector.broadcast %265 : vector<16x1xf32> to vector<16x32xf32>
    %267 = arith.mulf %262, %266 : vector<16x32xf32>
    %268 = vector.broadcast %152 : vector<1x32xf32> to vector<16x32xf32>
    %269 = arith.mulf %267, %268 : vector<16x32xf32>
    %270 = vector.broadcast %153 : vector<1x32xf32> to vector<16x32xf32>
    %271 = arith.addf %269, %270 : vector<16x32xf32>
    %c0_47 = arith.constant 0 : index
    %c0_48 = arith.constant 0 : index
    %272 = vector.load %arg3[%c0_47, %c0_48] : memref<16x32xf32, #tpu.memory_space<vmem>>, vector<16x32xf32>
    tpu.vector_store %arg3[%c0_47, %c0_48], %271 {strides = array<i32>} : memref<16x32xf32, #tpu.memory_space<vmem>>, vector<16x32xf32>,
    return
  }
}

</mosaic_0001>

<llo_original>
// kernel: tpu_custom_call.1
$region0: #{tpu_custom_call.1}
  #allocation0 [shape = 'u32[]', space=smem, size = 0x4, offset = 0x4, fixed_abs, tag = 'smem constant byte address 0x4 - core index']
  #allocation1 [shape = 'u32[144,128]{1,0:T(1,128)}', space=vmem, size = 0x12000, scoped, tag = 'internal scratch']
  %s0 = inlined_call_operand.vmem [shape: f32[16,1], index: 0, kind: input, shape index: {}]
  %s1 = inlined_call_operand.hbm [shape: bf16[2,160,96], index: 1, kind: input, shape index: {}]
  %s2 = inlined_call_operand.hbm [shape: f32[52,96], index: 2, kind: input, shape index: {}]
  %s3 = inlined_call_operand.hbm [shape: f32[16,32], index: 3, kind: output, shape index: {}]
  %s4 = sld [smem:[#allocation0]]
  $region30: #{tpu_custom_call.1} parent=0
    _
  %s6 = ssub.s32 1, %s4
  %s7 = scalar_select 0, %s6, %s4
  $region1: #{tpu_custom_call.1} parent=0
    #allocation2 [shape = 'u8[81920]{0}', space=vmem, size = 0x14000, scoped, tag = 'input window, operand 1, single buffered']
    #allocation3 [shape = 's32[1]{0}', space=sflag, size = 0x4, scoped, tag = 'scoped memory for tpu_custom_call.1']
    #allocation4 [shape = 's32[1]{0}', space=sflag, size = 0x4, scoped, tag = 'scoped memory for tpu_custom_call.1']
    #allocation5 [shape = 'u8[28672]{0}', space=vmem, size = 0x7000, scoped, tag = 'input window, operand 2, single buffered']
    #allocation6 [shape = 's32[1]{0}', space=sflag, size = 0x4, scoped, tag = 'scoped memory for tpu_custom_call.1']
    #allocation7 [shape = 'u8[8192]{0}', space=vmem, size = 0x2000, scoped, tag = 'output window, operand 0, single buffered']
    %8 = vsyncpa [#allocation3], 0
    %9 = vsyncpa [#allocation6], 0
    %10 = vsyncpa [#allocation4], 0
    // Predicated region
    $region2: #{tpu_custom_call.1} parent=1 // pred_check
      _
    $region3: #{tpu_custom_call.1} parent=1 // pred_check_branch
      %12 = sbr.rel (0) target = $region5
    $region4: #{tpu_custom_call.1} parent=1 // pred_region
      _
    $region5: #{tpu_custom_call.1} parent=1 // pred_fallthru
      _
    // Predicated region
    $region6: #{tpu_custom_call.1} parent=1 // pred_check
      _
    $region7: #{tpu_custom_call.1} parent=1 // pred_check_branch
      %14 = sbr.rel (0) target = $region9
    $region8: #{tpu_custom_call.1} parent=1 // pred_region
      %s16 = ssub.s32 2560, 2560
      %17 = vsyncadd [#allocation3], %s16
      %s18 = sshll.u32 [#allocation2], 4
      %s19 = int_to_ptr.vmem [resolvable:$true] %s18
      %24 = dma.hbm_to_vmem [thread:$0]  %s1, 2560, %s19, [#allocation3], 64, 64, 4
    $region9: #{tpu_custom_call.1} parent=1 // pred_fallthru
      _
    // Predicated region
    $region10: #{tpu_custom_call.1} parent=1 // pred_check
      _
    $region11: #{tpu_custom_call.1} parent=1 // pred_check_branch
      %26 = sbr.rel (0) target = $region13
    $region12: #{tpu_custom_call.1} parent=1 // pred_region
      %s28 = ssub.s32 896, 896
      %29 = vsyncadd [#allocation6], %s28
      %s30 = sshll.u32 [#allocation5], 4
      %s31 = int_to_ptr.vmem [resolvable:$true] %s30
      %36 = dma.hbm_to_vmem [thread:$0]  %s2, 896, %s31, [#allocation6], 128, 128, 8
    $region13: #{tpu_custom_call.1} parent=1 // pred_fallthru
      _
    // Predicated region
    $region14: #{tpu_custom_call.1} parent=1 // pred_check
      _
    $region15: #{tpu_custom_call.1} parent=1 // pred_check_branch
      %38 = sbr.rel (0) target = $region17
    $region16: #{tpu_custom_call.1} parent=1 // pred_region
      %39 = dma.done [#allocation3], 2560
    $region17: #{tpu_custom_call.1} parent=1 // pred_fallthru
      _
    // Predicated region
    $region18: #{tpu_custom_call.1} parent=1 // pred_check
      _
    $region19: #{tpu_custom_call.1} parent=1 // pred_check_branch
      %41 = sbr.rel (0) target = $region21
    $region20: #{tpu_custom_call.1} parent=1 // pred_region
      %42 = dma.done [#allocation6], 896
    $region21: #{tpu_custom_call.1} parent=1 // pred_fallthru
      _
    %v44 = vld [vmem:[%s0] sm:$0xff]
    %v45 = vld [vmem:[%s0 + $0x8] sm:$0xff]
    %47 = vset.pattern.permute.xlu0 0
    %48 = vperm.xlu0 %47, %v44
    %v49 = vpop.permute.xlu0 %48
    %52 = vset.pattern.permute.xlu0 0
    %53 = vperm.xlu0 %52, %v45
    %v54 = vpop.permute.xlu0 %53
    %v56 = vld [vmem:[#allocation5] sm:$0xff]
    %v57 = vld [vmem:[#allocation5 + $0x8] sm:$0xff]
    %v58 = vld [vmem:[#allocation5 + $0x10] sm:$0xff]
    %v59 = vld [vmem:[#allocation5 + $0x18] sm:$0xff]
    %v60 = vld [vmem:[#allocation5 + $0x20] sm:$0xff]
    %v61 = vld [vmem:[#allocation5 + $0x28] sm:$0xff]
    %v62 = vld [vmem:[#allocation5 + $0x30] sm:$0xf]
    %v63 = vld [vmem:[#allocation2] sm:$0xf]
    %v64 = vld [vmem:[#allocation2 + $0x4] sm:$0xf]
    %v65 = vld [vmem:[#allocation2 + $0x8] sm:$0xf]
    %v66 = vld [vmem:[#allocation2 + $0xc] sm:$0xf]
    %v67 = vld [vmem:[#allocation2 + $0x10] sm:$0xf]
    %v68 = vld [vmem:[#allocation2 + $0x14] sm:$0xf]
    %v69 = vld [vmem:[#allocation2 + $0x18] sm:$0xf]
    %v70 = vld [vmem:[#allocation2 + $0x1c] sm:$0xf]
    %v71 = vld [vmem:[#allocation2 + $0x20] sm:$0xf]
    %v72 = vld [vmem:[#allocation2 + $0x24] sm:$0xf]
    %v73 = vld [vmem:[#allocation2 + $0x28] sm:$0xf]
    %v74 = vld [vmem:[#allocation2 + $0x2c] sm:$0xf]
    %v75 = vld [vmem:[#allocation2 + $0x30] sm:$0xf]
    %v76 = vld [vmem:[#allocation2 + $0x34] sm:$0xf]
    %v77 = vld [vmem:[#allocation2 + $0x38] sm:$0xf]
    %v78 = vld [vmem:[#allocation2 + $0x3c] sm:$0xf]
    %v79 = vld [vmem:[#allocation2 + $0x40] sm:$0xf]
    %v80 = vld [vmem:[#allocation2 + $0x44] sm:$0xf]
    %v81 = vld [vmem:[#allocation2 + $0x48] sm:$0xf]
    %v82 = vld [vmem:[#allocation2 + $0x4c] sm:$0xf]
    %v83 = vpack.c.bf16 %v54, %v49
    %v84 = vlaneseq
    %v85 = vshrl.u32 %v84, 7
    %v86 = vsub.s32 0, %v85
    %v87 = vrot.slane %v56, %v86
    %v92 = vunpack.c.l.b16 %v63
    %v93 = vunpack.c.l.b16 %v64
    %v94 = vunpack.c.l.b16 %v65
    %v95 = vunpack.c.l.b16 %v66
    %v96 = vpack.c.b16 %v93, %v92
    %v97 = vpack.c.b16 %v95, %v94
    %vm100 = vcmask 261120
    %v102 = vsel %vm100, %v83, 0
    %104 = vmatprep.subr.bf16.mxu0 0
    %105 = vmatpush1.bf16.msra.mxu0 %v96
    %106 = vmatprep.subr.bf16.mxu0 0
    %107 = vmatpush1.bf16.msra.mxu0 %v97
    %108 = vmatprep.subr.bf16.mxu0 0
    %109 = vmatpush1.bf16.msra.mxu0 0
    %110 = vmatprep.subr.bf16.mxu0 0
    %111 = vmatpush1.bf16.msra.mxu0 0
    %112 = vmatprep.subr.bf16.mxu0 0
    %113 = vmatpush1.bf16.msra.mxu0 0
    %114 = vmatprep.subr.bf16.mxu0 0
    %115 = vmatpush1.bf16.msra.mxu0 0
    %116 = vmatprep.subr.bf16.mxu0 0
    %117 = vmatpush1.bf16.msra.mxu0 0
    %118 = vmatprep.subr.bf16.mxu0 0
    %119 = vmatpush1.bf16.msra.mxu0 0
    %120 = vmatprep.subr.bf16.mxu0 0
    %121 = vmatpush1.bf16.msra.mxu0 0
    %122 = vmatprep.subr.bf16.mxu0 0
    %123 = vmatpush1.bf16.msra.mxu0 0
    %124 = vmatprep.subr.bf16.mxu0 0
    %125 = vmatpush1.bf16.msra.mxu0 0
    %126 = vmatprep.subr.bf16.mxu0 0
    %127 = vmatpush1.bf16.msra.mxu0 0
    %128 = vmatprep.subr.bf16.mxu0 0
    %129 = vmatpush1.bf16.msra.mxu0 0
    %130 = vmatprep.subr.bf16.mxu0 0
    %131 = vmatpush1.bf16.msra.mxu0 0
    %132 = vmatprep.subr.bf16.mxu0 0
    %133 = vmatpush1.bf16.msra.mxu0 0
    %134 = vmatprep.subr.bf16.mxu0 0
    %135 = vmatpush1.bf16.msra.mxu0 0
    %136 = vmatprep.mubr.bf16.mxu0 0
    %137 = vmatmul.mubr.bf16.gmra.mrb[0].mxu0 %v102
    %v138 = vpop.f32.mrb[0].mxu0
    %v139 = vadd.f32 %v87, %v138
    %v140 = vpop.f32.mrb[0].mxu0
    %v141 = vpop.f32.mrb[0].mxu0
    %v142 = vadd.f32 %v87, %v141
    %v143 = vpop.f32.mrb[0].mxu0
    %144 = vdwg.mxu0
    %146 = vrot.lane.b32.xlu0 %v139, 96
    %v147 = vpop.permute.xlu0 %146
    %v149 = vmul.f32 %v139, %v147
    %151 = vrot.lane.b32.xlu0 %v142, 96
    %v152 = vpop.permute.xlu0 %151
    %v154 = vmul.f32 %v139, %v152
    %v155 = vmul.f32 %v142, %v147
    %v156 = vmul.f32 %v142, %v152
    %v158 = vsel %vm100, %v149, 0
    %v161 = vsel %vm100, %v154, 0
    %v164 = vsel %vm100, %v155, 0
    %v167 = vsel %vm100, %v156, 0
    %169 = vmatprep.subr.mxu0 0.0
    %v170 = vand.u32 %v58, 4294901760
    %171 = vmatpush1.msra.mxu0 %v170
    %172 = vmatprep.subr.mxu0 0.0
    %v173 = vand.u32 %v59, 4294901760
    %174 = vmatpush1.msra.mxu0 %v173
    %175 = vmatprep.subr.mxu0 0.0
    %v176 = vand.u32 %v60, 4294901760
    %177 = vmatpush1.msra.mxu0 %v176
    %178 = vmatprep.subr.mxu0 0.0
    %v179 = vand.u32 %v61, 4294901760
    %180 = vmatpush1.msra.mxu0 %v179
    %181 = vmatprep.subr.mxu0 0.0
    %182 = vmatpush1.msra.mxu0 0.0
    %183 = vmatprep.subr.mxu0 0.0
    %184 = vmatpush1.msra.mxu0 0.0
    %185 = vmatprep.subr.mxu0 0.0
    %186 = vmatpush1.msra.mxu0 0.0
    %187 = vmatprep.subr.mxu0 0.0
    %188 = vmatpush1.msra.mxu0 0.0
    %189 = vmatprep.subr.mxu0 0.0
    %190 = vmatpush1.msra.mxu0 0.0
    %191 = vmatprep.subr.mxu0 0.0
    %192 = vmatpush1.msra.mxu0 0.0
    %193 = vmatprep.subr.mxu0 0.0
    %194 = vmatpush1.msra.mxu0 0.0
    %195 = vmatprep.subr.mxu0 0.0
    %196 = vmatpush1.msra.mxu0 0.0
    %197 = vmatprep.subr.mxu0 0.0
    %198 = vmatpush1.msra.mxu0 0.0
    %199 = vmatprep.subr.mxu0 0.0
    %200 = vmatpush1.msra.mxu0 0.0
    %201 = vmatprep.subr.mxu0 0.0
    %202 = vmatpush1.msra.mxu0 0.0
    %203 = vmatprep.subr.mxu0 0.0
    %204 = vmatpush1.msra.mxu0 0.0
    %205 = vmatprep.subr.mxu0 0.0
    %206 = vmatpush1.msra.mxu0 0.0
    %207 = vmatprep.subr.mxu0 0.0
    %208 = vmatpush1.msra.mxu0 0.0
    %209 = vmatprep.subr.mxu0 0.0
    %210 = vmatpush1.msra.mxu0 0.0
    %211 = vmatprep.subr.mxu0 0.0
    %212 = vmatpush1.msra.mxu0 0.0
    %213 = vmatprep.subr.mxu0 0.0
    %214 = vmatpush1.msra.mxu0 0.0
    %215 = vmatprep.subr.mxu0 0.0
    %216 = vmatpush1.msra.mxu0 0.0
    %217 = vmatprep.subr.mxu0 0.0
    %218 = vmatpush1.msra.mxu0 0.0
    %219 = vmatprep.subr.mxu0 0.0
    %220 = vmatpush1.msra.mxu0 0.0
    %221 = vmatprep.subr.mxu0 0.0
    %222 = vmatpush1.msra.mxu0 0.0
    %223 = vmatprep.subr.mxu0 0.0
    %224 = vmatpush1.msra.mxu0 0.0
    %225 = vmatprep.subr.mxu0 0.0
    %226 = vmatpush1.msra.mxu0 0.0
    %227 = vmatprep.subr.mxu0 0.0
    %228 = vmatpush1.msra.mxu0 0.0
    %229 = vmatprep.subr.mxu0 0.0
    %230 = vmatpush1.msra.mxu0 0.0
    %231 = vmatprep.subr.mxu0 0.0
    %232 = vmatpush1.msra.mxu0 0.0
    %233 = vmatprep.subr.mxu0 0.0
    %234 = vmatpush1.msra.mxu0 0.0
    %235 = vmatprep.subr.mxu0 0.0
    %236 = vmatpush1.msra.mxu0 0.0
    %237 = vmatprep.mubr.f32.mxu0 0.0
    %v238 = vand.u32 %v158, 4294901760
    %v239 = vsub.f32 %v158, %v238
    %v240 = vand.u32 %v239, 4294901760
    %v241 = vsub.f32 %v239, %v240
    %v242 = vand.u32 %v241, 4294901760
    %243 = vmatmul.mubr.f32.gmra.mrb[0].mxu0 %v242
    %v244 = vpop.f32.mrb[0].mxu0
    %v245 = vadd.f32 0.0, %v244
    %v246 = vpop.f32.mrb[0].mxu0
    %247 = vmatprep.mubr.f32.mxu0 0.0
    %v248 = vand.u32 %v161, 4294901760
    %v249 = vsub.f32 %v161, %v248
    %v250 = vand.u32 %v249, 4294901760
    %v251 = vsub.f32 %v249, %v250
    %v252 = vand.u32 %v251, 4294901760
    %253 = vmatmul.mubr.f32.gmra.mrb[0].mxu0 %v252
    %v254 = vpop.f32.mrb[0].mxu0
    %v255 = vadd.f32 0.0, %v254
    %v256 = vpop.f32.mrb[0].mxu0
    %257 = vmatprep.mubr.f32.mxu0 0.0
    %v258 = vand.u32 %v164, 4294901760
    %v259 = vsub.f32 %v164, %v258
    %v260 = vand.u32 %v259, 4294901760
    %v261 = vsub.f32 %v259, %v260
    %v262 = vand.u32 %v261, 4294901760
    %263 = vmatmul.mubr.f32.gmra.mrb[0].mxu0 %v262
    %v264 = vpop.f32.mrb[0].mxu0
    %v265 = vadd.f32 0.0, %v264
    %v266 = vpop.f32.mrb[0].mxu0
    %267 = vmatprep.mubr.f32.mxu0 0.0
    %v268 = vand.u32 %v167, 4294901760
    %v269 = vsub.f32 %v167, %v268
    %v270 = vand.u32 %v269, 4294901760
    %v271 = vsub.f32 %v269, %v270
    %v272 = vand.u32 %v271, 4294901760
    %273 = vmatmul.mubr.f32.gmra.mrb[0].mxu0 %v272
    %v274 = vpop.f32.mrb[0].mxu0
    %v275 = vadd.f32 0.0, %v274
    %v276 = vpop.f32.mrb[0].mxu0
    %277 = vdwg.mxu0
    %278 = vmatprep.subr.mxu0 0.0
    %v279 = vand.u32 %v58, 4294901760
    %v280 = vsub.f32 %v58, %v279
    %v281 = vand.u32 %v280, 4294901760
    %v282 = vsub.f32 %v280, %v281
    %v283 = vand.u32 %v282, 4294901760
    %284 = vmatpush1.msra.mxu0 %v283
    %285 = vmatprep.subr.mxu0 0.0
    %v286 = vand.u32 %v59, 4294901760
    %v287 = vsub.f32 %v59, %v286
    %v288 = vand.u32 %v287, 4294901760
    %v289 = vsub.f32 %v287, %v288
    %v290 = vand.u32 %v289, 4294901760
    %291 = vmatpush1.msra.mxu0 %v290
    %292 = vmatprep.subr.mxu0 0.0
    %v293 = vand.u32 %v60, 4294901760
    %v294 = vsub.f32 %v60, %v293
    %v295 = vand.u32 %v294, 4294901760
    %v296 = vsub.f32 %v294, %v295
    %v297 = vand.u32 %v296, 4294901760
    %298 = vmatpush1.msra.mxu0 %v297
    %299 = vmatprep.subr.mxu0 0.0
    %v300 = vand.u32 %v61, 4294901760
    %v301 = vsub.f32 %v61, %v300
    %v302 = vand.u32 %v301, 4294901760
    %v303 = vsub.f32 %v301, %v302
    %v304 = vand.u32 %v303, 4294901760
    %305 = vmatpush1.msra.mxu0 %v304
    %306 = vmatprep.subr.mxu0 0.0
    %307 = vmatpush1.msra.mxu0 0.0
    %308 = vmatprep.subr.mxu0 0.0
    %309 = vmatpush1.msra.mxu0 0.0
    %310 = vmatprep.subr.mxu0 0.0
    %311 = vmatpush1.msra.mxu0 0.0
    %312 = vmatprep.subr.mxu0 0.0
    %313 = vmatpush1.msra.mxu0 0.0
    %314 = vmatprep.subr.mxu0 0.0
    %315 = vmatpush1.msra.mxu0 0.0
    %316 = vmatprep.subr.mxu0 0.0
    %317 = vmatpush1.msra.mxu0 0.0
    %318 = vmatprep.subr.mxu0 0.0
    %319 = vmatpush1.msra.mxu0 0.0
    %320 = vmatprep.subr.mxu0 0.0
    %321 = vmatpush1.msra.mxu0 0.0
    %322 = vmatprep.subr.mxu0 0.0
    %323 = vmatpush1.msra.mxu0 0.0
    %324 = vmatprep.subr.mxu0 0.0
    %325 = vmatpush1.msra.mxu0 0.0
    %326 = vmatprep.subr.mxu0 0.0
    %327 = vmatpush1.msra.mxu0 0.0
    %328 = vmatprep.subr.mxu0 0.0
    %329 = vmatpush1.msra.mxu0 0.0
    %330 = vmatprep.subr.mxu0 0.0
    %331 = vmatpush1.msra.mxu0 0.0
    %332 = vmatprep.subr.mxu0 0.0
    %333 = vmatpush1.msra.mxu0 0.0
    %334 = vmatprep.subr.mxu0 0.0
    %335 = vmatpush1.msra.mxu0 0.0
    %336 = vmatprep.subr.mxu0 0.0
    %337 = vmatpush1.msra.mxu0 0.0
    %338 = vmatprep.subr.mxu0 0.0
    %339 = vmatpush1.msra.mxu0 0.0
    %340 = vmatprep.subr.mxu0 0.0
    %341 = vmatpush1.msra.mxu0 0.0
    %342 = vmatprep.subr.mxu0 0.0
    %343 = vmatpush1.msra.mxu0 0.0
    %344 = vmatprep.subr.mxu0 0.0
    %345 = vmatpush1.msra.mxu0 0.0
    %346 = vmatprep.subr.mxu0 0.0
    %347 = vmatpush1.msra.mxu0 0.0
    %348 = vmatprep.subr.mxu0 0.0
    %349 = vmatpush1.msra.mxu0 0.0
    %350 = vmatprep.subr.mxu0 0.0
    %351 = vmatpush1.msra.mxu0 0.0
    %352 = vmatprep.subr.mxu0 0.0
    %353 = vmatpush1.msra.mxu0 0.0
    %354 = vmatprep.subr.mxu0 0.0
    %355 = vmatpush1.msra.mxu0 0.0
    %356 = vmatprep.subr.mxu0 0.0
    %357 = vmatpush1.msra.mxu0 0.0
    %358 = vmatprep.subr.mxu0 0.0
    %359 = vmatpush1.msra.mxu0 0.0
    %360 = vmatprep.subr.mxu0 0.0
    %361 = vmatpush1.msra.mxu0 0.0
    %362 = vmatprep.mubr.f32.mxu0 0.0
    %v363 = vand.u32 %v158, 4294901760
    %364 = vmatmul.mubr.f32.gmra.mrb[0].mxu0 %v363
    %v365 = vpop.f32.mrb[0].mxu0
    %v366 = vadd.f32 %v245, %v365
    %v367 = vpop.f32.mrb[0].mxu0
    %368 = vmatprep.mubr.f32.mxu0 0.0
    %v369 = vand.u32 %v161, 4294901760
    %370 = vmatmul.mubr.f32.gmra.mrb[0].mxu0 %v369
    %v371 = vpop.f32.mrb[0].mxu0
    %v372 = vadd.f32 %v255, %v371
    %v373 = vpop.f32.mrb[0].mxu0
    %374 = vmatprep.mubr.f32.mxu0 0.0
    %v375 = vand.u32 %v164, 4294901760
    %376 = vmatmul.mubr.f32.gmra.mrb[0].mxu0 %v375
    %v377 = vpop.f32.mrb[0].mxu0
    %v378 = vadd.f32 %v265, %v377
    %v379 = vpop.f32.mrb[0].mxu0
    %380 = vmatprep.mubr.f32.mxu0 0.0
    %v381 = vand.u32 %v167, 4294901760
    %382 = vmatmul.mubr.f32.gmra.mrb[0].mxu0 %v381
    %v383 = vpop.f32.mrb[0].mxu0
    %v384 = vadd.f32 %v275, %v383
    %v385 = vpop.f32.mrb[0].mxu0
    %386 = vdwg.mxu0
    %387 = vmatprep.subr.mxu0 0.0
    %v388 = vand.u32 %v58, 4294901760
    %v389 = vsub.f32 %v58, %v388
    %390 = vmatpush1.msra.mxu0 %v389
    %391 = vmatprep.subr.mxu0 0.0
    %v392 = vand.u32 %v59, 4294901760
    %v393 = vsub.f32 %v59, %v392
    %394 = vmatpush1.msra.mxu0 %v393
    %395 = vmatprep.subr.mxu0 0.0
    %v396 = vand.u32 %v60, 4294901760
    %v397 = vsub.f32 %v60, %v396
    %398 = vmatpush1.msra.mxu0 %v397
    %399 = vmatprep.subr.mxu0 0.0
    %v400 = vand.u32 %v61, 4294901760
    %v401 = vsub.f32 %v61, %v400
    %402 = vmatpush1.msra.mxu0 %v401
    %403 = vmatprep.subr.mxu0 0.0
    %404 = vmatpush1.msra.mxu0 0.0
    %405 = vmatprep.subr.mxu0 0.0
    %406 = vmatpush1.msra.mxu0 0.0
    %407 = vmatprep.subr.mxu0 0.0
    %408 = vmatpush1.msra.mxu0 0.0
    %409 = vmatprep.subr.mxu0 0.0
    %410 = vmatpush1.msra.mxu0 0.0
    %411 = vmatprep.subr.mxu0 0.0
    %412 = vmatpush1.msra.mxu0 0.0
    %413 = vmatprep.subr.mxu0 0.0
    %414 = vmatpush1.msra.mxu0 0.0
    %415 = vmatprep.subr.mxu0 0.0
    %416 = vmatpush1.msra.mxu0 0.0
    %417 = vmatprep.subr.mxu0 0.0
    %418 = vmatpush1.msra.mxu0 0.0
    %419 = vmatprep.subr.mxu0 0.0
    %420 = vmatpush1.msra.mxu0 0.0
    %421 = vmatprep.subr.mxu0 0.0
    %422 = vmatpush1.msra.mxu0 0.0
    %423 = vmatprep.subr.mxu0 0.0
    %424 = vmatpush1.msra.mxu0 0.0
    %425 = vmatprep.subr.mxu0 0.0
    %426 = vmatpush1.msra.mxu0 0.0
    %427 = vmatprep.subr.mxu0 0.0
    %428 = vmatpush1.msra.mxu0 0.0
    %429 = vmatprep.subr.mxu0 0.0
    %430 = vmatpush1.msra.mxu0 0.0
    %431 = vmatprep.subr.mxu0 0.0
    %432 = vmatpush1.msra.mxu0 0.0
    %433 = vmatprep.subr.mxu0 0.0
    %434 = vmatpush1.msra.mxu0 0.0
    %435 = vmatprep.subr.mxu0 0.0
    %436 = vmatpush1.msra.mxu0 0.0
    %437 = vmatprep.subr.mxu0 0.0
    %438 = vmatpush1.msra.mxu0 0.0
    %439 = vmatprep.subr.mxu0 0.0
    %440 = vmatpush1.msra.mxu0 0.0
    %441 = vmatprep.subr.mxu0 0.0
    %442 = vmatpush1.msra.mxu0 0.0
    %443 = vmatprep.subr.mxu0 0.0
    %444 = vmatpush1.msra.mxu0 0.0
    %445 = vmatprep.subr.mxu0 0.0
    %446 = vmatpush1.msra.mxu0 0.0
    %447 = vmatprep.subr.mxu0 0.0
    %448 = vmatpush1.msra.mxu0 0.0
    %449 = vmatprep.subr.mxu0 0.0
    %450 = vmatpush1.msra.mxu0 0.0
    %451 = vmatprep.subr.mxu0 0.0
    %452 = vmatpush1.msra.mxu0 0.0
    %453 = vmatprep.subr.mxu0 0.0
    %454 = vmatpush1.msra.mxu0 0.0
    %455 = vmatprep.subr.mxu0 0.0
    %456 = vmatpush1.msra.mxu0 0.0
    %457 = vmatprep.subr.mxu0 0.0
    %458 = vmatpush1.msra.mxu0 0.0
    %459 = vmatprep.mubr.f32.mxu0 0.0
    %v460 = vand.u32 %v158, 4294901760
    %v461 = vsub.f32 %v158, %v460
    %462 = vmatmul.mubr.f32.gmra.mrb[0].mxu0 %v461
    %v463 = vpop.f32.mrb[0].mxu0
    %v464 = vadd.f32 %v366, %v463
    %v465 = vpop.f32.mrb[0].mxu0
    %466 = vmatprep.mubr.f32.mxu0 0.0
    %v467 = vand.u32 %v161, 4294901760
    %v468 = vsub.f32 %v161, %v467
    %469 = vmatmul.mubr.f32.gmra.mrb[0].mxu0 %v468
    %v470 = vpop.f32.mrb[0].mxu0
    %v471 = vadd.f32 %v372, %v470
    %v472 = vpop.f32.mrb[0].mxu0
    %473 = vmatprep.mubr.f32.mxu0 0.0
    %v474 = vand.u32 %v164, 4294901760
    %v475 = vsub.f32 %v164, %v474
    %476 = vmatmul.mubr.f32.gmra.mrb[0].mxu0 %v475
    %v477 = vpop.f32.mrb[0].mxu0
    %v478 = vadd.f32 %v378, %v477
    %v479 = vpop.f32.mrb[0].mxu0
    %480 = vmatprep.mubr.f32.mxu0 0.0
    %v481 = vand.u32 %v167, 4294901760
    %v482 = vsub.f32 %v167, %v481
    %483 = vmatmul.mubr.f32.gmra.mrb[0].mxu0 %v482
    %v484 = vpop.f32.mrb[0].mxu0
    %v485 = vadd.f32 %v384, %v484
    %v486 = vpop.f32.mrb[0].mxu0
    %487 = vdwg.mxu0
    %488 = vmatprep.subr.mxu0 0.0
    %v489 = vand.u32 %v58, 4294901760
    %490 = vmatpush1.msra.mxu0 %v489
    %491 = vmatprep.subr.mxu0 0.0
    %v492 = vand.u32 %v59, 4294901760
    %493 = vmatpush1.msra.mxu0 %v492
    %494 = vmatprep.subr.mxu0 0.0
    %v495 = vand.u32 %v60, 4294901760
    %496 = vmatpush1.msra.mxu0 %v495
    %497 = vmatprep.subr.mxu0 0.0
    %v498 = vand.u32 %v61, 4294901760
    %499 = vmatpush1.msra.mxu0 %v498
    %500 = vmatprep.subr.mxu0 0.0
    %501 = vmatpush1.msra.mxu0 0.0
    %502 = vmatprep.subr.mxu0 0.0
    %503 = vmatpush1.msra.mxu0 0.0
    %504 = vmatprep.subr.mxu0 0.0
    %505 = vmatpush1.msra.mxu0 0.0
    %506 = vmatprep.subr.mxu0 0.0
    %507 = vmatpush1.msra.mxu0 0.0
    %508 = vmatprep.subr.mxu0 0.0
    %509 = vmatpush1.msra.mxu0 0.0
    %510 = vmatprep.subr.mxu0 0.0
    %511 = vmatpush1.msra.mxu0 0.0
    %512 = vmatprep.subr.mxu0 0.0
    %513 = vmatpush1.msra.mxu0 0.0
    %514 = vmatprep.subr.mxu0 0.0
    %515 = vmatpush1.msra.mxu0 0.0
    %516 = vmatprep.subr.mxu0 0.0
    %517 = vmatpush1.msra.mxu0 0.0
    %518 = vmatprep.subr.mxu0 0.0
    %519 = vmatpush1.msra.mxu0 0.0
    %520 = vmatprep.subr.mxu0 0.0
    %521 = vmatpush1.msra.mxu0 0.0
    %522 = vmatprep.subr.mxu0 0.0
    %523 = vmatpush1.msra.mxu0 0.0
    %524 = vmatprep.subr.mxu0 0.0
    %525 = vmatpush1.msra.mxu0 0.0
    %526 = vmatprep.subr.mxu0 0.0
    %527 = vmatpush1.msra.mxu0 0.0
    %528 = vmatprep.subr.mxu0 0.0
    %529 = vmatpush1.msra.mxu0 0.0
    %530 = vmatprep.subr.mxu0 0.0
    %531 = vmatpush1.msra.mxu0 0.0
    %532 = vmatprep.subr.mxu0 0.0
    %533 = vmatpush1.msra.mxu0 0.0
    %534 = vmatprep.subr.mxu0 0.0
    %535 = vmatpush1.msra.mxu0 0.0
    %536 = vmatprep.subr.mxu0 0.0
    %537 = vmatpush1.msra.mxu0 0.0
    %538 = vmatprep.subr.mxu0 0.0
    %539 = vmatpush1.msra.mxu0 0.0
    %540 = vmatprep.subr.mxu0 0.0
    %541 = vmatpush1.msra.mxu0 0.0
    %542 = vmatprep.subr.mxu0 0.0
    %543 = vmatpush1.msra.mxu0 0.0
    %544 = vmatprep.subr.mxu0 0.0
    %545 = vmatpush1.msra.mxu0 0.0
    %546 = vmatprep.subr.mxu0 0.0
    %547 = vmatpush1.msra.mxu0 0.0
    %548 = vmatprep.subr.mxu0 0.0
    %549 = vmatpush1.msra.mxu0 0.0
    %550 = vmatprep.subr.mxu0 0.0
    %551 = vmatpush1.msra.mxu0 0.0
    %552 = vmatprep.subr.mxu0 0.0
    %553 = vmatpush1.msra.mxu0 0.0
    %554 = vmatprep.subr.mxu0 0.0
    %555 = vmatpush1.msra.mxu0 0.0
    %556 = vmatprep.mubr.f32.mxu0 0.0
    %v557 = vand.u32 %v158, 4294901760
    %v558 = vsub.f32 %v158, %v557
    %v559 = vand.u32 %v558, 4294901760
    %560 = vmatmul.mubr.f32.gmra.mrb[0].mxu0 %v559
    %v561 = vpop.f32.mrb[0].mxu0
    %v562 = vadd.f32 %v464, %v561
    %v563 = vpop.f32.mrb[0].mxu0
    %564 = vmatprep.mubr.f32.mxu0 0.0
    %v565 = vand.u32 %v161, 4294901760
    %v566 = vsub.f32 %v161, %v565
    %v567 = vand.u32 %v566, 4294901760
    %568 = vmatmul.mubr.f32.gmra.mrb[0].mxu0 %v567
    %v569 = vpop.f32.mrb[0].mxu0
    %v570 = vadd.f32 %v471, %v569
    %v571 = vpop.f32.mrb[0].mxu0
    %572 = vmatprep.mubr.f32.mxu0 0.0
    %v573 = vand.u32 %v164, 4294901760
    %v574 = vsub.f32 %v164, %v573
    %v575 = vand.u32 %v574, 4294901760
    %576 = vmatmul.mubr.f32.gmra.mrb[0].mxu0 %v575
    %v577 = vpop.f32.mrb[0].mxu0
    %v578 = vadd.f32 %v478, %v577
    %v579 = vpop.f32.mrb[0].mxu0
    %580 = vmatprep.mubr.f32.mxu0 0.0
    %v581 = vand.u32 %v167, 4294901760
    %v582 = vsub.f32 %v167, %v581
    %v583 = vand.u32 %v582, 4294901760
    %584 = vmatmul.mubr.f32.gmra.mrb[0].mxu0 %v583
    %v585 = vpop.f32.mrb[0].mxu0
    %v586 = vadd.f32 %v485, %v585
    %v587 = vpop.f32.mrb[0].mxu0
    %588 = vdwg.mxu0
    %589 = vmatprep.subr.mxu0 0.0
    %v590 = vand.u32 %v58, 4294901760
    %v591 = vsub.f32 %v58, %v590
    %v592 = vand.u32 %v591, 4294901760
    %593 = vmatpush1.msra.mxu0 %v592
    %594 = vmatprep.subr.mxu0 0.0
    %v595 = vand.u32 %v59, 4294901760
    %v596 = vsub.f32 %v59, %v595
    %v597 = vand.u32 %v596, 4294901760
    %598 = vmatpush1.msra.mxu0 %v597
    %599 = vmatprep.subr.mxu0 0.0
    %v600 = vand.u32 %v60, 4294901760
    %v601 = vsub.f32 %v60, %v600
    %v602 = vand.u32 %v601, 4294901760
    %603 = vmatpush1.msra.mxu0 %v602
    %604 = vmatprep.subr.mxu0 0.0
    %v605 = vand.u32 %v61, 4294901760
    %v606 = vsub.f32 %v61, %v605
    %v607 = vand.u32 %v606, 4294901760
    %608 = vmatpush1.msra.mxu0 %v607
    %609 = vmatprep.subr.mxu0 0.0
    %610 = vmatpush1.msra.mxu0 0.0
    %611 = vmatprep.subr.mxu0 0.0
    %612 = vmatpush1.msra.mxu0 0.0
    %613 = vmatprep.subr.mxu0 0.0
    %614 = vmatpush1.msra.mxu0 0.0
    %615 = vmatprep.subr.mxu0 0.0
    %616 = vmatpush1.msra.mxu0 0.0
    %617 = vmatprep.subr.mxu0 0.0
    %618 = vmatpush1.msra.mxu0 0.0
    %619 = vmatprep.subr.mxu0 0.0
    %620 = vmatpush1.msra.mxu0 0.0
    %621 = vmatprep.subr.mxu0 0.0
    %622 = vmatpush1.msra.mxu0 0.0
    %623 = vmatprep.subr.mxu0 0.0
    %624 = vmatpush1.msra.mxu0 0.0
    %625 = vmatprep.subr.mxu0 0.0
    %626 = vmatpush1.msra.mxu0 0.0
    %627 = vmatprep.subr.mxu0 0.0
    %628 = vmatpush1.msra.mxu0 0.0
    %629 = vmatprep.subr.mxu0 0.0
    %630 = vmatpush1.msra.mxu0 0.0
    %631 = vmatprep.subr.mxu0 0.0
    %632 = vmatpush1.msra.mxu0 0.0
    %633 = vmatprep.subr.mxu0 0.0
    %634 = vmatpush1.msra.mxu0 0.0
    %635 = vmatprep.subr.mxu0 0.0
    %636 = vmatpush1.msra.mxu0 0.0
    %637 = vmatprep.subr.mxu0 0.0
    %638 = vmatpush1.msra.mxu0 0.0
    %639 = vmatprep.subr.mxu0 0.0
    %640 = vmatpush1.msra.mxu0 0.0
    %641 = vmatprep.subr.mxu0 0.0
    %642 = vmatpush1.msra.mxu0 0.0
    %643 = vmatprep.subr.mxu0 0.0
    %644 = vmatpush1.msra.mxu0 0.0
    %645 = vmatprep.subr.mxu0 0.0
    %646 = vmatpush1.msra.mxu0 0.0
    %647 = vmatprep.subr.mxu0 0.0
    %648 = vmatpush1.msra.mxu0 0.0
    %649 = vmatprep.subr.mxu0 0.0
    %650 = vmatpush1.msra.mxu0 0.0
    %651 = vmatprep.subr.mxu0 0.0
    %652 = vmatpush1.msra.mxu0 0.0
    %653 = vmatprep.subr.mxu0 0.0
    %654 = vmatpush1.msra.mxu0 0.0
    %655 = vmatprep.subr.mxu0 0.0
    %656 = vmatpush1.msra.mxu0 0.0
    %657 = vmatprep.subr.mxu0 0.0
    %658 = vmatpush1.msra.mxu0 0.0
    %659 = vmatprep.subr.mxu0 0.0
    %660 = vmatpush1.msra.mxu0 0.0
    %661 = vmatprep.subr.mxu0 0.0
    %662 = vmatpush1.msra.mxu0 0.0
    %663 = vmatprep.subr.mxu0 0.0
    %664 = vmatpush1.msra.mxu0 0.0
    %665 = vmatprep.mubr.f32.mxu0 0.0
    %v666 = vand.u32 %v158, 4294901760
    %667 = vmatmul.mubr.f32.gmra.mrb[0].mxu0 %v666
    %v668 = vpop.f32.mrb[0].mxu0
    %v669 = vadd.f32 %v562, %v668
    %v670 = vpop.f32.mrb[0].mxu0
    %671 = vmatprep.mubr.f32.mxu0 0.0
    %v672 = vand.u32 %v161, 4294901760
    %673 = vmatmul.mubr.f32.gmra.mrb[0].mxu0 %v672
    %v674 = vpop.f32.mrb[0].mxu0
    %v675 = vadd.f32 %v570, %v674
    %v676 = vpop.f32.mrb[0].mxu0
    %677 = vmatprep.mubr.f32.mxu0 0.0
    %v678 = vand.u32 %v164, 4294901760
    %679 = vmatmul.mubr.f32.gmra.mrb[0].mxu0 %v678
    %v680 = vpop.f32.mrb[0].mxu0
    %v681 = vadd.f32 %v578, %v680
    %v682 = vpop.f32.mrb[0].mxu0
    %683 = vmatprep.mubr.f32.mxu0 0.0
    %v684 = vand.u32 %v167, 4294901760
    %685 = vmatmul.mubr.f32.gmra.mrb[0].mxu0 %v684
    %v686 = vpop.f32.mrb[0].mxu0
    %v687 = vadd.f32 %v586, %v686
    %v688 = vpop.f32.mrb[0].mxu0
    %689 = vdwg.mxu0
    %690 = vmatprep.subr.mxu0 0.0
    %v691 = vand.u32 %v58, 4294901760
    %692 = vmatpush1.msra.mxu0 %v691
    %693 = vmatprep.subr.mxu0 0.0
    %v694 = vand.u32 %v59, 4294901760
    %695 = vmatpush1.msra.mxu0 %v694
    %696 = vmatprep.subr.mxu0 0.0
    %v697 = vand.u32 %v60, 4294901760
    %698 = vmatpush1.msra.mxu0 %v697
    %699 = vmatprep.subr.mxu0 0.0
    %v700 = vand.u32 %v61, 4294901760
    %701 = vmatpush1.msra.mxu0 %v700
    %702 = vmatprep.subr.mxu0 0.0
    %703 = vmatpush1.msra.mxu0 0.0
    %704 = vmatprep.subr.mxu0 0.0
    %705 = vmatpush1.msra.mxu0 0.0
    %706 = vmatprep.subr.mxu0 0.0
    %707 = vmatpush1.msra.mxu0 0.0
    %708 = vmatprep.subr.mxu0 0.0
    %709 = vmatpush1.msra.mxu0 0.0
    %710 = vmatprep.subr.mxu0 0.0
    %711 = vmatpush1.msra.mxu0 0.0
    %712 = vmatprep.subr.mxu0 0.0
    %713 = vmatpush1.msra.mxu0 0.0
    %714 = vmatprep.subr.mxu0 0.0
    %715 = vmatpush1.msra.mxu0 0.0
    %716 = vmatprep.subr.mxu0 0.0
    %717 = vmatpush1.msra.mxu0 0.0
    %718 = vmatprep.subr.mxu0 0.0
    %719 = vmatpush1.msra.mxu0 0.0
    %720 = vmatprep.subr.mxu0 0.0
    %721 = vmatpush1.msra.mxu0 0.0
    %722 = vmatprep.subr.mxu0 0.0
    %723 = vmatpush1.msra.mxu0 0.0
    %724 = vmatprep.subr.mxu0 0.0
    %725 = vmatpush1.msra.mxu0 0.0
    %726 = vmatprep.subr.mxu0 0.0
    %727 = vmatpush1.msra.mxu0 0.0
    %728 = vmatprep.subr.mxu0 0.0
    %729 = vmatpush1.msra.mxu0 0.0
    %730 = vmatprep.subr.mxu0 0.0
    %731 = vmatpush1.msra.mxu0 0.0
    %732 = vmatprep.subr.mxu0 0.0
    %733 = vmatpush1.msra.mxu0 0.0
    %734 = vmatprep.subr.mxu0 0.0
    %735 = vmatpush1.msra.mxu0 0.0
    %736 = vmatprep.subr.mxu0 0.0
    %737 = vmatpush1.msra.mxu0 0.0
    %738 = vmatprep.subr.mxu0 0.0
    %739 = vmatpush1.msra.mxu0 0.0
    %740 = vmatprep.subr.mxu0 0.0
    %741 = vmatpush1.msra.mxu0 0.0
    %742 = vmatprep.subr.mxu0 0.0
    %743 = vmatpush1.msra.mxu0 0.0
    %744 = vmatprep.subr.mxu0 0.0
    %745 = vmatpush1.msra.mxu0 0.0
    %746 = vmatprep.subr.mxu0 0.0
    %747 = vmatpush1.msra.mxu0 0.0
    %748 = vmatprep.subr.mxu0 0.0
    %749 = vmatpush1.msra.mxu0 0.0
    %750 = vmatprep.subr.mxu0 0.0
    %751 = vmatpush1.msra.mxu0 0.0
    %752 = vmatprep.subr.mxu0 0.0
    %753 = vmatpush1.msra.mxu0 0.0
    %754 = vmatprep.subr.mxu0 0.0
    %755 = vmatpush1.msra.mxu0 0.0
    %756 = vmatprep.subr.mxu0 0.0
    %757 = vmatpush1.msra.mxu0 0.0
    %758 = vmatprep.mubr.f32.mxu0 0.0
    %v759 = vand.u32 %v158, 4294901760
    %760 = vmatmul.mubr.f32.gmra.mrb[0].mxu0 %v759
    %v761 = vpop.f32.mrb[0].mxu0
    %v762 = vadd.f32 %v669, %v761
    %v763 = vpop.f32.mrb[0].mxu0
    %764 = vmatprep.mubr.f32.mxu0 0.0
    %v765 = vand.u32 %v161, 4294901760
    %766 = vmatmul.mubr.f32.gmra.mrb[0].mxu0 %v765
    %v767 = vpop.f32.mrb[0].mxu0
    %v768 = vadd.f32 %v675, %v767
    %v769 = vpop.f32.mrb[0].mxu0
    %770 = vmatprep.mubr.f32.mxu0 0.0
    %v771 = vand.u32 %v164, 4294901760
    %772 = vmatmul.mubr.f32.gmra.mrb[0].mxu0 %v771
    %v773 = vpop.f32.mrb[0].mxu0
    %v774 = vadd.f32 %v681, %v773
    %v775 = vpop.f32.mrb[0].mxu0
    %776 = vmatprep.mubr.f32.mxu0 0.0
    %v777 = vand.u32 %v167, 4294901760
    %778 = vmatmul.mubr.f32.gmra.mrb[0].mxu0 %v777
    %v779 = vpop.f32.mrb[0].mxu0
    %v780 = vadd.f32 %v687, %v779
    %v781 = vpop.f32.mrb[0].mxu0
    %782 = vdwg.mxu0
    %v783 = vmul.f32 %v762, 0.35355338
    %v784 = vmul.f32 %v768, 0.35355338
    %v785 = vmul.f32 %v774, 0.35355338
    %v786 = vmul.f32 %v780, 0.35355338
    %v787 = vmax.f32 %v783, %v784
    %v788 = vsub.f32 %v783, %v787
    %v789 = vmul.f32 %v788, 1.442695
    %v790 = vpow.pop %v789
    %v791 = vsub.f32 %v784, %v787
    %v792 = vmul.f32 %v791, 1.442695
    %v793 = vpow.pop %v792
    %v794 = vadd.f32 %v790, %v793
    %v795 = vrcp.pop %v794
    %v796 = vmul.f32 1.0, %v795
    %v797 = vmul.f32 %v790, %v796
    %v798 = vmul.f32 %v793, %v796
    %v799 = vmax.f32 %v785, %v786
    %v800 = vsub.f32 %v785, %v799
    %v801 = vmul.f32 %v800, 1.442695
    %v802 = vpow.pop %v801
    %v803 = vsub.f32 %v786, %v799
    %v804 = vmul.f32 %v803, 1.442695
    %v805 = vpow.pop %v804
    %v806 = vadd.f32 %v802, %v805
    %v807 = vrcp.pop %v806
    %v808 = vmul.f32 1.0, %v807
    %v809 = vmul.f32 %v802, %v808
    %v810 = vmul.f32 %v805, %v808
    %vm811 = vcmask 31744
    %v813 = vsel %vm811, %v797, 0
    %v816 = vsel %vm811, %v798, 0
    %v819 = vsel %vm811, %v809, 0
    %v822 = vsel %vm811, %v810, 0
    %vm824 = vcmask 1043456
    %v826 = vsel %vm824, %v62, 0
    %828 = vmatprep.subr.mxu0 0.0
    %v829 = vand.u32 %v826, 4294901760
    %830 = vmatpush1.msra.mxu0 %v829
    %831 = vmatprep.subr.mxu0 0.0
    %832 = vmatpush1.msra.mxu0 0.0
    %833 = vmatprep.subr.mxu0 0.0
    %834 = vmatpush1.msra.mxu0 0.0
    %835 = vmatprep.subr.mxu0 0.0
    %836 = vmatpush1.msra.mxu0 0.0
    %837 = vmatprep.subr.mxu0 0.0
    %838 = vmatpush1.msra.mxu0 0.0
    %839 = vmatprep.subr.mxu0 0.0
    %840 = vmatpush1.msra.mxu0 0.0
    %841 = vmatprep.subr.mxu0 0.0
    %842 = vmatpush1.msra.mxu0 0.0
    %843 = vmatprep.subr.mxu0 0.0
    %844 = vmatpush1.msra.mxu0 0.0
    %845 = vmatprep.subr.mxu0 0.0
    %846 = vmatpush1.msra.mxu0 0.0
    %847 = vmatprep.subr.mxu0 0.0
    %848 = vmatpush1.msra.mxu0 0.0
    %849 = vmatprep.subr.mxu0 0.0
    %850 = vmatpush1.msra.mxu0 0.0
    %851 = vmatprep.subr.mxu0 0.0
    %852 = vmatpush1.msra.mxu0 0.0
    %853 = vmatprep.subr.mxu0 0.0
    %854 = vmatpush1.msra.mxu0 0.0
    %855 = vmatprep.subr.mxu0 0.0
    %856 = vmatpush1.msra.mxu0 0.0
    %857 = vmatprep.subr.mxu0 0.0
    %858 = vmatpush1.msra.mxu0 0.0
    %859 = vmatprep.subr.mxu0 0.0
    %860 = vmatpush1.msra.mxu0 0.0
    %861 = vmatprep.subr.mxu0 0.0
    %862 = vmatpush1.msra.mxu0 0.0
    %863 = vmatprep.subr.mxu0 0.0
    %864 = vmatpush1.msra.mxu0 0.0
    %865 = vmatprep.subr.mxu0 0.0
    %866 = vmatpush1.msra.mxu0 0.0
    %867 = vmatprep.subr.mxu0 0.0
    %868 = vmatpush1.msra.mxu0 0.0
    %869 = vmatprep.subr.mxu0 0.0
    %870 = vmatpush1.msra.mxu0 0.0
    %871 = vmatprep.subr.mxu0 0.0
    %872 = vmatpush1.msra.mxu0 0.0
    %873 = vmatprep.subr.mxu0 0.0
    %874 = vmatpush1.msra.mxu0 0.0
    %875 = vmatprep.subr.mxu0 0.0
    %876 = vmatpush1.msra.mxu0 0.0
    %877 = vmatprep.subr.mxu0 0.0
    %878 = vmatpush1.msra.mxu0 0.0
    %879 = vmatprep.subr.mxu0 0.0
    %880 = vmatpush1.msra.mxu0 0.0
    %881 = vmatprep.subr.mxu0 0.0
    %882 = vmatpush1.msra.mxu0 0.0
    %883 = vmatprep.subr.mxu0 0.0
    %884 = vmatpush1.msra.mxu0 0.0
    %885 = vmatprep.subr.mxu0 0.0
    %886 = vmatpush1.msra.mxu0 0.0
    %887 = vmatprep.subr.mxu0 0.0
    %888 = vmatpush1.msra.mxu0 0.0
    %889 = vmatprep.subr.mxu0 0.0
    %890 = vmatpush1.msra.mxu0 0.0
    %891 = vmatprep.subr.mxu0 0.0
    %892 = vmatpush1.msra.mxu0 0.0
    %893 = vmatprep.mubr.f32.mxu0 0.0
    %v894 = vand.u32 %v813, 4294901760
    %v895 = vsub.f32 %v813, %v894
    %v896 = vand.u32 %v895, 4294901760
    %v897 = vsub.f32 %v895, %v896
    %v898 = vand.u32 %v897, 4294901760
    %899 = vmatmul.mubr.f32.gmra.mrb[0].mxu0 %v898
    %v900 = vpop.f32.mrb[0].mxu0
    %v901 = vadd.f32 0.0, %v900
    %v902 = vpop.f32.mrb[0].mxu0
    %903 = vmatprep.mubr.f32.mxu0 0.0
    %v904 = vand.u32 %v816, 4294901760
    %v905 = vsub.f32 %v816, %v904
    %v906 = vand.u32 %v905, 4294901760
    %v907 = vsub.f32 %v905, %v906
    %v908 = vand.u32 %v907, 4294901760
    %909 = vmatmul.mubr.f32.gmra.mrb[0].mxu0 %v908
    %v910 = vpop.f32.mrb[0].mxu0
    %v911 = vadd.f32 0.0, %v910
    %v912 = vpop.f32.mrb[0].mxu0
    %913 = vmatprep.mubr.f32.mxu0 0.0
    %v914 = vand.u32 %v819, 4294901760
    %v915 = vsub.f32 %v819, %v914
    %v916 = vand.u32 %v915, 4294901760
    %v917 = vsub.f32 %v915, %v916
    %v918 = vand.u32 %v917, 4294901760
    %919 = vmatmul.mubr.f32.gmra.mrb[0].mxu0 %v918
    %v920 = vpop.f32.mrb[0].mxu0
    %v921 = vadd.f32 0.0, %v920
    %v922 = vpop.f32.mrb[0].mxu0
    %923 = vmatprep.mubr.f32.mxu0 0.0
    %v924 = vand.u32 %v822, 4294901760
    %v925 = vsub.f32 %v822, %v924
    %v926 = vand.u32 %v925, 4294901760
    %v927 = vsub.f32 %v925, %v926
    %v928 = vand.u32 %v927, 4294901760
    %929 = vmatmul.mubr.f32.gmra.mrb[0].mxu0 %v928
    %v930 = vpop.f32.mrb[0].mxu0
    %v931 = vadd.f32 0.0, %v930
    %v932 = vpop.f32.mrb[0].mxu0
    %933 = vdwg.mxu0
    %934 = vmatprep.subr.mxu0 0.0
    %v935 = vand.u32 %v826, 4294901760
    %v936 = vsub.f32 %v826, %v935
    %v937 = vand.u32 %v936, 4294901760
    %v938 = vsub.f32 %v936, %v937
    %v939 = vand.u32 %v938, 4294901760
    %940 = vmatpush1.msra.mxu0 %v939
    %941 = vmatprep.subr.mxu0 0.0
    %942 = vmatpush1.msra.mxu0 0.0
    %943 = vmatprep.subr.mxu0 0.0
    %944 = vmatpush1.msra.mxu0 0.0
    %945 = vmatprep.subr.mxu0 0.0
    %946 = vmatpush1.msra.mxu0 0.0
    %947 = vmatprep.subr.mxu0 0.0
    %948 = vmatpush1.msra.mxu0 0.0
    %949 = vmatprep.subr.mxu0 0.0
    %950 = vmatpush1.msra.mxu0 0.0
    %951 = vmatprep.subr.mxu0 0.0
    %952 = vmatpush1.msra.mxu0 0.0
    %953 = vmatprep.subr.mxu0 0.0
    %954 = vmatpush1.msra.mxu0 0.0
    %955 = vmatprep.subr.mxu0 0.0
    %956 = vmatpush1.msra.mxu0 0.0
    %957 = vmatprep.subr.mxu0 0.0
    %958 = vmatpush1.msra.mxu0 0.0
    %959 = vmatprep.subr.mxu0 0.0
    %960 = vmatpush1.msra.mxu0 0.0
    %961 = vmatprep.subr.mxu0 0.0
    %962 = vmatpush1.msra.mxu0 0.0
    %963 = vmatprep.subr.mxu0 0.0
    %964 = vmatpush1.msra.mxu0 0.0
    %965 = vmatprep.subr.mxu0 0.0
    %966 = vmatpush1.msra.mxu0 0.0
    %967 = vmatprep.subr.mxu0 0.0
    %968 = vmatpush1.msra.mxu0 0.0
    %969 = vmatprep.subr.mxu0 0.0
    %970 = vmatpush1.msra.mxu0 0.0
    %971 = vmatprep.subr.mxu0 0.0
    %972 = vmatpush1.msra.mxu0 0.0
    %973 = vmatprep.subr.mxu0 0.0
    %974 = vmatpush1.msra.mxu0 0.0
    %975 = vmatprep.subr.mxu0 0.0
    %976 = vmatpush1.msra.mxu0 0.0
    %977 = vmatprep.subr.mxu0 0.0
    %978 = vmatpush1.msra.mxu0 0.0
    %979 = vmatprep.subr.mxu0 0.0
    %980 = vmatpush1.msra.mxu0 0.0
    %981 = vmatprep.subr.mxu0 0.0
    %982 = vmatpush1.msra.mxu0 0.0
    %983 = vmatprep.subr.mxu0 0.0
    %984 = vmatpush1.msra.mxu0 0.0
    %985 = vmatprep.subr.mxu0 0.0
    %986 = vmatpush1.msra.mxu0 0.0
    %987 = vmatprep.subr.mxu0 0.0
    %988 = vmatpush1.msra.mxu0 0.0
    %989 = vmatprep.subr.mxu0 0.0
    %990 = vmatpush1.msra.mxu0 0.0
    %991 = vmatprep.subr.mxu0 0.0
    %992 = vmatpush1.msra.mxu0 0.0
    %993 = vmatprep.subr.mxu0 0.0
    %994 = vmatpush1.msra.mxu0 0.0
    %995 = vmatprep.subr.mxu0 0.0
    %996 = vmatpush1.msra.mxu0 0.0
    %997 = vmatprep.subr.mxu0 0.0
    %998 = vmatpush1.msra.mxu0 0.0
    %999 = vmatprep.subr.mxu0 0.0
    %1000 = vmatpush1.msra.mxu0 0.0
    %1001 = vmatprep.subr.mxu0 0.0
    %1002 = vmatpush1.msra.mxu0 0.0
    %1003 = vmatprep.mubr.f32.mxu0 0.0
    %v1004 = vand.u32 %v813, 4294901760
    %1005 = vmatmul.mubr.f32.gmra.mrb[0].mxu0 %v1004
    %v1006 = vpop.f32.mrb[0].mxu0
    %v1007 = vadd.f32 %v901, %v1006
    %v1008 = vpop.f32.mrb[0].mxu0
    %1009 = vmatprep.mubr.f32.mxu0 0.0
    %v1010 = vand.u32 %v816, 4294901760
    %1011 = vmatmul.mubr.f32.gmra.mrb[0].mxu0 %v1010
    %v1012 = vpop.f32.mrb[0].mxu0
    %v1013 = vadd.f32 %v911, %v1012
    %v1014 = vpop.f32.mrb[0].mxu0
    %1015 = vmatprep.mubr.f32.mxu0 0.0
    %v1016 = vand.u32 %v819, 4294901760
    %1017 = vmatmul.mubr.f32.gmra.mrb[0].mxu0 %v1016
    %v1018 = vpop.f32.mrb[0].mxu0
    %v1019 = vadd.f32 %v921, %v1018
    %v1020 = vpop.f32.mrb[0].mxu0
    %1021 = vmatprep.mubr.f32.mxu0 0.0
    %v1022 = vand.u32 %v822, 4294901760
    %1023 = vmatmul.mubr.f32.gmra.mrb[0].mxu0 %v1022
    %v1024 = vpop.f32.mrb[0].mxu0
    %v1025 = vadd.f32 %v931, %v1024
    %v1026 = vpop.f32.mrb[0].mxu0
    %1027 = vdwg.mxu0
    %1028 = vmatprep.subr.mxu0 0.0
    %v1029 = vand.u32 %v826, 4294901760
    %v1030 = vsub.f32 %v826, %v1029
    %1031 = vmatpush1.msra.mxu0 %v1030
    %1032 = vmatprep.subr.mxu0 0.0
    %1033 = vmatpush1.msra.mxu0 0.0
    %1034 = vmatprep.subr.mxu0 0.0
    %1035 = vmatpush1.msra.mxu0 0.0
    %1036 = vmatprep.subr.mxu0 0.0
    %1037 = vmatpush1.msra.mxu0 0.0
    %1038 = vmatprep.subr.mxu0 0.0
    %1039 = vmatpush1.msra.mxu0 0.0
    %1040 = vmatprep.subr.mxu0 0.0
    %1041 = vmatpush1.msra.mxu0 0.0
    %1042 = vmatprep.subr.mxu0 0.0
    %1043 = vmatpush1.msra.mxu0 0.0
    %1044 = vmatprep.subr.mxu0 0.0
    %1045 = vmatpush1.msra.mxu0 0.0
    %1046 = vmatprep.subr.mxu0 0.0
    %1047 = vmatpush1.msra.mxu0 0.0
    %1048 = vmatprep.subr.mxu0 0.0
    %1049 = vmatpush1.msra.mxu0 0.0
    %1050 = vmatprep.subr.mxu0 0.0
    %1051 = vmatpush1.msra.mxu0 0.0
    %1052 = vmatprep.subr.mxu0 0.0
    %1053 = vmatpush1.msra.mxu0 0.0
    %1054 = vmatprep.subr.mxu0 0.0
    %1055 = vmatpush1.msra.mxu0 0.0
    %1056 = vmatprep.subr.mxu0 0.0
    %1057 = vmatpush1.msra.mxu0 0.0
    %1058 = vmatprep.subr.mxu0 0.0
    %1059 = vmatpush1.msra.mxu0 0.0
    %1060 = vmatprep.subr.mxu0 0.0
    %1061 = vmatpush1.msra.mxu0 0.0
    %1062 = vmatprep.subr.mxu0 0.0
    %1063 = vmatpush1.msra.mxu0 0.0
    %1064 = vmatprep.subr.mxu0 0.0
    %1065 = vmatpush1.msra.mxu0 0.0
    %1066 = vmatprep.subr.mxu0 0.0
    %1067 = vmatpush1.msra.mxu0 0.0
    %1068 = vmatprep.subr.mxu0 0.0
    %1069 = vmatpush1.msra.mxu0 0.0
    %1070 = vmatprep.subr.mxu0 0.0
    %1071 = vmatpush1.msra.mxu0 0.0
    %1072 = vmatprep.subr.mxu0 0.0
    %1073 = vmatpush1.msra.mxu0 0.0
    %1074 = vmatprep.subr.mxu0 0.0
    %1075 = vmatpush1.msra.mxu0 0.0
    %1076 = vmatprep.subr.mxu0 0.0
    %1077 = vmatpush1.msra.mxu0 0.0
    %1078 = vmatprep.subr.mxu0 0.0
    %1079 = vmatpush1.msra.mxu0 0.0
    %1080 = vmatprep.subr.mxu0 0.0
    %1081 = vmatpush1.msra.mxu0 0.0
    %1082 = vmatprep.subr.mxu0 0.0
    %1083 = vmatpush1.msra.mxu0 0.0
    %1084 = vmatprep.subr.mxu0 0.0
    %1085 = vmatpush1.msra.mxu0 0.0
    %1086 = vmatprep.subr.mxu0 0.0
    %1087 = vmatpush1.msra.mxu0 0.0
    %1088 = vmatprep.subr.mxu0 0.0
    %1089 = vmatpush1.msra.mxu0 0.0
    %1090 = vmatprep.subr.mxu0 0.0
    %1091 = vmatpush1.msra.mxu0 0.0
    %1092 = vmatprep.subr.mxu0 0.0
    %1093 = vmatpush1.msra.mxu0 0.0
    %1094 = vmatprep.mubr.f32.mxu0 0.0
    %v1095 = vand.u32 %v813, 4294901760
    %v1096 = vsub.f32 %v813, %v1095
    %1097 = vmatmul.mubr.f32.gmra.mrb[0].mxu0 %v1096
    %v1098 = vpop.f32.mrb[0].mxu0
    %v1099 = vadd.f32 %v1007, %v1098
    %v1100 = vpop.f32.mrb[0].mxu0
    %1101 = vmatprep.mubr.f32.mxu0 0.0
    %v1102 = vand.u32 %v816, 4294901760
    %v1103 = vsub.f32 %v816, %v1102
    %1104 = vmatmul.mubr.f32.gmra.mrb[0].mxu0 %v1103
    %v1105 = vpop.f32.mrb[0].mxu0
    %v1106 = vadd.f32 %v1013, %v1105
    %v1107 = vpop.f32.mrb[0].mxu0
    %1108 = vmatprep.mubr.f32.mxu0 0.0
    %v1109 = vand.u32 %v819, 4294901760
    %v1110 = vsub.f32 %v819, %v1109
    %1111 = vmatmul.mubr.f32.gmra.mrb[0].mxu0 %v1110
    %v1112 = vpop.f32.mrb[0].mxu0
    %v1113 = vadd.f32 %v1019, %v1112
    %v1114 = vpop.f32.mrb[0].mxu0
    %1115 = vmatprep.mubr.f32.mxu0 0.0
    %v1116 = vand.u32 %v822, 4294901760
    %v1117 = vsub.f32 %v822, %v1116
    %1118 = vmatmul.mubr.f32.gmra.mrb[0].mxu0 %v1117
    %v1119 = vpop.f32.mrb[0].mxu0
    %v1120 = vadd.f32 %v1025, %v1119
    %v1121 = vpop.f32.mrb[0].mxu0
    %1122 = vdwg.mxu0
    %1123 = vmatprep.subr.mxu0 0.0
    %v1124 = vand.u32 %v826, 4294901760
    %1125 = vmatpush1.msra.mxu0 %v1124
    %1126 = vmatprep.subr.mxu0 0.0
    %1127 = vmatpush1.msra.mxu0 0.0
    %1128 = vmatprep.subr.mxu0 0.0
    %1129 = vmatpush1.msra.mxu0 0.0
    %1130 = vmatprep.subr.mxu0 0.0
    %1131 = vmatpush1.msra.mxu0 0.0
    %1132 = vmatprep.subr.mxu0 0.0
    %1133 = vmatpush1.msra.mxu0 0.0
    %1134 = vmatprep.subr.mxu0 0.0
    %1135 = vmatpush1.msra.mxu0 0.0
    %1136 = vmatprep.subr.mxu0 0.0
    %1137 = vmatpush1.msra.mxu0 0.0
    %1138 = vmatprep.subr.mxu0 0.0
    %1139 = vmatpush1.msra.mxu0 0.0
    %1140 = vmatprep.subr.mxu0 0.0
    %1141 = vmatpush1.msra.mxu0 0.0
    %1142 = vmatprep.subr.mxu0 0.0
    %1143 = vmatpush1.msra.mxu0 0.0
    %1144 = vmatprep.subr.mxu0 0.0
    %1145 = vmatpush1.msra.mxu0 0.0
    %1146 = vmatprep.subr.mxu0 0.0
    %1147 = vmatpush1.msra.mxu0 0.0
    %1148 = vmatprep.subr.mxu0 0.0
    %1149 = vmatpush1.msra.mxu0 0.0
    %1150 = vmatprep.subr.mxu0 0.0
    %1151 = vmatpush1.msra.mxu0 0.0
    %1152 = vmatprep.subr.mxu0 0.0
    %1153 = vmatpush1.msra.mxu0 0.0
    %1154 = vmatprep.subr.mxu0 0.0
    %1155 = vmatpush1.msra.mxu0 0.0
    %1156 = vmatprep.subr.mxu0 0.0
    %1157 = vmatpush1.msra.mxu0 0.0
    %1158 = vmatprep.subr.mxu0 0.0
    %1159 = vmatpush1.msra.mxu0 0.0
    %1160 = vmatprep.subr.mxu0 0.0
    %1161 = vmatpush1.msra.mxu0 0.0
    %1162 = vmatprep.subr.mxu0 0.0
    %1163 = vmatpush1.msra.mxu0 0.0
    %1164 = vmatprep.subr.mxu0 0.0
    %1165 = vmatpush1.msra.mxu0 0.0
    %1166 = vmatprep.subr.mxu0 0.0
    %1167 = vmatpush1.msra.mxu0 0.0
    %1168 = vmatprep.subr.mxu0 0.0
    %1169 = vmatpush1.msra.mxu0 0.0
    %1170 = vmatprep.subr.mxu0 0.0
    %1171 = vmatpush1.msra.mxu0 0.0
    %1172 = vmatprep.subr.mxu0 0.0
    %1173 = vmatpush1.msra.mxu0 0.0
    %1174 = vmatprep.subr.mxu0 0.0
    %1175 = vmatpush1.msra.mxu0 0.0
    %1176 = vmatprep.subr.mxu0 0.0
    %1177 = vmatpush1.msra.mxu0 0.0
    %1178 = vmatprep.subr.mxu0 0.0
    %1179 = vmatpush1.msra.mxu0 0.0
    %1180 = vmatprep.subr.mxu0 0.0
    %1181 = vmatpush1.msra.mxu0 0.0
    %1182 = vmatprep.subr.mxu0 0.0
    %1183 = vmatpush1.msra.mxu0 0.0
    %1184 = vmatprep.subr.mxu0 0.0
    %1185 = vmatpush1.msra.mxu0 0.0
    %1186 = vmatprep.subr.mxu0 0.0
    %1187 = vmatpush1.msra.mxu0 0.0
    %1188 = vmatprep.mubr.f32.mxu0 0.0
    %v1189 = vand.u32 %v813, 4294901760
    %v1190 = vsub.f32 %v813, %v1189
    %v1191 = vand.u32 %v1190, 4294901760
    %1192 = vmatmul.mubr.f32.gmra.mrb[0].mxu0 %v1191
    %v1193 = vpop.f32.mrb[0].mxu0
    %v1194 = vadd.f32 %v1099, %v1193
    %v1195 = vpop.f32.mrb[0].mxu0
    %1196 = vmatprep.mubr.f32.mxu0 0.0
    %v1197 = vand.u32 %v816, 4294901760
    %v1198 = vsub.f32 %v816, %v1197
    %v1199 = vand.u32 %v1198, 4294901760
    %1200 = vmatmul.mubr.f32.gmra.mrb[0].mxu0 %v1199
    %v1201 = vpop.f32.mrb[0].mxu0
    %v1202 = vadd.f32 %v1106, %v1201
    %v1203 = vpop.f32.mrb[0].mxu0
    %1204 = vmatprep.mubr.f32.mxu0 0.0
    %v1205 = vand.u32 %v819, 4294901760
    %v1206 = vsub.f32 %v819, %v1205
    %v1207 = vand.u32 %v1206, 4294901760
    %1208 = vmatmul.mubr.f32.gmra.mrb[0].mxu0 %v1207
    %v1209 = vpop.f32.mrb[0].mxu0
    %v1210 = vadd.f32 %v1113, %v1209
    %v1211 = vpop.f32.mrb[0].mxu0
    %1212 = vmatprep.mubr.f32.mxu0 0.0
    %v1213 = vand.u32 %v822, 4294901760
    %v1214 = vsub.f32 %v822, %v1213
    %v1215 = vand.u32 %v1214, 4294901760
    %1216 = vmatmul.mubr.f32.gmra.mrb[0].mxu0 %v1215
    %v1217 = vpop.f32.mrb[0].mxu0
    %v1218 = vadd.f32 %v1120, %v1217
    %v1219 = vpop.f32.mrb[0].mxu0
    %1220 = vdwg.mxu0
    %1221 = vmatprep.subr.mxu0 0.0
    %v1222 = vand.u32 %v826, 4294901760
    %v1223 = vsub.f32 %v826, %v1222
    %v1224 = vand.u32 %v1223, 4294901760
    %1225 = vmatpush1.msra.mxu0 %v1224
    %1226 = vmatprep.subr.mxu0 0.0
    %1227 = vmatpush1.msra.mxu0 0.0
    %1228 = vmatprep.subr.mxu0 0.0
    %1229 = vmatpush1.msra.mxu0 0.0
    %1230 = vmatprep.subr.mxu0 0.0
    %1231 = vmatpush1.msra.mxu0 0.0
    %1232 = vmatprep.subr.mxu0 0.0
    %1233 = vmatpush1.msra.mxu0 0.0
    %1234 = vmatprep.subr.mxu0 0.0
    %1235 = vmatpush1.msra.mxu0 0.0
    %1236 = vmatprep.subr.mxu0 0.0
    %1237 = vmatpush1.msra.mxu0 0.0
    %1238 = vmatprep.subr.mxu0 0.0
    %1239 = vmatpush1.msra.mxu0 0.0
    %1240 = vmatprep.subr.mxu0 0.0
    %1241 = vmatpush1.msra.mxu0 0.0
    %1242 = vmatprep.subr.mxu0 0.0
    %1243 = vmatpush1.msra.mxu0 0.0
    %1244 = vmatprep.subr.mxu0 0.0
    %1245 = vmatpush1.msra.mxu0 0.0
    %1246 = vmatprep.subr.mxu0 0.0
    %1247 = vmatpush1.msra.mxu0 0.0
    %1248 = vmatprep.subr.mxu0 0.0
    %1249 = vmatpush1.msra.mxu0 0.0
    %1250 = vmatprep.subr.mxu0 0.0
    %1251 = vmatpush1.msra.mxu0 0.0
    %1252 = vmatprep.subr.mxu0 0.0
    %1253 = vmatpush1.msra.mxu0 0.0
    %1254 = vmatprep.subr.mxu0 0.0
    %1255 = vmatpush1.msra.mxu0 0.0
    %1256 = vmatprep.subr.mxu0 0.0
    %1257 = vmatpush1.msra.mxu0 0.0
    %1258 = vmatprep.subr.mxu0 0.0
    %1259 = vmatpush1.msra.mxu0 0.0
    %1260 = vmatprep.subr.mxu0 0.0
    %1261 = vmatpush1.msra.mxu0 0.0
    %1262 = vmatprep.subr.mxu0 0.0
    %1263 = vmatpush1.msra.mxu0 0.0
    %1264 = vmatprep.subr.mxu0 0.0
    %1265 = vmatpush1.msra.mxu0 0.0
    %1266 = vmatprep.subr.mxu0 0.0
    %1267 = vmatpush1.msra.mxu0 0.0
    %1268 = vmatprep.subr.mxu0 0.0
    %1269 = vmatpush1.msra.mxu0 0.0
    %1270 = vmatprep.subr.mxu0 0.0
    %1271 = vmatpush1.msra.mxu0 0.0
    %1272 = vmatprep.subr.mxu0 0.0
    %1273 = vmatpush1.msra.mxu0 0.0
    %1274 = vmatprep.subr.mxu0 0.0
    %1275 = vmatpush1.msra.mxu0 0.0
    %1276 = vmatprep.subr.mxu0 0.0
    %1277 = vmatpush1.msra.mxu0 0.0
    %1278 = vmatprep.subr.mxu0 0.0
    %1279 = vmatpush1.msra.mxu0 0.0
    %1280 = vmatprep.subr.mxu0 0.0
    %1281 = vmatpush1.msra.mxu0 0.0
    %1282 = vmatprep.subr.mxu0 0.0
    %1283 = vmatpush1.msra.mxu0 0.0
    %1284 = vmatprep.subr.mxu0 0.0
    %1285 = vmatpush1.msra.mxu0 0.0
    %1286 = vmatprep.subr.mxu0 0.0
    %1287 = vmatpush1.msra.mxu0 0.0
    %1288 = vmatprep.mubr.f32.mxu0 0.0
    %v1289 = vand.u32 %v813, 4294901760
    %1290 = vmatmul.mubr.f32.gmra.mrb[0].mxu0 %v1289
    %v1291 = vpop.f32.mrb[0].mxu0
    %v1292 = vadd.f32 %v1194, %v1291
    %v1293 = vpop.f32.mrb[0].mxu0
    %1294 = vmatprep.mubr.f32.mxu0 0.0
    %v1295 = vand.u32 %v816, 4294901760
    %1296 = vmatmul.mubr.f32.gmra.mrb[0].mxu0 %v1295
    %v1297 = vpop.f32.mrb[0].mxu0
    %v1298 = vadd.f32 %v1202, %v1297
    %v1299 = vpop.f32.mrb[0].mxu0
    %1300 = vmatprep.mubr.f32.mxu0 0.0
    %v1301 = vand.u32 %v819, 4294901760
    %1302 = vmatmul.mubr.f32.gmra.mrb[0].mxu0 %v1301
    %v1303 = vpop.f32.mrb[0].mxu0
    %v1304 = vadd.f32 %v1210, %v1303
    %v1305 = vpop.f32.mrb[0].mxu0
    %1306 = vmatprep.mubr.f32.mxu0 0.0
    %v1307 = vand.u32 %v822, 4294901760
    %1308 = vmatmul.mubr.f32.gmra.mrb[0].mxu0 %v1307
    %v1309 = vpop.f32.mrb[0].mxu0
    %v1310 = vadd.f32 %v1218, %v1309
    %v1311 = vpop.f32.mrb[0].mxu0
    %1312 = vdwg.mxu0
    %1313 = vmatprep.subr.mxu0 0.0
    %v1314 = vand.u32 %v826, 4294901760
    %1315 = vmatpush1.msra.mxu0 %v1314
    %1316 = vmatprep.subr.mxu0 0.0
    %1317 = vmatpush1.msra.mxu0 0.0
    %1318 = vmatprep.subr.mxu0 0.0
    %1319 = vmatpush1.msra.mxu0 0.0
    %1320 = vmatprep.subr.mxu0 0.0
    %1321 = vmatpush1.msra.mxu0 0.0
    %1322 = vmatprep.subr.mxu0 0.0
    %1323 = vmatpush1.msra.mxu0 0.0
    %1324 = vmatprep.subr.mxu0 0.0
    %1325 = vmatpush1.msra.mxu0 0.0
    %1326 = vmatprep.subr.mxu0 0.0
    %1327 = vmatpush1.msra.mxu0 0.0
    %1328 = vmatprep.subr.mxu0 0.0
    %1329 = vmatpush1.msra.mxu0 0.0
    %1330 = vmatprep.subr.mxu0 0.0
    %1331 = vmatpush1.msra.mxu0 0.0
    %1332 = vmatprep.subr.mxu0 0.0
    %1333 = vmatpush1.msra.mxu0 0.0
    %1334 = vmatprep.subr.mxu0 0.0
    %1335 = vmatpush1.msra.mxu0 0.0
    %1336 = vmatprep.subr.mxu0 0.0
    %1337 = vmatpush1.msra.mxu0 0.0
    %1338 = vmatprep.subr.mxu0 0.0
    %1339 = vmatpush1.msra.mxu0 0.0
    %1340 = vmatprep.subr.mxu0 0.0
    %1341 = vmatpush1.msra.mxu0 0.0
    %1342 = vmatprep.subr.mxu0 0.0
    %1343 = vmatpush1.msra.mxu0 0.0
    %1344 = vmatprep.subr.mxu0 0.0
    %1345 = vmatpush1.msra.mxu0 0.0
    %1346 = vmatprep.subr.mxu0 0.0
    %1347 = vmatpush1.msra.mxu0 0.0
    %1348 = vmatprep.subr.mxu0 0.0
    %1349 = vmatpush1.msra.mxu0 0.0
    %1350 = vmatprep.subr.mxu0 0.0
    %1351 = vmatpush1.msra.mxu0 0.0
    %1352 = vmatprep.subr.mxu0 0.0
    %1353 = vmatpush1.msra.mxu0 0.0
    %1354 = vmatprep.subr.mxu0 0.0
    %1355 = vmatpush1.msra.mxu0 0.0
    %1356 = vmatprep.subr.mxu0 0.0
    %1357 = vmatpush1.msra.mxu0 0.0
    %1358 = vmatprep.subr.mxu0 0.0
    %1359 = vmatpush1.msra.mxu0 0.0
    %1360 = vmatprep.subr.mxu0 0.0
    %1361 = vmatpush1.msra.mxu0 0.0
    %1362 = vmatprep.subr.mxu0 0.0
    %1363 = vmatpush1.msra.mxu0 0.0
    %1364 = vmatprep.subr.mxu0 0.0
    %1365 = vmatpush1.msra.mxu0 0.0
    %1366 = vmatprep.subr.mxu0 0.0
    %1367 = vmatpush1.msra.mxu0 0.0
    %1368 = vmatprep.subr.mxu0 0.0
    %1369 = vmatpush1.msra.mxu0 0.0
    %1370 = vmatprep.subr.mxu0 0.0
    %1371 = vmatpush1.msra.mxu0 0.0
    %1372 = vmatprep.subr.mxu0 0.0
    %1373 = vmatpush1.msra.mxu0 0.0
    %1374 = vmatprep.subr.mxu0 0.0
    %1375 = vmatpush1.msra.mxu0 0.0
    %1376 = vmatprep.subr.mxu0 0.0
    %1377 = vmatpush1.msra.mxu0 0.0
    %1378 = vmatprep.mubr.f32.mxu0 0.0
    %v1379 = vand.u32 %v813, 4294901760
    %1380 = vmatmul.mubr.f32.gmra.mrb[0].mxu0 %v1379
    %v1381 = vpop.f32.mrb[0].mxu0
    %v1382 = vadd.f32 %v1292, %v1381
    %v1383 = vpop.f32.mrb[0].mxu0
    %1384 = vmatprep.mubr.f32.mxu0 0.0
    %v1385 = vand.u32 %v816, 4294901760
    %1386 = vmatmul.mubr.f32.gmra.mrb[0].mxu0 %v1385
    %v1387 = vpop.f32.mrb[0].mxu0
    %v1388 = vadd.f32 %v1298, %v1387
    %v1389 = vpop.f32.mrb[0].mxu0
    %1390 = vmatprep.mubr.f32.mxu0 0.0
    %v1391 = vand.u32 %v819, 4294901760
    %1392 = vmatmul.mubr.f32.gmra.mrb[0].mxu0 %v1391
    %v1393 = vpop.f32.mrb[0].mxu0
    %v1394 = vadd.f32 %v1304, %v1393
    %v1395 = vpop.f32.mrb[0].mxu0
    %1396 = vmatprep.mubr.f32.mxu0 0.0
    %v1397 = vand.u32 %v822, 4294901760
    %1398 = vmatmul.mubr.f32.gmra.mrb[0].mxu0 %v1397
    %v1399 = vpop.f32.mrb[0].mxu0
    %v1400 = vadd.f32 %v1310, %v1399
    %v1401 = vpop.f32.mrb[0].mxu0
    %1402 = vdwg.mxu0
    %1403 = vrot.lane.b32.xlu0 %v139, 64
    %v1404 = vpop.permute.xlu0 %1403
    %v1406 = vmul.f32 %v1382, %v1404
    %1407 = vrot.lane.b32.xlu0 %v142, 64
    %v1408 = vpop.permute.xlu0 %1407
    %v1410 = vmul.f32 %v1388, %v1408
    %v1411 = vadd.f32 %v1406, %v1410
    %v1412 = vmul.f32 %v1394, %v1404
    %v1413 = vmul.f32 %v1400, %v1408
    %v1414 = vadd.f32 %v1412, %v1413
    %v1415 = vpack.c.bf16 %v1414, %v1411
    %v1416 = vlaneseq
    %v1417 = vshrl.u32 %v1416, 7
    %v1418 = vsub.s32 1, %v1417
    %v1419 = vrot.slane %v56, %v1418
    %v1424 = vunpack.c.l.b16 %v71
    %v1425 = vunpack.c.l.b16 %v72
    %v1426 = vunpack.c.l.b16 %v73
    %v1427 = vunpack.c.l.b16 %v74
    %v1428 = vpack.c.b16 %v1425, %v1424
    %v1429 = vpack.c.b16 %v1427, %v1426
    %v1433 = vsel %vm100, %v1415, 0
    %1435 = vmatprep.subr.bf16.mxu0 0
    %1436 = vmatpush1.bf16.msra.mxu0 %v1428
    %1437 = vmatprep.subr.bf16.mxu0 0
    %1438 = vmatpush1.bf16.msra.mxu0 %v1429
    %1439 = vmatprep.subr.bf16.mxu0 0
    %1440 = vmatpush1.bf16.msra.mxu0 0
    %1441 = vmatprep.subr.bf16.mxu0 0
    %1442 = vmatpush1.bf16.msra.mxu0 0
    %1443 = vmatprep.subr.bf16.mxu0 0
    %1444 = vmatpush1.bf16.msra.mxu0 0
    %1445 = vmatprep.subr.bf16.mxu0 0
    %1446 = vmatpush1.bf16.msra.mxu0 0
    %1447 = vmatprep.subr.bf16.mxu0 0
    %1448 = vmatpush1.bf16.msra.mxu0 0
    %1449 = vmatprep.subr.bf16.mxu0 0
    %1450 = vmatpush1.bf16.msra.mxu0 0
    %1451 = vmatprep.subr.bf16.mxu0 0
    %1452 = vmatpush1.bf16.msra.mxu0 0
    %1453 = vmatprep.subr.bf16.mxu0 0
    %1454 = vmatpush1.bf16.msra.mxu0 0
    %1455 = vmatprep.subr.bf16.mxu0 0
    %1456 = vmatpush1.bf16.msra.mxu0 0
    %1457 = vmatprep.subr.bf16.mxu0 0
    %1458 = vmatpush1.bf16.msra.mxu0 0
    %1459 = vmatprep.subr.bf16.mxu0 0
    %1460 = vmatpush1.bf16.msra.mxu0 0
    %1461 = vmatprep.subr.bf16.mxu0 0
    %1462 = vmatpush1.bf16.msra.mxu0 0
    %1463 = vmatprep.subr.bf16.mxu0 0
    %1464 = vmatpush1.bf16.msra.mxu0 0
    %1465 = vmatprep.subr.bf16.mxu0 0
    %1466 = vmatpush1.bf16.msra.mxu0 0
    %1467 = vmatprep.mubr.bf16.mxu0 0
    %1468 = vmatmul.mubr.bf16.gmra.mrb[0].mxu0 %v1433
    %v1469 = vpop.f32.mrb[0].mxu0
    %v1470 = vadd.f32 %v1419, %v1469
    %v1471 = vpop.f32.mrb[0].mxu0
    %v1472 = vpop.f32.mrb[0].mxu0
    %v1473 = vadd.f32 %v1419, %v1472
    %v1474 = vpop.f32.mrb[0].mxu0
    %1475 = vdwg.mxu0
    %v1476 = vadd.f32 %v49, %v1470
    %v1477 = vadd.f32 %v54, %v1473
    %v1478 = vsel %vm100, %v1476, 0.0
    %1479 = vadd.xlane.f32.xlu0 %v1478
    %v1480 = vpop.xlane.xlu0 %1479
    %v1481 = vsel %vm100, %v1477, 0.0
    %1482 = vadd.xlane.f32.xlu0 %v1481
    %v1483 = vpop.xlane.xlu0 %1482
    %v1484 = vrcp.pop 32.0
    %v1485 = vmul.f32 %v1480, %v1484
    %v1486 = vmul.f32 %v1483, %v1484
    %v1487 = vsub.f32 %v1476, %v1485
    %v1488 = vsub.f32 %v1477, %v1486
    %v1489 = vmul.f32 %v1487, %v1487
    %v1490 = vmul.f32 %v1488, %v1488
    %v1491 = vsel %vm100, %v1489, 0.0
    %1492 = vadd.xlane.f32.xlu0 %v1491
    %v1493 = vpop.xlane.xlu0 %1492
    %v1494 = vsel %vm100, %v1490, 0.0
    %1495 = vadd.xlane.f32.xlu0 %v1494
    %v1496 = vpop.xlane.xlu0 %1495
    %v1497 = vmul.f32 %v1493, %v1484
    %v1498 = vmul.f32 %v1496, %v1484
    %v1499 = vadd.f32 %v1497, 1e-05
    %v1500 = vadd.f32 %v1498, 1e-05
    %v1501 = vrsqrt.pop %v1499
    %v1502 = vrsqrt.pop %v1500
    %v1503 = vmul.f32 %v1487, %v1501
    %v1504 = vmul.f32 %v1488, %v1502
    %v1505 = vlaneseq
    %v1506 = vshrl.u32 %v1505, 7
    %v1507 = vsub.s32 4, %v1506
    %v1508 = vrot.slane %v56, %v1507
    %v1509 = vmul.f32 %v1503, %v1508
    %v1510 = vmul.f32 %v1504, %v1508
    %v1511 = vlaneseq
    %v1512 = vshrl.u32 %v1511, 7
    %v1513 = vsub.s32 5, %v1512
    %v1514 = vrot.slane %v56, %v1513
    %v1515 = vadd.f32 %v1509, %v1514
    %v1516 = vadd.f32 %v1510, %v1514
    %v1517 = vpack.c.bf16 %v1516, %v1515
    %v1518 = vlaneseq
    %v1519 = vshrl.u32 %v1518, 7
    %v1520 = vsub.s32 2, %v1519
    %v1521 = vrot.slane %v56, %v1520
    %v1526 = vunpack.c.l.b16 %v67
    %v1527 = vunpack.c.l.b16 %v68
    %v1528 = vunpack.c.l.b16 %v69
    %v1529 = vunpack.c.l.b16 %v70
    %v1530 = vpack.c.b16 %v1527, %v1526
    %v1531 = vpack.c.b16 %v1529, %v1528
    %v1535 = vsel %vm100, %v1517, 0
    %1537 = vmatprep.subr.bf16.mxu0 0
    %1538 = vmatpush1.bf16.msra.mxu0 %v1530
    %1539 = vmatprep.subr.bf16.mxu0 0
    %1540 = vmatpush1.bf16.msra.mxu0 %v1531
    %1541 = vmatprep.subr.bf16.mxu0 0
    %1542 = vmatpush1.bf16.msra.mxu0 0
    %1543 = vmatprep.subr.bf16.mxu0 0
    %1544 = vmatpush1.bf16.msra.mxu0 0
    %1545 = vmatprep.subr.bf16.mxu0 0
    %1546 = vmatpush1.bf16.msra.mxu0 0
    %1547 = vmatprep.subr.bf16.mxu0 0
    %1548 = vmatpush1.bf16.msra.mxu0 0
    %1549 = vmatprep.subr.bf16.mxu0 0
    %1550 = vmatpush1.bf16.msra.mxu0 0
    %1551 = vmatprep.subr.bf16.mxu0 0
    %1552 = vmatpush1.bf16.msra.mxu0 0
    %1553 = vmatprep.subr.bf16.mxu0 0
    %1554 = vmatpush1.bf16.msra.mxu0 0
    %1555 = vmatprep.subr.bf16.mxu0 0
    %1556 = vmatpush1.bf16.msra.mxu0 0
    %1557 = vmatprep.subr.bf16.mxu0 0
    %1558 = vmatpush1.bf16.msra.mxu0 0
    %1559 = vmatprep.subr.bf16.mxu0 0
    %1560 = vmatpush1.bf16.msra.mxu0 0
    %1561 = vmatprep.subr.bf16.mxu0 0
    %1562 = vmatpush1.bf16.msra.mxu0 0
    %1563 = vmatprep.subr.bf16.mxu0 0
    %1564 = vmatpush1.bf16.msra.mxu0 0
    %1565 = vmatprep.subr.bf16.mxu0 0
    %1566 = vmatpush1.bf16.msra.mxu0 0
    %1567 = vmatprep.subr.bf16.mxu0 0
    %1568 = vmatpush1.bf16.msra.mxu0 0
    %1569 = vmatprep.mubr.bf16.mxu0 0
    %1570 = vmatmul.mubr.bf16.gmra.mrb[0].mxu0 %v1535
    %v1571 = vpop.f32.mrb[0].mxu0
    %v1572 = vadd.f32 %v1521, %v1571
    %v1573 = vpop.f32.mrb[0].mxu0
    %v1574 = vpop.f32.mrb[0].mxu0
    %v1575 = vadd.f32 %v1521, %v1574
    %v1576 = vpop.f32.mrb[0].mxu0
    %1577 = vdwg.mxu0
    %v1578 = vmax.f32 %v1572, 0.0
    %v1579 = vmax.f32 %v1575, 0.0
    %v1580 = vpack.c.bf16 %v1579, %v1578
    %v1581 = vlaneseq
    %v1582 = vshrl.u32 %v1581, 7
    %v1583 = vsub.s32 3, %v1582
    %v1584 = vrot.slane %v56, %v1583
    %v1593 = vunpack.c.l.b16 %v75
    %v1594 = vunpack.c.l.b16 %v76
    %v1595 = vunpack.c.l.b16 %v77
    %v1596 = vunpack.c.l.b16 %v78
    %v1597 = vunpack.c.l.b16 %v79
    %v1598 = vunpack.c.l.b16 %v80
    %v1599 = vunpack.c.l.b16 %v81
    %v1600 = vunpack.c.l.b16 %v82
    %v1601 = vpack.c.b16 %v1594, %v1593
    %v1602 = vpack.c.b16 %v1596, %v1595
    %v1603 = vpack.c.b16 %v1598, %v1597
    %v1604 = vpack.c.b16 %v1600, %v1599
    %vm1609 = vcmask 523264
    %v1611 = vsel %vm1609, %v1580, 0
    %1613 = vmatprep.subr.bf16.mxu0 0
    %1614 = vmatpush1.bf16.msra.mxu0 %v1601
    %1615 = vmatprep.subr.bf16.mxu0 0
    %1616 = vmatpush1.bf16.msra.mxu0 %v1602
    %1617 = vmatprep.subr.bf16.mxu0 0
    %1618 = vmatpush1.bf16.msra.mxu0 %v1603
    %1619 = vmatprep.subr.bf16.mxu0 0
    %1620 = vmatpush1.bf16.msra.mxu0 %v1604
    %1621 = vmatprep.subr.bf16.mxu0 0
    %1622 = vmatpush1.bf16.msra.mxu0 0
    %1623 = vmatprep.subr.bf16.mxu0 0
    %1624 = vmatpush1.bf16.msra.mxu0 0
    %1625 = vmatprep.subr.bf16.mxu0 0
    %1626 = vmatpush1.bf16.msra.mxu0 0
    %1627 = vmatprep.subr.bf16.mxu0 0
    %1628 = vmatpush1.bf16.msra.mxu0 0
    %1629 = vmatprep.subr.bf16.mxu0 0
    %1630 = vmatpush1.bf16.msra.mxu0 0
    %1631 = vmatprep.subr.bf16.mxu0 0
    %1632 = vmatpush1.bf16.msra.mxu0 0
    %1633 = vmatprep.subr.bf16.mxu0 0
    %1634 = vmatpush1.bf16.msra.mxu0 0
    %1635 = vmatprep.subr.bf16.mxu0 0
    %1636 = vmatpush1.bf16.msra.mxu0 0
    %1637 = vmatprep.subr.bf16.mxu0 0
    %1638 = vmatpush1.bf16.msra.mxu0 0
    %1639 = vmatprep.subr.bf16.mxu0 0
    %1640 = vmatpush1.bf16.msra.mxu0 0
    %1641 = vmatprep.subr.bf16.mxu0 0
    %1642 = vmatpush1.bf16.msra.mxu0 0
    %1643 = vmatprep.subr.bf16.mxu0 0
    %1644 = vmatpush1.bf16.msra.mxu0 0
    %1645 = vmatprep.mubr.bf16.mxu0 0
    %1646 = vmatmul.mubr.bf16.gmra.mrb[0].mxu0 %v1611
    %v1647 = vpop.f32.mrb[0].mxu0
    %v1648 = vadd.f32 %v1584, %v1647
    %v1649 = vpop.f32.mrb[0].mxu0
    %v1650 = vpop.f32.mrb[0].mxu0
    %v1651 = vadd.f32 %v1584, %v1650
    %v1652 = vpop.f32.mrb[0].mxu0
    %1653 = vdwg.mxu0
    %v1654 = vadd.f32 %v1515, %v1648
    %v1655 = vadd.f32 %v1516, %v1651
    %v1656 = vsel %vm100, %v1654, 0.0
    %1657 = vadd.xlane.f32.xlu0 %v1656
    %v1658 = vpop.xlane.xlu0 %1657
    %v1659 = vsel %vm100, %v1655, 0.0
    %1660 = vadd.xlane.f32.xlu0 %v1659
    %v1661 = vpop.xlane.xlu0 %1660
    %v1662 = vmul.f32 %v1658, %v1484
    %v1663 = vmul.f32 %v1661, %v1484
    %v1664 = vsub.f32 %v1654, %v1662
    %v1665 = vsub.f32 %v1655, %v1663
    %v1666 = vmul.f32 %v1664, %v1664
    %v1667 = vmul.f32 %v1665, %v1665
    %v1668 = vsel %vm100, %v1666, 0.0
    %1669 = vadd.xlane.f32.xlu0 %v1668
    %v1670 = vpop.xlane.xlu0 %1669
    %v1671 = vsel %vm100, %v1667, 0.0
    %1672 = vadd.xlane.f32.xlu0 %v1671
    %v1673 = vpop.xlane.xlu0 %1672
    %v1674 = vmul.f32 %v1670, %v1484
    %v1675 = vmul.f32 %v1673, %v1484
    %v1676 = vadd.f32 %v1674, 1e-05
    %v1677 = vadd.f32 %v1675, 1e-05
    %v1678 = vrsqrt.pop %v1676
    %v1679 = vrsqrt.pop %v1677
    %v1680 = vmul.f32 %v1664, %v1678
    %v1681 = vmul.f32 %v1665, %v1679
    %v1682 = vlaneseq
    %v1683 = vshrl.u32 %v1682, 7
    %v1684 = vsub.s32 6, %v1683
    %v1685 = vrot.slane %v56, %v1684
    %v1686 = vmul.f32 %v1680, %v1685
    %v1687 = vmul.f32 %v1681, %v1685
    %v1688 = vlaneseq
    %v1689 = vshrl.u32 %v1688, 7
    %v1690 = vsub.s32 7, %v1689
    %v1691 = vrot.slane %v56, %v1690
    %v1692 = vadd.f32 %v1686, %v1691
    %v1693 = vadd.f32 %v1687, %v1691
    %s1694 = scalar_lea.vmem [#allocation2], 80
    %v1695 = vld [vmem:[%s1694] sm:$0xf]
    %v1696 = vld [vmem:[%s1694 + $0x4] sm:$0xf]
    %v1697 = vld [vmem:[%s1694 + $0x8] sm:$0xf]
    %v1698 = vld [vmem:[%s1694 + $0xc] sm:$0xf]
    %v1699 = vld [vmem:[%s1694 + $0x10] sm:$0xf]
    %v1700 = vld [vmem:[%s1694 + $0x14] sm:$0xf]
    %v1701 = vld [vmem:[%s1694 + $0x18] sm:$0xf]
    %v1702 = vld [vmem:[%s1694 + $0x1c] sm:$0xf]
    %v1703 = vld [vmem:[%s1694 + $0x20] sm:$0xf]
    %v1704 = vld [vmem:[%s1694 + $0x24] sm:$0xf]
    %v1705 = vld [vmem:[%s1694 + $0x28] sm:$0xf]
    %v1706 = vld [vmem:[%s1694 + $0x2c] sm:$0xf]
    %v1707 = vld [vmem:[%s1694 + $0x30] sm:$0xf]
    %v1708 = vld [vmem:[%s1694 + $0x34] sm:$0xf]
    %v1709 = vld [vmem:[%s1694 + $0x38] sm:$0xf]
    %v1710 = vld [vmem:[%s1694 + $0x3c] sm:$0xf]
    %v1711 = vld [vmem:[%s1694 + $0x40] sm:$0xf]
    %v1712 = vld [vmem:[%s1694 + $0x44] sm:$0xf]
    %v1713 = vld [vmem:[%s1694 + $0x48] sm:$0xf]
    %v1714 = vld [vmem:[%s1694 + $0x4c] sm:$0xf]
    %v1715 = vpack.c.bf16 %v1693, %v1692
    %v1716 = vlaneseq
    %v1717 = vshrl.u32 %v1716, 7
    %v1718 = vsub.s32 0, %v1717
    %v1719 = vrot.slane %v57, %v1718
    %v1724 = vunpack.c.l.b16 %v1695
    %v1725 = vunpack.c.l.b16 %v1696
    %v1726 = vunpack.c.l.b16 %v1697
    %v1727 = vunpack.c.l.b16 %v1698
    %v1728 = vpack.c.b16 %v1725, %v1724
    %v1729 = vpack.c.b16 %v1727, %v1726
    %v1733 = vsel %vm100, %v1715, 0
    %1735 = vmatprep.subr.bf16.mxu0 0
    %1736 = vmatpush1.bf16.msra.mxu0 %v1728
    %1737 = vmatprep.subr.bf16.mxu0 0
    %1738 = vmatpush1.bf16.msra.mxu0 %v1729
    %1739 = vmatprep.subr.bf16.mxu0 0
    %1740 = vmatpush1.bf16.msra.mxu0 0
    %1741 = vmatprep.subr.bf16.mxu0 0
    %1742 = vmatpush1.bf16.msra.mxu0 0
    %1743 = vmatprep.subr.bf16.mxu0 0
    %1744 = vmatpush1.bf16.msra.mxu0 0
    %1745 = vmatprep.subr.bf16.mxu0 0
    %1746 = vmatpush1.bf16.msra.mxu0 0
    %1747 = vmatprep.subr.bf16.mxu0 0
    %1748 = vmatpush1.bf16.msra.mxu0 0
    %1749 = vmatprep.subr.bf16.mxu0 0
    %1750 = vmatpush1.bf16.msra.mxu0 0
    %1751 = vmatprep.subr.bf16.mxu0 0
    %1752 = vmatpush1.bf16.msra.mxu0 0
    %1753 = vmatprep.subr.bf16.mxu0 0
    %1754 = vmatpush1.bf16.msra.mxu0 0
    %1755 = vmatprep.subr.bf16.mxu0 0
    %1756 = vmatpush1.bf16.msra.mxu0 0
    %1757 = vmatprep.subr.bf16.mxu0 0
    %1758 = vmatpush1.bf16.msra.mxu0 0
    %1759 = vmatprep.subr.bf16.mxu0 0
    %1760 = vmatpush1.bf16.msra.mxu0 0
    %1761 = vmatprep.subr.bf16.mxu0 0
    %1762 = vmatpush1.bf16.msra.mxu0 0
    %1763 = vmatprep.subr.bf16.mxu0 0
    %1764 = vmatpush1.bf16.msra.mxu0 0
    %1765 = vmatprep.subr.bf16.mxu0 0
    %1766 = vmatpush1.bf16.msra.mxu0 0
    %1767 = vmatprep.mubr.bf16.mxu0 0
    %1768 = vmatmul.mubr.bf16.gmra.mrb[0].mxu0 %v1733
    %v1769 = vpop.f32.mrb[0].mxu0
    %v1770 = vadd.f32 %v1719, %v1769
    %v1771 = vpop.f32.mrb[0].mxu0
    %v1772 = vpop.f32.mrb[0].mxu0
    %v1773 = vadd.f32 %v1719, %v1772
    %v1774 = vpop.f32.mrb[0].mxu0
    %1775 = vdwg.mxu0
    %1777 = vrot.lane.b32.xlu0 %v1770, 96
    %v1778 = vpop.permute.xlu0 %1777
    %v1780 = vmul.f32 %v1770, %v1778
    %1782 = vrot.lane.b32.xlu0 %v1773, 96
    %v1783 = vpop.permute.xlu0 %1782
    %v1785 = vmul.f32 %v1770, %v1783
    %v1786 = vmul.f32 %v1773, %v1778
    %v1787 = vmul.f32 %v1773, %v1783
    %v1789 = vsel %vm100, %v1780, 0
    %v1792 = vsel %vm100, %v1785, 0
    %v1795 = vsel %vm100, %v1786, 0
    %v1798 = vsel %vm100, %v1787, 0
    %1800 = vmatprep.subr.mxu0 0.0
    %v1801 = vand.u32 %v58, 4294901760
    %1802 = vmatpush1.msra.mxu0 %v1801
    %1803 = vmatprep.subr.mxu0 0.0
    %v1804 = vand.u32 %v59, 4294901760
    %1805 = vmatpush1.msra.mxu0 %v1804
    %1806 = vmatprep.subr.mxu0 0.0
    %v1807 = vand.u32 %v60, 4294901760
    %1808 = vmatpush1.msra.mxu0 %v1807
    %1809 = vmatprep.subr.mxu0 0.0
    %v1810 = vand.u32 %v61, 4294901760
    %1811 = vmatpush1.msra.mxu0 %v1810
    %1812 = vmatprep.subr.mxu0 0.0
    %1813 = vmatpush1.msra.mxu0 0.0
    %1814 = vmatprep.subr.mxu0 0.0
    %1815 = vmatpush1.msra.mxu0 0.0
    %1816 = vmatprep.subr.mxu0 0.0
    %1817 = vmatpush1.msra.mxu0 0.0
    %1818 = vmatprep.subr.mxu0 0.0
    %1819 = vmatpush1.msra.mxu0 0.0
    %1820 = vmatprep.subr.mxu0 0.0
    %1821 = vmatpush1.msra.mxu0 0.0
    %1822 = vmatprep.subr.mxu0 0.0
    %1823 = vmatpush1.msra.mxu0 0.0
    %1824 = vmatprep.subr.mxu0 0.0
    %1825 = vmatpush1.msra.mxu0 0.0
    %1826 = vmatprep.subr.mxu0 0.0
    %1827 = vmatpush1.msra.mxu0 0.0
    %1828 = vmatprep.subr.mxu0 0.0
    %1829 = vmatpush1.msra.mxu0 0.0
    %1830 = vmatprep.subr.mxu0 0.0
    %1831 = vmatpush1.msra.mxu0 0.0
    %1832 = vmatprep.subr.mxu0 0.0
    %1833 = vmatpush1.msra.mxu0 0.0
    %1834 = vmatprep.subr.mxu0 0.0
    %1835 = vmatpush1.msra.mxu0 0.0
    %1836 = vmatprep.subr.mxu0 0.0
    %1837 = vmatpush1.msra.mxu0 0.0
    %1838 = vmatprep.subr.mxu0 0.0
    %1839 = vmatpush1.msra.mxu0 0.0
    %1840 = vmatprep.subr.mxu0 0.0
    %1841 = vmatpush1.msra.mxu0 0.0
    %1842 = vmatprep.subr.mxu0 0.0
    %1843 = vmatpush1.msra.mxu0 0.0
    %1844 = vmatprep.subr.mxu0 0.0
    %1845 = vmatpush1.msra.mxu0 0.0
    %1846 = vmatprep.subr.mxu0 0.0
    %1847 = vmatpush1.msra.mxu0 0.0
    %1848 = vmatprep.subr.mxu0 0.0
    %1849 = vmatpush1.msra.mxu0 0.0
    %1850 = vmatprep.subr.mxu0 0.0
    %1851 = vmatpush1.msra.mxu0 0.0
    %1852 = vmatprep.subr.mxu0 0.0
    %1853 = vmatpush1.msra.mxu0 0.0
    %1854 = vmatprep.subr.mxu0 0.0
    %1855 = vmatpush1.msra.mxu0 0.0
    %1856 = vmatprep.subr.mxu0 0.0
    %1857 = vmatpush1.msra.mxu0 0.0
    %1858 = vmatprep.subr.mxu0 0.0
    %1859 = vmatpush1.msra.mxu0 0.0
    %1860 = vmatprep.subr.mxu0 0.0
    %1861 = vmatpush1.msra.mxu0 0.0
    %1862 = vmatprep.subr.mxu0 0.0
    %1863 = vmatpush1.msra.mxu0 0.0
    %1864 = vmatprep.subr.mxu0 0.0
    %1865 = vmatpush1.msra.mxu0 0.0
    %1866 = vmatprep.subr.mxu0 0.0
    %1867 = vmatpush1.msra.mxu0 0.0
    %1868 = vmatprep.mubr.f32.mxu0 0.0
    %v1869 = vand.u32 %v1789, 4294901760
    %v1870 = vsub.f32 %v1789, %v1869
    %v1871 = vand.u32 %v1870, 4294901760
    %v1872 = vsub.f32 %v1870, %v1871
    %v1873 = vand.u32 %v1872, 4294901760
    %1874 = vmatmul.mubr.f32.gmra.mrb[0].mxu0 %v1873
    %v1875 = vpop.f32.mrb[0].mxu0
    %v1876 = vadd.f32 0.0, %v1875
    %v1877 = vpop.f32.mrb[0].mxu0
    %1878 = vmatprep.mubr.f32.mxu0 0.0
    %v1879 = vand.u32 %v1792, 4294901760
    %v1880 = vsub.f32 %v1792, %v1879
    %v1881 = vand.u32 %v1880, 4294901760
    %v1882 = vsub.f32 %v1880, %v1881
    %v1883 = vand.u32 %v1882, 4294901760
    %1884 = vmatmul.mubr.f32.gmra.mrb[0].mxu0 %v1883
    %v1885 = vpop.f32.mrb[0].mxu0
    %v1886 = vadd.f32 0.0, %v1885
    %v1887 = vpop.f32.mrb[0].mxu0
    %1888 = vmatprep.mubr.f32.mxu0 0.0
    %v1889 = vand.u32 %v1795, 4294901760
    %v1890 = vsub.f32 %v1795, %v1889
    %v1891 = vand.u32 %v1890, 4294901760
    %v1892 = vsub.f32 %v1890, %v1891
    %v1893 = vand.u32 %v1892, 4294901760
    %1894 = vmatmul.mubr.f32.gmra.mrb[0].mxu0 %v1893
    %v1895 = vpop.f32.mrb[0].mxu0
    %v1896 = vadd.f32 0.0, %v1895
    %v1897 = vpop.f32.mrb[0].mxu0
    %1898 = vmatprep.mubr.f32.mxu0 0.0
    %v1899 = vand.u32 %v1798, 4294901760
    %v1900 = vsub.f32 %v1798, %v1899
    %v1901 = vand.u32 %v1900, 4294901760
    %v1902 = vsub.f32 %v1900, %v1901
    %v1903 = vand.u32 %v1902, 4294901760
    %1904 = vmatmul.mubr.f32.gmra.mrb[0].mxu0 %v1903
    %v1905 = vpop.f32.mrb[0].mxu0
    %v1906 = vadd.f32 0.0, %v1905
    %v1907 = vpop.f32.mrb[0].mxu0
    %1908 = vdwg.mxu0
    %1909 = vmatprep.subr.mxu0 0.0
    %v1910 = vand.u32 %v58, 4294901760
    %v1911 = vsub.f32 %v58, %v1910
    %v1912 = vand.u32 %v1911, 4294901760
    %v1913 = vsub.f32 %v1911, %v1912
    %v1914 = vand.u32 %v1913, 4294901760
    %1915 = vmatpush1.msra.mxu0 %v1914
    %1916 = vmatprep.subr.mxu0 0.0
    %v1917 = vand.u32 %v59, 4294901760
    %v1918 = vsub.f32 %v59, %v1917
    %v1919 = vand.u32 %v1918, 4294901760
    %v1920 = vsub.f32 %v1918, %v1919
    %v1921 = vand.u32 %v1920, 4294901760
    %1922 = vmatpush1.msra.mxu0 %v1921
    %1923 = vmatprep.subr.mxu0 0.0
    %v1924 = vand.u32 %v60, 4294901760
    %v1925 = vsub.f32 %v60, %v1924
    %v1926 = vand.u32 %v1925, 4294901760
    %v1927 = vsub.f32 %v1925, %v1926
    %v1928 = vand.u32 %v1927, 4294901760
    %1929 = vmatpush1.msra.mxu0 %v1928
    %1930 = vmatprep.subr.mxu0 0.0
    %v1931 = vand.u32 %v61, 4294901760
    %v1932 = vsub.f32 %v61, %v1931
    %v1933 = vand.u32 %v1932, 4294901760
    %v1934 = vsub.f32 %v1932, %v1933
    %v1935 = vand.u32 %v1934, 4294901760
    %1936 = vmatpush1.msra.mxu0 %v1935
    %1937 = vmatprep.subr.mxu0 0.0
    %1938 = vmatpush1.msra.mxu0 0.0
    %1939 = vmatprep.subr.mxu0 0.0
    %1940 = vmatpush1.msra.mxu0 0.0
    %1941 = vmatprep.subr.mxu0 0.0
    %1942 = vmatpush1.msra.mxu0 0.0
    %1943 = vmatprep.subr.mxu0 0.0
    %1944 = vmatpush1.msra.mxu0 0.0
    %1945 = vmatprep.subr.mxu0 0.0
    %1946 = vmatpush1.msra.mxu0 0.0
    %1947 = vmatprep.subr.mxu0 0.0
    %1948 = vmatpush1.msra.mxu0 0.0
    %1949 = vmatprep.subr.mxu0 0.0
    %1950 = vmatpush1.msra.mxu0 0.0
    %1951 = vmatprep.subr.mxu0 0.0
    %1952 = vmatpush1.msra.mxu0 0.0
    %1953 = vmatprep.subr.mxu0 0.0
    %1954 = vmatpush1.msra.mxu0 0.0
    %1955 = vmatprep.subr.mxu0 0.0
    %1956 = vmatpush1.msra.mxu0 0.0
    %1957 = vmatprep.subr.mxu0 0.0
    %1958 = vmatpush1.msra.mxu0 0.0
    %1959 = vmatprep.subr.mxu0 0.0
    %1960 = vmatpush1.msra.mxu0 0.0
    %1961 = vmatprep.subr.mxu0 0.0
    %1962 = vmatpush1.msra.mxu0 0.0
    %1963 = vmatprep.subr.mxu0 0.0
    %1964 = vmatpush1.msra.mxu0 0.0
    %1965 = vmatprep.subr.mxu0 0.0
    %1966 = vmatpush1.msra.mxu0 0.0
    %1967 = vmatprep.subr.mxu0 0.0
    %1968 = vmatpush1.msra.mxu0 0.0
    %1969 = vmatprep.subr.mxu0 0.0
    %1970 = vmatpush1.msra.mxu0 0.0
    %1971 = vmatprep.subr.mxu0 0.0
    %1972 = vmatpush1.msra.mxu0 0.0
    %1973 = vmatprep.subr.mxu0 0.0
    %1974 = vmatpush1.msra.mxu0 0.0
    %1975 = vmatprep.subr.mxu0 0.0
    %1976 = vmatpush1.msra.mxu0 0.0
    %1977 = vmatprep.subr.mxu0 0.0
    %1978 = vmatpush1.msra.mxu0 0.0
    %1979 = vmatprep.subr.mxu0 0.0
    %1980 = vmatpush1.msra.mxu0 0.0
    %1981 = vmatprep.subr.mxu0 0.0
    %1982 = vmatpush1.msra.mxu0 0.0
    %1983 = vmatprep.subr.mxu0 0.0
    %1984 = vmatpush1.msra.mxu0 0.0
    %1985 = vmatprep.subr.mxu0 0.0
    %1986 = vmatpush1.msra.mxu0 0.0
    %1987 = vmatprep.subr.mxu0 0.0
    %1988 = vmatpush1.msra.mxu0 0.0
    %1989 = vmatprep.subr.mxu0 0.0
    %1990 = vmatpush1.msra.mxu0 0.0
    %1991 = vmatprep.subr.mxu0 0.0
    %1992 = vmatpush1.msra.mxu0 0.0
    %1993 = vmatprep.mubr.f32.mxu0 0.0
    %v1994 = vand.u32 %v1789, 4294901760
    %1995 = vmatmul.mubr.f32.gmra.mrb[0].mxu0 %v1994
    %v1996 = vpop.f32.mrb[0].mxu0
    %v1997 = vadd.f32 %v1876, %v1996
    %v1998 = vpop.f32.mrb[0].mxu0
    %1999 = vmatprep.mubr.f32.mxu0 0.0
    %v2000 = vand.u32 %v1792, 4294901760
    %2001 = vmatmul.mubr.f32.gmra.mrb[0].mxu0 %v2000
    %v2002 = vpop.f32.mrb[0].mxu0
    %v2003 = vadd.f32 %v1886, %v2002
    %v2004 = vpop.f32.mrb[0].mxu0
    %2005 = vmatprep.mubr.f32.mxu0 0.0
    %v2006 = vand.u32 %v1795, 4294901760
    %2007 = vmatmul.mubr.f32.gmra.mrb[0].mxu0 %v2006
    %v2008 = vpop.f32.mrb[0].mxu0
    %v2009 = vadd.f32 %v1896, %v2008
    %v2010 = vpop.f32.mrb[0].mxu0
    %2011 = vmatprep.mubr.f32.mxu0 0.0
    %v2012 = vand.u32 %v1798, 4294901760
    %2013 = vmatmul.mubr.f32.gmra.mrb[0].mxu0 %v2012
    %v2014 = vpop.f32.mrb[0].mxu0
    %v2015 = vadd.f32 %v1906, %v2014
    %v2016 = vpop.f32.mrb[0].mxu0
    %2017 = vdwg.mxu0
    %2018 = vmatprep.subr.mxu0 0.0
    %v2019 = vand.u32 %v58, 4294901760
    %v2020 = vsub.f32 %v58, %v2019
    %2021 = vmatpush1.msra.mxu0 %v2020
    %2022 = vmatprep.subr.mxu0 0.0
    %v2023 = vand.u32 %v59, 4294901760
    %v2024 = vsub.f32 %v59, %v2023
    %2025 = vmatpush1.msra.mxu0 %v2024
    %2026 = vmatprep.subr.mxu0 0.0
    %v2027 = vand.u32 %v60, 4294901760
    %v2028 = vsub.f32 %v60, %v2027
    %2029 = vmatpush1.msra.mxu0 %v2028
    %2030 = vmatprep.subr.mxu0 0.0
    %v2031 = vand.u32 %v61, 4294901760
    %v2032 = vsub.f32 %v61, %v2031
    %2033 = vmatpush1.msra.mxu0 %v2032
    %2034 = vmatprep.subr.mxu0 0.0
    %2035 = vmatpush1.msra.mxu0 0.0
    %2036 = vmatprep.subr.mxu0 0.0
    %2037 = vmatpush1.msra.mxu0 0.0
    %2038 = vmatprep.subr.mxu0 0.0
    %2039 = vmatpush1.msra.mxu0 0.0
    %2040 = vmatprep.subr.mxu0 0.0
    %2041 = vmatpush1.msra.mxu0 0.0
    %2042 = vmatprep.subr.mxu0 0.0
    %2043 = vmatpush1.msra.mxu0 0.0
    %2044 = vmatprep.subr.mxu0 0.0
    %2045 = vmatpush1.msra.mxu0 0.0
    %2046 = vmatprep.subr.mxu0 0.0
    %2047 = vmatpush1.msra.mxu0 0.0
    %2048 = vmatprep.subr.mxu0 0.0
    %2049 = vmatpush1.msra.mxu0 0.0
    %2050 = vmatprep.subr.mxu0 0.0
    %2051 = vmatpush1.msra.mxu0 0.0
    %2052 = vmatprep.subr.mxu0 0.0
    %2053 = vmatpush1.msra.mxu0 0.0
    %2054 = vmatprep.subr.mxu0 0.0
    %2055 = vmatpush1.msra.mxu0 0.0
    %2056 = vmatprep.subr.mxu0 0.0
    %2057 = vmatpush1.msra.mxu0 0.0
    %2058 = vmatprep.subr.mxu0 0.0
    %2059 = vmatpush1.msra.mxu0 0.0
    %2060 = vmatprep.subr.mxu0 0.0
    %2061 = vmatpush1.msra.mxu0 0.0
    %2062 = vmatprep.subr.mxu0 0.0
    %2063 = vmatpush1.msra.mxu0 0.0
    %2064 = vmatprep.subr.mxu0 0.0
    %2065 = vmatpush1.msra.mxu0 0.0
    %2066 = vmatprep.subr.mxu0 0.0
    %2067 = vmatpush1.msra.mxu0 0.0
    %2068 = vmatprep.subr.mxu0 0.0
    %2069 = vmatpush1.msra.mxu0 0.0
    %2070 = vmatprep.subr.mxu0 0.0
    %2071 = vmatpush1.msra.mxu0 0.0
    %2072 = vmatprep.subr.mxu0 0.0
    %2073 = vmatpush1.msra.mxu0 0.0
    %2074 = vmatprep.subr.mxu0 0.0
    %2075 = vmatpush1.msra.mxu0 0.0
    %2076 = vmatprep.subr.mxu0 0.0
    %2077 = vmatpush1.msra.mxu0 0.0
    %2078 = vmatprep.subr.mxu0 0.0
    %2079 = vmatpush1.msra.mxu0 0.0
    %2080 = vmatprep.subr.mxu0 0.0
    %2081 = vmatpush1.msra.mxu0 0.0
    %2082 = vmatprep.subr.mxu0 0.0
    %2083 = vmatpush1.msra.mxu0 0.0
    %2084 = vmatprep.subr.mxu0 0.0
    %2085 = vmatpush1.msra.mxu0 0.0
    %2086 = vmatprep.subr.mxu0 0.0
    %2087 = vmatpush1.msra.mxu0 0.0
    %2088 = vmatprep.subr.mxu0 0.0
    %2089 = vmatpush1.msra.mxu0 0.0
    %2090 = vmatprep.mubr.f32.mxu0 0.0
    %v2091 = vand.u32 %v1789, 4294901760
    %v2092 = vsub.f32 %v1789, %v2091
    %2093 = vmatmul.mubr.f32.gmra.mrb[0].mxu0 %v2092
    %v2094 = vpop.f32.mrb[0].mxu0
    %v2095 = vadd.f32 %v1997, %v2094
    %v2096 = vpop.f32.mrb[0].mxu0
    %2097 = vmatprep.mubr.f32.mxu0 0.0
    %v2098 = vand.u32 %v1792, 4294901760
    %v2099 = vsub.f32 %v1792, %v2098
    %2100 = vmatmul.mubr.f32.gmra.mrb[0].mxu0 %v2099
    %v2101 = vpop.f32.mrb[0].mxu0
    %v2102 = vadd.f32 %v2003, %v2101
    %v2103 = vpop.f32.mrb[0].mxu0
    %2104 = vmatprep.mubr.f32.mxu0 0.0
    %v2105 = vand.u32 %v1795, 4294901760
    %v2106 = vsub.f32 %v1795, %v2105
    %2107 = vmatmul.mubr.f32.gmra.mrb[0].mxu0 %v2106
    %v2108 = vpop.f32.mrb[0].mxu0
    %v2109 = vadd.f32 %v2009, %v2108
    %v2110 = vpop.f32.mrb[0].mxu0
    %2111 = vmatprep.mubr.f32.mxu0 0.0
    %v2112 = vand.u32 %v1798, 4294901760
    %v2113 = vsub.f32 %v1798, %v2112
    %2114 = vmatmul.mubr.f32.gmra.mrb[0].mxu0 %v2113
    %v2115 = vpop.f32.mrb[0].mxu0
    %v2116 = vadd.f32 %v2015, %v2115
    %v2117 = vpop.f32.mrb[0].mxu0
    %2118 = vdwg.mxu0
    %2119 = vmatprep.subr.mxu0 0.0
    %v2120 = vand.u32 %v58, 4294901760
    %2121 = vmatpush1.msra.mxu0 %v2120
    %2122 = vmatprep.subr.mxu0 0.0
    %v2123 = vand.u32 %v59, 4294901760
    %2124 = vmatpush1.msra.mxu0 %v2123
    %2125 = vmatprep.subr.mxu0 0.0
    %v2126 = vand.u32 %v60, 4294901760
    %2127 = vmatpush1.msra.mxu0 %v2126
    %2128 = vmatprep.subr.mxu0 0.0
    %v2129 = vand.u32 %v61, 4294901760
    %2130 = vmatpush1.msra.mxu0 %v2129
    %2131 = vmatprep.subr.mxu0 0.0
    %2132 = vmatpush1.msra.mxu0 0.0
    %2133 = vmatprep.subr.mxu0 0.0
    %2134 = vmatpush1.msra.mxu0 0.0
    %2135 = vmatprep.subr.mxu0 0.0
    %2136 = vmatpush1.msra.mxu0 0.0
    %2137 = vmatprep.subr.mxu0 0.0
    %2138 = vmatpush1.msra.mxu0 0.0
    %2139 = vmatprep.subr.mxu0 0.0
    %2140 = vmatpush1.msra.mxu0 0.0
    %2141 = vmatprep.subr.mxu0 0.0
    %2142 = vmatpush1.msra.mxu0 0.0
    %2143 = vmatprep.subr.mxu0 0.0
    %2144 = vmatpush1.msra.mxu0 0.0
    %2145 = vmatprep.subr.mxu0 0.0
    %2146 = vmatpush1.msra.mxu0 0.0
    %2147 = vmatprep.subr.mxu0 0.0
    %2148 = vmatpush1.msra.mxu0 0.0
    %2149 = vmatprep.subr.mxu0 0.0
    %2150 = vmatpush1.msra.mxu0 0.0
    %2151 = vmatprep.subr.mxu0 0.0
    %2152 = vmatpush1.msra.mxu0 0.0
    %2153 = vmatprep.subr.mxu0 0.0
    %2154 = vmatpush1.msra.mxu0 0.0
    %2155 = vmatprep.subr.mxu0 0.0
    %2156 = vmatpush1.msra.mxu0 0.0
    %2157 = vmatprep.subr.mxu0 0.0
    %2158 = vmatpush1.msra.mxu0 0.0
    %2159 = vmatprep.subr.mxu0 0.0
    %2160 = vmatpush1.msra.mxu0 0.0
    %2161 = vmatprep.subr.mxu0 0.0
    %2162 = vmatpush1.msra.mxu0 0.0
    %2163 = vmatprep.subr.mxu0 0.0
    %2164 = vmatpush1.msra.mxu0 0.0
    %2165 = vmatprep.subr.mxu0 0.0
    %2166 = vmatpush1.msra.mxu0 0.0
    %2167 = vmatprep.subr.mxu0 0.0
    %2168 = vmatpush1.msra.mxu0 0.0
    %2169 = vmatprep.subr.mxu0 0.0
    %2170 = vmatpush1.msra.mxu0 0.0
    %2171 = vmatprep.subr.mxu0 0.0
    %2172 = vmatpush1.msra.mxu0 0.0
    %2173 = vmatprep.subr.mxu0 0.0
    %2174 = vmatpush1.msra.mxu0 0.0
    %2175 = vmatprep.subr.mxu0 0.0
    %2176 = vmatpush1.msra.mxu0 0.0
    %2177 = vmatprep.subr.mxu0 0.0
    %2178 = vmatpush1.msra.mxu0 0.0
    %2179 = vmatprep.subr.mxu0 0.0
    %2180 = vmatpush1.msra.mxu0 0.0
    %2181 = vmatprep.subr.mxu0 0.0
    %2182 = vmatpush1.msra.mxu0 0.0
    %2183 = vmatprep.subr.mxu0 0.0
    %2184 = vmatpush1.msra.mxu0 0.0
    %2185 = vmatprep.subr.mxu0 0.0
    %2186 = vmatpush1.msra.mxu0 0.0
    %2187 = vmatprep.mubr.f32.mxu0 0.0
    %v2188 = vand.u32 %v1789, 4294901760
    %v2189 = vsub.f32 %v1789, %v2188
    %v2190 = vand.u32 %v2189, 4294901760
    %2191 = vmatmul.mubr.f32.gmra.mrb[0].mxu0 %v2190
    %v2192 = vpop.f32.mrb[0].mxu0
    %v2193 = vadd.f32 %v2095, %v2192
    %v2194 = vpop.f32.mrb[0].mxu0
    %2195 = vmatprep.mubr.f32.mxu0 0.0
    %v2196 = vand.u32 %v1792, 4294901760
    %v2197 = vsub.f32 %v1792, %v2196
    %v2198 = vand.u32 %v2197, 4294901760
    %2199 = vmatmul.mubr.f32.gmra.mrb[0].mxu0 %v2198
    %v2200 = vpop.f32.mrb[0].mxu0
    %v2201 = vadd.f32 %v2102, %v2200
    %v2202 = vpop.f32.mrb[0].mxu0
    %2203 = vmatprep.mubr.f32.mxu0 0.0
    %v2204 = vand.u32 %v1795, 4294901760
    %v2205 = vsub.f32 %v1795, %v2204
    %v2206 = vand.u32 %v2205, 4294901760
    %2207 = vmatmul.mubr.f32.gmra.mrb[0].mxu0 %v2206
    %v2208 = vpop.f32.mrb[0].mxu0
    %v2209 = vadd.f32 %v2109, %v2208
    %v2210 = vpop.f32.mrb[0].mxu0
    %2211 = vmatprep.mubr.f32.mxu0 0.0
    %v2212 = vand.u32 %v1798, 4294901760
    %v2213 = vsub.f32 %v1798, %v2212
    %v2214 = vand.u32 %v2213, 4294901760
    %2215 = vmatmul.mubr.f32.gmra.mrb[0].mxu0 %v2214
    %v2216 = vpop.f32.mrb[0].mxu0
    %v2217 = vadd.f32 %v2116, %v2216
    %v2218 = vpop.f32.mrb[0].mxu0
    %2219 = vdwg.mxu0
    %2220 = vmatprep.subr.mxu0 0.0
    %v2221 = vand.u32 %v58, 4294901760
    %v2222 = vsub.f32 %v58, %v2221
    %v2223 = vand.u32 %v2222, 4294901760
    %2224 = vmatpush1.msra.mxu0 %v2223
    %2225 = vmatprep.subr.mxu0 0.0
    %v2226 = vand.u32 %v59, 4294901760
    %v2227 = vsub.f32 %v59, %v2226
    %v2228 = vand.u32 %v2227, 4294901760
    %2229 = vmatpush1.msra.mxu0 %v2228
    %2230 = vmatprep.subr.mxu0 0.0
    %v2231 = vand.u32 %v60, 4294901760
    %v2232 = vsub.f32 %v60, %v2231
    %v2233 = vand.u32 %v2232, 4294901760
    %2234 = vmatpush1.msra.mxu0 %v2233
    %2235 = vmatprep.subr.mxu0 0.0
    %v2236 = vand.u32 %v61, 4294901760
    %v2237 = vsub.f32 %v61, %v2236
    %v2238 = vand.u32 %v2237, 4294901760
    %2239 = vmatpush1.msra.mxu0 %v2238
    %2240 = vmatprep.subr.mxu0 0.0
    %2241 = vmatpush1.msra.mxu0 0.0
    %2242 = vmatprep.subr.mxu0 0.0
    %2243 = vmatpush1.msra.mxu0 0.0
    %2244 = vmatprep.subr.mxu0 0.0
    %2245 = vmatpush1.msra.mxu0 0.0
    %2246 = vmatprep.subr.mxu0 0.0
    %2247 = vmatpush1.msra.mxu0 0.0
    %2248 = vmatprep.subr.mxu0 0.0
    %2249 = vmatpush1.msra.mxu0 0.0
    %2250 = vmatprep.subr.mxu0 0.0
    %2251 = vmatpush1.msra.mxu0 0.0
    %2252 = vmatprep.subr.mxu0 0.0
    %2253 = vmatpush1.msra.mxu0 0.0
    %2254 = vmatprep.subr.mxu0 0.0
    %2255 = vmatpush1.msra.mxu0 0.0
    %2256 = vmatprep.subr.mxu0 0.0
    %2257 = vmatpush1.msra.mxu0 0.0
    %2258 = vmatprep.subr.mxu0 0.0
    %2259 = vmatpush1.msra.mxu0 0.0
    %2260 = vmatprep.subr.mxu0 0.0
    %2261 = vmatpush1.msra.mxu0 0.0
    %2262 = vmatprep.subr.mxu0 0.0
    %2263 = vmatpush1.msra.mxu0 0.0
    %2264 = vmatprep.subr.mxu0 0.0
    %2265 = vmatpush1.msra.mxu0 0.0
    %2266 = vmatprep.subr.mxu0 0.0
    %2267 = vmatpush1.msra.mxu0 0.0
    %2268 = vmatprep.subr.mxu0 0.0
    %2269 = vmatpush1.msra.mxu0 0.0
    %2270 = vmatprep.subr.mxu0 0.0
    %2271 = vmatpush1.msra.mxu0 0.0
    %2272 = vmatprep.subr.mxu0 0.0
    %2273 = vmatpush1.msra.mxu0 0.0
    %2274 = vmatprep.subr.mxu0 0.0
    %2275 = vmatpush1.msra.mxu0 0.0
    %2276 = vmatprep.subr.mxu0 0.0
    %2277 = vmatpush1.msra.mxu0 0.0
    %2278 = vmatprep.subr.mxu0 0.0
    %2279 = vmatpush1.msra.mxu0 0.0
    %2280 = vmatprep.subr.mxu0 0.0
    %2281 = vmatpush1.msra.mxu0 0.0
    %2282 = vmatprep.subr.mxu0 0.0
    %2283 = vmatpush1.msra.mxu0 0.0
    %2284 = vmatprep.subr.mxu0 0.0
    %2285 = vmatpush1.msra.mxu0 0.0
    %2286 = vmatprep.subr.mxu0 0.0
    %2287 = vmatpush1.msra.mxu0 0.0
    %2288 = vmatprep.subr.mxu0 0.0
    %2289 = vmatpush1.msra.mxu0 0.0
    %2290 = vmatprep.subr.mxu0 0.0
    %2291 = vmatpush1.msra.mxu0 0.0
    %2292 = vmatprep.subr.mxu0 0.0
    %2293 = vmatpush1.msra.mxu0 0.0
    %2294 = vmatprep.subr.mxu0 0.0
    %2295 = vmatpush1.msra.mxu0 0.0
    %2296 = vmatprep.mubr.f32.mxu0 0.0
    %v2297 = vand.u32 %v1789, 4294901760
    %2298 = vmatmul.mubr.f32.gmra.mrb[0].mxu0 %v2297
    %v2299 = vpop.f32.mrb[0].mxu0
    %v2300 = vadd.f32 %v2193, %v2299
    %v2301 = vpop.f32.mrb[0].mxu0
    %2302 = vmatprep.mubr.f32.mxu0 0.0
    %v2303 = vand.u32 %v1792, 4294901760
    %2304 = vmatmul.mubr.f32.gmra.mrb[0].mxu0 %v2303
    %v2305 = vpop.f32.mrb[0].mxu0
    %v2306 = vadd.f32 %v2201, %v2305
    %v2307 = vpop.f32.mrb[0].mxu0
    %2308 = vmatprep.mubr.f32.mxu0 0.0
    %v2309 = vand.u32 %v1795, 4294901760
    %2310 = vmatmul.mubr.f32.gmra.mrb[0].mxu0 %v2309
    %v2311 = vpop.f32.mrb[0].mxu0
    %v2312 = vadd.f32 %v2209, %v2311
    %v2313 = vpop.f32.mrb[0].mxu0
    %2314 = vmatprep.mubr.f32.mxu0 0.0
    %v2315 = vand.u32 %v1798, 4294901760
    %2316 = vmatmul.mubr.f32.gmra.mrb[0].mxu0 %v2315
    %v2317 = vpop.f32.mrb[0].mxu0
    %v2318 = vadd.f32 %v2217, %v2317
    %v2319 = vpop.f32.mrb[0].mxu0
    %2320 = vdwg.mxu0
    %2321 = vmatprep.subr.mxu0 0.0
    %v2322 = vand.u32 %v58, 4294901760
    %2323 = vmatpush1.msra.mxu0 %v2322
    %2324 = vmatprep.subr.mxu0 0.0
    %v2325 = vand.u32 %v59, 4294901760
    %2326 = vmatpush1.msra.mxu0 %v2325
    %2327 = vmatprep.subr.mxu0 0.0
    %v2328 = vand.u32 %v60, 4294901760
    %2329 = vmatpush1.msra.mxu0 %v2328
    %2330 = vmatprep.subr.mxu0 0.0
    %v2331 = vand.u32 %v61, 4294901760
    %2332 = vmatpush1.msra.mxu0 %v2331
    %2333 = vmatprep.subr.mxu0 0.0
    %2334 = vmatpush1.msra.mxu0 0.0
    %2335 = vmatprep.subr.mxu0 0.0
    %2336 = vmatpush1.msra.mxu0 0.0
    %2337 = vmatprep.subr.mxu0 0.0
    %2338 = vmatpush1.msra.mxu0 0.0
    %2339 = vmatprep.subr.mxu0 0.0
    %2340 = vmatpush1.msra.mxu0 0.0
    %2341 = vmatprep.subr.mxu0 0.0
    %2342 = vmatpush1.msra.mxu0 0.0
    %2343 = vmatprep.subr.mxu0 0.0
    %2344 = vmatpush1.msra.mxu0 0.0
    %2345 = vmatprep.subr.mxu0 0.0
    %2346 = vmatpush1.msra.mxu0 0.0
    %2347 = vmatprep.subr.mxu0 0.0
    %2348 = vmatpush1.msra.mxu0 0.0
    %2349 = vmatprep.subr.mxu0 0.0
    %2350 = vmatpush1.msra.mxu0 0.0
    %2351 = vmatprep.subr.mxu0 0.0
    %2352 = vmatpush1.msra.mxu0 0.0
    %2353 = vmatprep.subr.mxu0 0.0
    %2354 = vmatpush1.msra.mxu0 0.0
    %2355 = vmatprep.subr.mxu0 0.0
    %2356 = vmatpush1.msra.mxu0 0.0
    %2357 = vmatprep.subr.mxu0 0.0
    %2358 = vmatpush1.msra.mxu0 0.0
    %2359 = vmatprep.subr.mxu0 0.0
    %2360 = vmatpush1.msra.mxu0 0.0
    %2361 = vmatprep.subr.mxu0 0.0
    %2362 = vmatpush1.msra.mxu0 0.0
    %2363 = vmatprep.subr.mxu0 0.0
    %2364 = vmatpush1.msra.mxu0 0.0
    %2365 = vmatprep.subr.mxu0 0.0
    %2366 = vmatpush1.msra.mxu0 0.0
    %2367 = vmatprep.subr.mxu0 0.0
    %2368 = vmatpush1.msra.mxu0 0.0
    %2369 = vmatprep.subr.mxu0 0.0
    %2370 = vmatpush1.msra.mxu0 0.0
    %2371 = vmatprep.subr.mxu0 0.0
    %2372 = vmatpush1.msra.mxu0 0.0
    %2373 = vmatprep.subr.mxu0 0.0
    %2374 = vmatpush1.msra.mxu0 0.0
    %2375 = vmatprep.subr.mxu0 0.0
    %2376 = vmatpush1.msra.mxu0 0.0
    %2377 = vmatprep.subr.mxu0 0.0
    %2378 = vmatpush1.msra.mxu0 0.0
    %2379 = vmatprep.subr.mxu0 0.0
    %2380 = vmatpush1.msra.mxu0 0.0
    %2381 = vmatprep.subr.mxu0 0.0
    %2382 = vmatpush1.msra.mxu0 0.0
    %2383 = vmatprep.subr.mxu0 0.0
    %2384 = vmatpush1.msra.mxu0 0.0
    %2385 = vmatprep.subr.mxu0 0.0
    %2386 = vmatpush1.msra.mxu0 0.0
    %2387 = vmatprep.subr.mxu0 0.0
    %2388 = vmatpush1.msra.mxu0 0.0
    %2389 = vmatprep.mubr.f32.mxu0 0.0
    %v2390 = vand.u32 %v1789, 4294901760
    %2391 = vmatmul.mubr.f32.gmra.mrb[0].mxu0 %v2390
    %v2392 = vpop.f32.mrb[0].mxu0
    %v2393 = vadd.f32 %v2300, %v2392
    %v2394 = vpop.f32.mrb[0].mxu0
    %2395 = vmatprep.mubr.f32.mxu0 0.0
    %v2396 = vand.u32 %v1792, 4294901760
    %2397 = vmatmul.mubr.f32.gmra.mrb[0].mxu0 %v2396
    %v2398 = vpop.f32.mrb[0].mxu0
    %v2399 = vadd.f32 %v2306, %v2398
    %v2400 = vpop.f32.mrb[0].mxu0
    %2401 = vmatprep.mubr.f32.mxu0 0.0
    %v2402 = vand.u32 %v1795, 4294901760
    %2403 = vmatmul.mubr.f32.gmra.mrb[0].mxu0 %v2402
    %v2404 = vpop.f32.mrb[0].mxu0
    %v2405 = vadd.f32 %v2312, %v2404
    %v2406 = vpop.f32.mrb[0].mxu0
    %2407 = vmatprep.mubr.f32.mxu0 0.0
    %v2408 = vand.u32 %v1798, 4294901760
    %2409 = vmatmul.mubr.f32.gmra.mrb[0].mxu0 %v2408
    %v2410 = vpop.f32.mrb[0].mxu0
    %v2411 = vadd.f32 %v2318, %v2410
    %v2412 = vpop.f32.mrb[0].mxu0
    %2413 = vdwg.mxu0
    %v2414 = vmul.f32 %v2393, 0.35355338
    %v2415 = vmul.f32 %v2399, 0.35355338
    %v2416 = vmul.f32 %v2405, 0.35355338
    %v2417 = vmul.f32 %v2411, 0.35355338
    %v2418 = vmax.f32 %v2414, %v2415
    %v2419 = vsub.f32 %v2414, %v2418
    %v2420 = vmul.f32 %v2419, 1.442695
    %v2421 = vpow.pop %v2420
    %v2422 = vsub.f32 %v2415, %v2418
    %v2423 = vmul.f32 %v2422, 1.442695
    %v2424 = vpow.pop %v2423
    %v2425 = vadd.f32 %v2421, %v2424
    %v2426 = vrcp.pop %v2425
    %v2427 = vmul.f32 1.0, %v2426
    %v2428 = vmul.f32 %v2421, %v2427
    %v2429 = vmul.f32 %v2424, %v2427
    %v2430 = vmax.f32 %v2416, %v2417
    %v2431 = vsub.f32 %v2416, %v2430
    %v2432 = vmul.f32 %v2431, 1.442695
    %v2433 = vpow.pop %v2432
    %v2434 = vsub.f32 %v2417, %v2430
    %v2435 = vmul.f32 %v2434, 1.442695
    %v2436 = vpow.pop %v2435
    %v2437 = vadd.f32 %v2433, %v2436
    %v2438 = vrcp.pop %v2437
    %v2439 = vmul.f32 1.0, %v2438
    %v2440 = vmul.f32 %v2433, %v2439
    %v2441 = vmul.f32 %v2436, %v2439
    %v2443 = vsel %vm811, %v2428, 0
    %v2446 = vsel %vm811, %v2429, 0
    %v2449 = vsel %vm811, %v2440, 0
    %v2452 = vsel %vm811, %v2441, 0
    %2454 = vmatprep.subr.mxu0 0.0
    %v2455 = vand.u32 %v826, 4294901760
    %2456 = vmatpush1.msra.mxu0 %v2455
    %2457 = vmatprep.subr.mxu0 0.0
    %2458 = vmatpush1.msra.mxu0 0.0
    %2459 = vmatprep.subr.mxu0 0.0
    %2460 = vmatpush1.msra.mxu0 0.0
    %2461 = vmatprep.subr.mxu0 0.0
    %2462 = vmatpush1.msra.mxu0 0.0
    %2463 = vmatprep.subr.mxu0 0.0
    %2464 = vmatpush1.msra.mxu0 0.0
    %2465 = vmatprep.subr.mxu0 0.0
    %2466 = vmatpush1.msra.mxu0 0.0
    %2467 = vmatprep.subr.mxu0 0.0
    %2468 = vmatpush1.msra.mxu0 0.0
    %2469 = vmatprep.subr.mxu0 0.0
    %2470 = vmatpush1.msra.mxu0 0.0
    %2471 = vmatprep.subr.mxu0 0.0
    %2472 = vmatpush1.msra.mxu0 0.0
    %2473 = vmatprep.subr.mxu0 0.0
    %2474 = vmatpush1.msra.mxu0 0.0
    %2475 = vmatprep.subr.mxu0 0.0
    %2476 = vmatpush1.msra.mxu0 0.0
    %2477 = vmatprep.subr.mxu0 0.0
    %2478 = vmatpush1.msra.mxu0 0.0
    %2479 = vmatprep.subr.mxu0 0.0
    %2480 = vmatpush1.msra.mxu0 0.0
    %2481 = vmatprep.subr.mxu0 0.0
    %2482 = vmatpush1.msra.mxu0 0.0
    %2483 = vmatprep.subr.mxu0 0.0
    %2484 = vmatpush1.msra.mxu0 0.0
    %2485 = vmatprep.subr.mxu0 0.0
    %2486 = vmatpush1.msra.mxu0 0.0
    %2487 = vmatprep.subr.mxu0 0.0
    %2488 = vmatpush1.msra.mxu0 0.0
    %2489 = vmatprep.subr.mxu0 0.0
    %2490 = vmatpush1.msra.mxu0 0.0
    %2491 = vmatprep.subr.mxu0 0.0
    %2492 = vmatpush1.msra.mxu0 0.0
    %2493 = vmatprep.subr.mxu0 0.0
    %2494 = vmatpush1.msra.mxu0 0.0
    %2495 = vmatprep.subr.mxu0 0.0
    %2496 = vmatpush1.msra.mxu0 0.0
    %2497 = vmatprep.subr.mxu0 0.0
    %2498 = vmatpush1.msra.mxu0 0.0
    %2499 = vmatprep.subr.mxu0 0.0
    %2500 = vmatpush1.msra.mxu0 0.0
    %2501 = vmatprep.subr.mxu0 0.0
    %2502 = vmatpush1.msra.mxu0 0.0
    %2503 = vmatprep.subr.mxu0 0.0
    %2504 = vmatpush1.msra.mxu0 0.0
    %2505 = vmatprep.subr.mxu0 0.0
    %2506 = vmatpush1.msra.mxu0 0.0
    %2507 = vmatprep.subr.mxu0 0.0
    %2508 = vmatpush1.msra.mxu0 0.0
    %2509 = vmatprep.subr.mxu0 0.0
    %2510 = vmatpush1.msra.mxu0 0.0
    %2511 = vmatprep.subr.mxu0 0.0
    %2512 = vmatpush1.msra.mxu0 0.0
    %2513 = vmatprep.subr.mxu0 0.0
    %2514 = vmatpush1.msra.mxu0 0.0
    %2515 = vmatprep.subr.mxu0 0.0
    %2516 = vmatpush1.msra.mxu0 0.0
    %2517 = vmatprep.subr.mxu0 0.0
    %2518 = vmatpush1.msra.mxu0 0.0
    %2519 = vmatprep.mubr.f32.mxu0 0.0
    %v2520 = vand.u32 %v2443, 4294901760
    %v2521 = vsub.f32 %v2443, %v2520
    %v2522 = vand.u32 %v2521, 4294901760
    %v2523 = vsub.f32 %v2521, %v2522
    %v2524 = vand.u32 %v2523, 4294901760
    %2525 = vmatmul.mubr.f32.gmra.mrb[0].mxu0 %v2524
    %v2526 = vpop.f32.mrb[0].mxu0
    %v2527 = vadd.f32 0.0, %v2526
    %v2528 = vpop.f32.mrb[0].mxu0
    %2529 = vmatprep.mubr.f32.mxu0 0.0
    %v2530 = vand.u32 %v2446, 4294901760
    %v2531 = vsub.f32 %v2446, %v2530
    %v2532 = vand.u32 %v2531, 4294901760
    %v2533 = vsub.f32 %v2531, %v2532
    %v2534 = vand.u32 %v2533, 4294901760
    %2535 = vmatmul.mubr.f32.gmra.mrb[0].mxu0 %v2534
    %v2536 = vpop.f32.mrb[0].mxu0
    %v2537 = vadd.f32 0.0, %v2536
    %v2538 = vpop.f32.mrb[0].mxu0
    %2539 = vmatprep.mubr.f32.mxu0 0.0
    %v2540 = vand.u32 %v2449, 4294901760
    %v2541 = vsub.f32 %v2449, %v2540
    %v2542 = vand.u32 %v2541, 4294901760
    %v2543 = vsub.f32 %v2541, %v2542
    %v2544 = vand.u32 %v2543, 4294901760
    %2545 = vmatmul.mubr.f32.gmra.mrb[0].mxu0 %v2544
    %v2546 = vpop.f32.mrb[0].mxu0
    %v2547 = vadd.f32 0.0, %v2546
    %v2548 = vpop.f32.mrb[0].mxu0
    %2549 = vmatprep.mubr.f32.mxu0 0.0
    %v2550 = vand.u32 %v2452, 4294901760
    %v2551 = vsub.f32 %v2452, %v2550
    %v2552 = vand.u32 %v2551, 4294901760
    %v2553 = vsub.f32 %v2551, %v2552
    %v2554 = vand.u32 %v2553, 4294901760
    %2555 = vmatmul.mubr.f32.gmra.mrb[0].mxu0 %v2554
    %v2556 = vpop.f32.mrb[0].mxu0
    %v2557 = vadd.f32 0.0, %v2556
    %v2558 = vpop.f32.mrb[0].mxu0
    %2559 = vdwg.mxu0
    %2560 = vmatprep.subr.mxu0 0.0
    %v2561 = vand.u32 %v826, 4294901760
    %v2562 = vsub.f32 %v826, %v2561
    %v2563 = vand.u32 %v2562, 4294901760
    %v2564 = vsub.f32 %v2562, %v2563
    %v2565 = vand.u32 %v2564, 4294901760
    %2566 = vmatpush1.msra.mxu0 %v2565
    %2567 = vmatprep.subr.mxu0 0.0
    %2568 = vmatpush1.msra.mxu0 0.0
    %2569 = vmatprep.subr.mxu0 0.0
    %2570 = vmatpush1.msra.mxu0 0.0
    %2571 = vmatprep.subr.mxu0 0.0
    %2572 = vmatpush1.msra.mxu0 0.0
    %2573 = vmatprep.subr.mxu0 0.0
    %2574 = vmatpush1.msra.mxu0 0.0
    %2575 = vmatprep.subr.mxu0 0.0
    %2576 = vmatpush1.msra.mxu0 0.0
    %2577 = vmatprep.subr.mxu0 0.0
    %2578 = vmatpush1.msra.mxu0 0.0
    %2579 = vmatprep.subr.mxu0 0.0
    %2580 = vmatpush1.msra.mxu0 0.0
    %2581 = vmatprep.subr.mxu0 0.0
    %2582 = vmatpush1.msra.mxu0 0.0
    %2583 = vmatprep.subr.mxu0 0.0
    %2584 = vmatpush1.msra.mxu0 0.0
    %2585 = vmatprep.subr.mxu0 0.0
    %2586 = vmatpush1.msra.mxu0 0.0
    %2587 = vmatprep.subr.mxu0 0.0
    %2588 = vmatpush1.msra.mxu0 0.0
    %2589 = vmatprep.subr.mxu0 0.0
    %2590 = vmatpush1.msra.mxu0 0.0
    %2591 = vmatprep.subr.mxu0 0.0
    %2592 = vmatpush1.msra.mxu0 0.0
    %2593 = vmatprep.subr.mxu0 0.0
    %2594 = vmatpush1.msra.mxu0 0.0
    %2595 = vmatprep.subr.mxu0 0.0
    %2596 = vmatpush1.msra.mxu0 0.0
    %2597 = vmatprep.subr.mxu0 0.0
    %2598 = vmatpush1.msra.mxu0 0.0
    %2599 = vmatprep.subr.mxu0 0.0
    %2600 = vmatpush1.msra.mxu0 0.0
    %2601 = vmatprep.subr.mxu0 0.0
    %2602 = vmatpush1.msra.mxu0 0.0
    %2603 = vmatprep.subr.mxu0 0.0
    %2604 = vmatpush1.msra.mxu0 0.0
    %2605 = vmatprep.subr.mxu0 0.0
    %2606 = vmatpush1.msra.mxu0 0.0
    %2607 = vmatprep.subr.mxu0 0.0
    %2608 = vmatpush1.msra.mxu0 0.0
    %2609 = vmatprep.subr.mxu0 0.0
    %2610 = vmatpush1.msra.mxu0 0.0
    %2611 = vmatprep.subr.mxu0 0.0
    %2612 = vmatpush1.msra.mxu0 0.0
    %2613 = vmatprep.subr.mxu0 0.0
    %2614 = vmatpush1.msra.mxu0 0.0
    %2615 = vmatprep.subr.mxu0 0.0
    %2616 = vmatpush1.msra.mxu0 0.0
    %2617 = vmatprep.subr.mxu0 0.0
    %2618 = vmatpush1.msra.mxu0 0.0
    %2619 = vmatprep.subr.mxu0 0.0
    %2620 = vmatpush1.msra.mxu0 0.0
    %2621 = vmatprep.subr.mxu0 0.0
    %2622 = vmatpush1.msra.mxu0 0.0
    %2623 = vmatprep.subr.mxu0 0.0
    %2624 = vmatpush1.msra.mxu0 0.0
    %2625 = vmatprep.subr.mxu0 0.0
    %2626 = vmatpush1.msra.mxu0 0.0
    %2627 = vmatprep.subr.mxu0 0.0
    %2628 = vmatpush1.msra.mxu0 0.0
    %2629 = vmatprep.mubr.f32.mxu0 0.0
    %v2630 = vand.u32 %v2443, 4294901760
    %2631 = vmatmul.mubr.f32.gmra.mrb[0].mxu0 %v2630
    %v2632 = vpop.f32.mrb[0].mxu0
    %v2633 = vadd.f32 %v2527, %v2632
    %v2634 = vpop.f32.mrb[0].mxu0
    %2635 = vmatprep.mubr.f32.mxu0 0.0
    %v2636 = vand.u32 %v2446, 4294901760
    %2637 = vmatmul.mubr.f32.gmra.mrb[0].mxu0 %v2636
    %v2638 = vpop.f32.mrb[0].mxu0
    %v2639 = vadd.f32 %v2537, %v2638
    %v2640 = vpop.f32.mrb[0].mxu0
    %2641 = vmatprep.mubr.f32.mxu0 0.0
    %v2642 = vand.u32 %v2449, 4294901760
    %2643 = vmatmul.mubr.f32.gmra.mrb[0].mxu0 %v2642
    %v2644 = vpop.f32.mrb[0].mxu0
    %v2645 = vadd.f32 %v2547, %v2644
    %v2646 = vpop.f32.mrb[0].mxu0
    %2647 = vmatprep.mubr.f32.mxu0 0.0
    %v2648 = vand.u32 %v2452, 4294901760
    %2649 = vmatmul.mubr.f32.gmra.mrb[0].mxu0 %v2648
    %v2650 = vpop.f32.mrb[0].mxu0
    %v2651 = vadd.f32 %v2557, %v2650
    %v2652 = vpop.f32.mrb[0].mxu0
    %2653 = vdwg.mxu0
    %2654 = vmatprep.subr.mxu0 0.0
    %v2655 = vand.u32 %v826, 4294901760
    %v2656 = vsub.f32 %v826, %v2655
    %2657 = vmatpush1.msra.mxu0 %v2656
    %2658 = vmatprep.subr.mxu0 0.0
    %2659 = vmatpush1.msra.mxu0 0.0
    %2660 = vmatprep.subr.mxu0 0.0
    %2661 = vmatpush1.msra.mxu0 0.0
    %2662 = vmatprep.subr.mxu0 0.0
    %2663 = vmatpush1.msra.mxu0 0.0
    %2664 = vmatprep.subr.mxu0 0.0
    %2665 = vmatpush1.msra.mxu0 0.0
    %2666 = vmatprep.subr.mxu0 0.0
    %2667 = vmatpush1.msra.mxu0 0.0
    %2668 = vmatprep.subr.mxu0 0.0
    %2669 = vmatpush1.msra.mxu0 0.0
    %2670 = vmatprep.subr.mxu0 0.0
    %2671 = vmatpush1.msra.mxu0 0.0
    %2672 = vmatprep.subr.mxu0 0.0
    %2673 = vmatpush1.msra.mxu0 0.0
    %2674 = vmatprep.subr.mxu0 0.0
    %2675 = vmatpush1.msra.mxu0 0.0
    %2676 = vmatprep.subr.mxu0 0.0
    %2677 = vmatpush1.msra.mxu0 0.0
    %2678 = vmatprep.subr.mxu0 0.0
    %2679 = vmatpush1.msra.mxu0 0.0
    %2680 = vmatprep.subr.mxu0 0.0
    %2681 = vmatpush1.msra.mxu0 0.0
    %2682 = vmatprep.subr.mxu0 0.0
    %2683 = vmatpush1.msra.mxu0 0.0
    %2684 = vmatprep.subr.mxu0 0.0
    %2685 = vmatpush1.msra.mxu0 0.0
    %2686 = vmatprep.subr.mxu0 0.0
    %2687 = vmatpush1.msra.mxu0 0.0
    %2688 = vmatprep.subr.mxu0 0.0
    %2689 = vmatpush1.msra.mxu0 0.0
    %2690 = vmatprep.subr.mxu0 0.0
    %2691 = vmatpush1.msra.mxu0 0.0
    %2692 = vmatprep.subr.mxu0 0.0
    %2693 = vmatpush1.msra.mxu0 0.0
    %2694 = vmatprep.subr.mxu0 0.0
    %2695 = vmatpush1.msra.mxu0 0.0
    %2696 = vmatprep.subr.mxu0 0.0
    %2697 = vmatpush1.msra.mxu0 0.0
    %2698 = vmatprep.subr.mxu0 0.0
    %2699 = vmatpush1.msra.mxu0 0.0
    %2700 = vmatprep.subr.mxu0 0.0
    %2701 = vmatpush1.msra.mxu0 0.0
    %2702 = vmatprep.subr.mxu0 0.0
    %2703 = vmatpush1.msra.mxu0 0.0
    %2704 = vmatprep.subr.mxu0 0.0
    %2705 = vmatpush1.msra.mxu0 0.0
    %2706 = vmatprep.subr.mxu0 0.0
    %2707 = vmatpush1.msra.mxu0 0.0
    %2708 = vmatprep.subr.mxu0 0.0
    %2709 = vmatpush1.msra.mxu0 0.0
    %2710 = vmatprep.subr.mxu0 0.0
    %2711 = vmatpush1.msra.mxu0 0.0
    %2712 = vmatprep.subr.mxu0 0.0
    %2713 = vmatpush1.msra.mxu0 0.0
    %2714 = vmatprep.subr.mxu0 0.0
    %2715 = vmatpush1.msra.mxu0 0.0
    %2716 = vmatprep.subr.mxu0 0.0
    %2717 = vmatpush1.msra.mxu0 0.0
    %2718 = vmatprep.subr.mxu0 0.0
    %2719 = vmatpush1.msra.mxu0 0.0
    %2720 = vmatprep.mubr.f32.mxu0 0.0
    %v2721 = vand.u32 %v2443, 4294901760
    %v2722 = vsub.f32 %v2443, %v2721
    %2723 = vmatmul.mubr.f32.gmra.mrb[0].mxu0 %v2722
    %v2724 = vpop.f32.mrb[0].mxu0
    %v2725 = vadd.f32 %v2633, %v2724
    %v2726 = vpop.f32.mrb[0].mxu0
    %2727 = vmatprep.mubr.f32.mxu0 0.0
    %v2728 = vand.u32 %v2446, 4294901760
    %v2729 = vsub.f32 %v2446, %v2728
    %2730 = vmatmul.mubr.f32.gmra.mrb[0].mxu0 %v2729
    %v2731 = vpop.f32.mrb[0].mxu0
    %v2732 = vadd.f32 %v2639, %v2731
    %v2733 = vpop.f32.mrb[0].mxu0
    %2734 = vmatprep.mubr.f32.mxu0 0.0
    %v2735 = vand.u32 %v2449, 4294901760
    %v2736 = vsub.f32 %v2449, %v2735
    %2737 = vmatmul.mubr.f32.gmra.mrb[0].mxu0 %v2736
    %v2738 = vpop.f32.mrb[0].mxu0
    %v2739 = vadd.f32 %v2645, %v2738
    %v2740 = vpop.f32.mrb[0].mxu0
    %2741 = vmatprep.mubr.f32.mxu0 0.0
    %v2742 = vand.u32 %v2452, 4294901760
    %v2743 = vsub.f32 %v2452, %v2742
    %2744 = vmatmul.mubr.f32.gmra.mrb[0].mxu0 %v2743
    %v2745 = vpop.f32.mrb[0].mxu0
    %v2746 = vadd.f32 %v2651, %v2745
    %v2747 = vpop.f32.mrb[0].mxu0
    %2748 = vdwg.mxu0
    %2749 = vmatprep.subr.mxu0 0.0
    %v2750 = vand.u32 %v826, 4294901760
    %2751 = vmatpush1.msra.mxu0 %v2750
    %2752 = vmatprep.subr.mxu0 0.0
    %2753 = vmatpush1.msra.mxu0 0.0
    %2754 = vmatprep.subr.mxu0 0.0
    %2755 = vmatpush1.msra.mxu0 0.0
    %2756 = vmatprep.subr.mxu0 0.0
    %2757 = vmatpush1.msra.mxu0 0.0
    %2758 = vmatprep.subr.mxu0 0.0
    %2759 = vmatpush1.msra.mxu0 0.0
    %2760 = vmatprep.subr.mxu0 0.0
    %2761 = vmatpush1.msra.mxu0 0.0
    %2762 = vmatprep.subr.mxu0 0.0
    %2763 = vmatpush1.msra.mxu0 0.0
    %2764 = vmatprep.subr.mxu0 0.0
    %2765 = vmatpush1.msra.mxu0 0.0
    %2766 = vmatprep.subr.mxu0 0.0
    %2767 = vmatpush1.msra.mxu0 0.0
    %2768 = vmatprep.subr.mxu0 0.0
    %2769 = vmatpush1.msra.mxu0 0.0
    %2770 = vmatprep.subr.mxu0 0.0
    %2771 = vmatpush1.msra.mxu0 0.0
    %2772 = vmatprep.subr.mxu0 0.0
    %2773 = vmatpush1.msra.mxu0 0.0
    %2774 = vmatprep.subr.mxu0 0.0
    %2775 = vmatpush1.msra.mxu0 0.0
    %2776 = vmatprep.subr.mxu0 0.0
    %2777 = vmatpush1.msra.mxu0 0.0
    %2778 = vmatprep.subr.mxu0 0.0
    %2779 = vmatpush1.msra.mxu0 0.0
    %2780 = vmatprep.subr.mxu0 0.0
    %2781 = vmatpush1.msra.mxu0 0.0
    %2782 = vmatprep.subr.mxu0 0.0
    %2783 = vmatpush1.msra.mxu0 0.0
    %2784 = vmatprep.subr.mxu0 0.0
    %2785 = vmatpush1.msra.mxu0 0.0
    %2786 = vmatprep.subr.mxu0 0.0
    %2787 = vmatpush1.msra.mxu0 0.0
    %2788 = vmatprep.subr.mxu0 0.0
    %2789 = vmatpush1.msra.mxu0 0.0
    %2790 = vmatprep.subr.mxu0 0.0
    %2791 = vmatpush1.msra.mxu0 0.0
    %2792 = vmatprep.subr.mxu0 0.0
    %2793 = vmatpush1.msra.mxu0 0.0
    %2794 = vmatprep.subr.mxu0 0.0
    %2795 = vmatpush1.msra.mxu0 0.0
    %2796 = vmatprep.subr.mxu0 0.0
    %2797 = vmatpush1.msra.mxu0 0.0
    %2798 = vmatprep.subr.mxu0 0.0
    %2799 = vmatpush1.msra.mxu0 0.0
    %2800 = vmatprep.subr.mxu0 0.0
    %2801 = vmatpush1.msra.mxu0 0.0
    %2802 = vmatprep.subr.mxu0 0.0
    %2803 = vmatpush1.msra.mxu0 0.0
    %2804 = vmatprep.subr.mxu0 0.0
    %2805 = vmatpush1.msra.mxu0 0.0
    %2806 = vmatprep.subr.mxu0 0.0
    %2807 = vmatpush1.msra.mxu0 0.0
    %2808 = vmatprep.subr.mxu0 0.0
    %2809 = vmatpush1.msra.mxu0 0.0
    %2810 = vmatprep.subr.mxu0 0.0
    %2811 = vmatpush1.msra.mxu0 0.0
    %2812 = vmatprep.subr.mxu0 0.0
    %2813 = vmatpush1.msra.mxu0 0.0
    %2814 = vmatprep.mubr.f32.mxu0 0.0
    %v2815 = vand.u32 %v2443, 4294901760
    %v2816 = vsub.f32 %v2443, %v2815
    %v2817 = vand.u32 %v2816, 4294901760
    %2818 = vmatmul.mubr.f32.gmra.mrb[0].mxu0 %v2817
    %v2819 = vpop.f32.mrb[0].mxu0
    %v2820 = vadd.f32 %v2725, %v2819
    %v2821 = vpop.f32.mrb[0].mxu0
    %2822 = vmatprep.mubr.f32.mxu0 0.0
    %v2823 = vand.u32 %v2446, 4294901760
    %v2824 = vsub.f32 %v2446, %v2823
    %v2825 = vand.u32 %v2824, 4294901760
    %2826 = vmatmul.mubr.f32.gmra.mrb[0].mxu0 %v2825
    %v2827 = vpop.f32.mrb[0].mxu0
    %v2828 = vadd.f32 %v2732, %v2827
    %v2829 = vpop.f32.mrb[0].mxu0
    %2830 = vmatprep.mubr.f32.mxu0 0.0
    %v2831 = vand.u32 %v2449, 4294901760
    %v2832 = vsub.f32 %v2449, %v2831
    %v2833 = vand.u32 %v2832, 4294901760
    %2834 = vmatmul.mubr.f32.gmra.mrb[0].mxu0 %v2833
    %v2835 = vpop.f32.mrb[0].mxu0
    %v2836 = vadd.f32 %v2739, %v2835
    %v2837 = vpop.f32.mrb[0].mxu0
    %2838 = vmatprep.mubr.f32.mxu0 0.0
    %v2839 = vand.u32 %v2452, 4294901760
    %v2840 = vsub.f32 %v2452, %v2839
    %v2841 = vand.u32 %v2840, 4294901760
    %2842 = vmatmul.mubr.f32.gmra.mrb[0].mxu0 %v2841
    %v2843 = vpop.f32.mrb[0].mxu0
    %v2844 = vadd.f32 %v2746, %v2843
    %v2845 = vpop.f32.mrb[0].mxu0
    %2846 = vdwg.mxu0
    %2847 = vmatprep.subr.mxu0 0.0
    %v2848 = vand.u32 %v826, 4294901760
    %v2849 = vsub.f32 %v826, %v2848
    %v2850 = vand.u32 %v2849, 4294901760
    %2851 = vmatpush1.msra.mxu0 %v2850
    %2852 = vmatprep.subr.mxu0 0.0
    %2853 = vmatpush1.msra.mxu0 0.0
    %2854 = vmatprep.subr.mxu0 0.0
    %2855 = vmatpush1.msra.mxu0 0.0
    %2856 = vmatprep.subr.mxu0 0.0
    %2857 = vmatpush1.msra.mxu0 0.0
    %2858 = vmatprep.subr.mxu0 0.0
    %2859 = vmatpush1.msra.mxu0 0.0
    %2860 = vmatprep.subr.mxu0 0.0
    %2861 = vmatpush1.msra.mxu0 0.0
    %2862 = vmatprep.subr.mxu0 0.0
    %2863 = vmatpush1.msra.mxu0 0.0
    %2864 = vmatprep.subr.mxu0 0.0
    %2865 = vmatpush1.msra.mxu0 0.0
    %2866 = vmatprep.subr.mxu0 0.0
    %2867 = vmatpush1.msra.mxu0 0.0
    %2868 = vmatprep.subr.mxu0 0.0
    %2869 = vmatpush1.msra.mxu0 0.0
    %2870 = vmatprep.subr.mxu0 0.0
    %2871 = vmatpush1.msra.mxu0 0.0
    %2872 = vmatprep.subr.mxu0 0.0
    %2873 = vmatpush1.msra.mxu0 0.0
    %2874 = vmatprep.subr.mxu0 0.0
    %2875 = vmatpush1.msra.mxu0 0.0
    %2876 = vmatprep.subr.mxu0 0.0
    %2877 = vmatpush1.msra.mxu0 0.0
    %2878 = vmatprep.subr.mxu0 0.0
    %2879 = vmatpush1.msra.mxu0 0.0
    %2880 = vmatprep.subr.mxu0 0.0
    %2881 = vmatpush1.msra.mxu0 0.0
    %2882 = vmatprep.subr.mxu0 0.0
    %2883 = vmatpush1.msra.mxu0 0.0
    %2884 = vmatprep.subr.mxu0 0.0
    %2885 = vmatpush1.msra.mxu0 0.0
    %2886 = vmatprep.subr.mxu0 0.0
    %2887 = vmatpush1.msra.mxu0 0.0
    %2888 = vmatprep.subr.mxu0 0.0
    %2889 = vmatpush1.msra.mxu0 0.0
    %2890 = vmatprep.subr.mxu0 0.0
    %2891 = vmatpush1.msra.mxu0 0.0
    %2892 = vmatprep.subr.mxu0 0.0
    %2893 = vmatpush1.msra.mxu0 0.0
    %2894 = vmatprep.subr.mxu0 0.0
    %2895 = vmatpush1.msra.mxu0 0.0
    %2896 = vmatprep.subr.mxu0 0.0
    %2897 = vmatpush1.msra.mxu0 0.0
    %2898 = vmatprep.subr.mxu0 0.0
    %2899 = vmatpush1.msra.mxu0 0.0
    %2900 = vmatprep.subr.mxu0 0.0
    %2901 = vmatpush1.msra.mxu0 0.0
    %2902 = vmatprep.subr.mxu0 0.0
    %2903 = vmatpush1.msra.mxu0 0.0
    %2904 = vmatprep.subr.mxu0 0.0
    %2905 = vmatpush1.msra.mxu0 0.0
    %2906 = vmatprep.subr.mxu0 0.0
    %2907 = vmatpush1.msra.mxu0 0.0
    %2908 = vmatprep.subr.mxu0 0.0
    %2909 = vmatpush1.msra.mxu0 0.0
    %2910 = vmatprep.subr.mxu0 0.0
    %2911 = vmatpush1.msra.mxu0 0.0
    %2912 = vmatprep.subr.mxu0 0.0
    %2913 = vmatpush1.msra.mxu0 0.0
    %2914 = vmatprep.mubr.f32.mxu0 0.0
    %v2915 = vand.u32 %v2443, 4294901760
    %2916 = vmatmul.mubr.f32.gmra.mrb[0].mxu0 %v2915
    %v2917 = vpop.f32.mrb[0].mxu0
    %v2918 = vadd.f32 %v2820, %v2917
    %v2919 = vpop.f32.mrb[0].mxu0
    %2920 = vmatprep.mubr.f32.mxu0 0.0
    %v2921 = vand.u32 %v2446, 4294901760
    %2922 = vmatmul.mubr.f32.gmra.mrb[0].mxu0 %v2921
    %v2923 = vpop.f32.mrb[0].mxu0
    %v2924 = vadd.f32 %v2828, %v2923
    %v2925 = vpop.f32.mrb[0].mxu0
    %2926 = vmatprep.mubr.f32.mxu0 0.0
    %v2927 = vand.u32 %v2449, 4294901760
    %2928 = vmatmul.mubr.f32.gmra.mrb[0].mxu0 %v2927
    %v2929 = vpop.f32.mrb[0].mxu0
    %v2930 = vadd.f32 %v2836, %v2929
    %v2931 = vpop.f32.mrb[0].mxu0
    %2932 = vmatprep.mubr.f32.mxu0 0.0
    %v2933 = vand.u32 %v2452, 4294901760
    %2934 = vmatmul.mubr.f32.gmra.mrb[0].mxu0 %v2933
    %v2935 = vpop.f32.mrb[0].mxu0
    %v2936 = vadd.f32 %v2844, %v2935
    %v2937 = vpop.f32.mrb[0].mxu0
    %2938 = vdwg.mxu0
    %2939 = vmatprep.subr.mxu0 0.0
    %v2940 = vand.u32 %v826, 4294901760
    %2941 = vmatpush1.msra.mxu0 %v2940
    %2942 = vmatprep.subr.mxu0 0.0
    %2943 = vmatpush1.msra.mxu0 0.0
    %2944 = vmatprep.subr.mxu0 0.0
    %2945 = vmatpush1.msra.mxu0 0.0
    %2946 = vmatprep.subr.mxu0 0.0
    %2947 = vmatpush1.msra.mxu0 0.0
    %2948 = vmatprep.subr.mxu0 0.0
    %2949 = vmatpush1.msra.mxu0 0.0
    %2950 = vmatprep.subr.mxu0 0.0
    %2951 = vmatpush1.msra.mxu0 0.0
    %2952 = vmatprep.subr.mxu0 0.0
    %2953 = vmatpush1.msra.mxu0 0.0
    %2954 = vmatprep.subr.mxu0 0.0
    %2955 = vmatpush1.msra.mxu0 0.0
    %2956 = vmatprep.subr.mxu0 0.0
    %2957 = vmatpush1.msra.mxu0 0.0
    %2958 = vmatprep.subr.mxu0 0.0
    %2959 = vmatpush1.msra.mxu0 0.0
    %2960 = vmatprep.subr.mxu0 0.0
    %2961 = vmatpush1.msra.mxu0 0.0
    %2962 = vmatprep.subr.mxu0 0.0
    %2963 = vmatpush1.msra.mxu0 0.0
    %2964 = vmatprep.subr.mxu0 0.0
    %2965 = vmatpush1.msra.mxu0 0.0
    %2966 = vmatprep.subr.mxu0 0.0
    %2967 = vmatpush1.msra.mxu0 0.0
    %2968 = vmatprep.subr.mxu0 0.0
    %2969 = vmatpush1.msra.mxu0 0.0
    %2970 = vmatprep.subr.mxu0 0.0
    %2971 = vmatpush1.msra.mxu0 0.0
    %2972 = vmatprep.subr.mxu0 0.0
    %2973 = vmatpush1.msra.mxu0 0.0
    %2974 = vmatprep.subr.mxu0 0.0
    %2975 = vmatpush1.msra.mxu0 0.0
    %2976 = vmatprep.subr.mxu0 0.0
    %2977 = vmatpush1.msra.mxu0 0.0
    %2978 = vmatprep.subr.mxu0 0.0
    %2979 = vmatpush1.msra.mxu0 0.0
    %2980 = vmatprep.subr.mxu0 0.0
    %2981 = vmatpush1.msra.mxu0 0.0
    %2982 = vmatprep.subr.mxu0 0.0
    %2983 = vmatpush1.msra.mxu0 0.0
    %2984 = vmatprep.subr.mxu0 0.0
    %2985 = vmatpush1.msra.mxu0 0.0
    %2986 = vmatprep.subr.mxu0 0.0
    %2987 = vmatpush1.msra.mxu0 0.0
    %2988 = vmatprep.subr.mxu0 0.0
    %2989 = vmatpush1.msra.mxu0 0.0
    %2990 = vmatprep.subr.mxu0 0.0
    %2991 = vmatpush1.msra.mxu0 0.0
    %2992 = vmatprep.subr.mxu0 0.0
    %2993 = vmatpush1.msra.mxu0 0.0
    %2994 = vmatprep.subr.mxu0 0.0
    %2995 = vmatpush1.msra.mxu0 0.0
    %2996 = vmatprep.subr.mxu0 0.0
    %2997 = vmatpush1.msra.mxu0 0.0
    %2998 = vmatprep.subr.mxu0 0.0
    %2999 = vmatpush1.msra.mxu0 0.0
    %3000 = vmatprep.subr.mxu0 0.0
    %3001 = vmatpush1.msra.mxu0 0.0
    %3002 = vmatprep.subr.mxu0 0.0
    %3003 = vmatpush1.msra.mxu0 0.0
    %3004 = vmatprep.mubr.f32.mxu0 0.0
    %v3005 = vand.u32 %v2443, 4294901760
    %3006 = vmatmul.mubr.f32.gmra.mrb[0].mxu0 %v3005
    %v3007 = vpop.f32.mrb[0].mxu0
    %v3008 = vadd.f32 %v2918, %v3007
    %v3009 = vpop.f32.mrb[0].mxu0
    %3010 = vmatprep.mubr.f32.mxu0 0.0
    %v3011 = vand.u32 %v2446, 4294901760
    %3012 = vmatmul.mubr.f32.gmra.mrb[0].mxu0 %v3011
    %v3013 = vpop.f32.mrb[0].mxu0
    %v3014 = vadd.f32 %v2924, %v3013
    %v3015 = vpop.f32.mrb[0].mxu0
    %3016 = vmatprep.mubr.f32.mxu0 0.0
    %v3017 = vand.u32 %v2449, 4294901760
    %3018 = vmatmul.mubr.f32.gmra.mrb[0].mxu0 %v3017
    %v3019 = vpop.f32.mrb[0].mxu0
    %v3020 = vadd.f32 %v2930, %v3019
    %v3021 = vpop.f32.mrb[0].mxu0
    %3022 = vmatprep.mubr.f32.mxu0 0.0
    %v3023 = vand.u32 %v2452, 4294901760
    %3024 = vmatmul.mubr.f32.gmra.mrb[0].mxu0 %v3023
    %v3025 = vpop.f32.mrb[0].mxu0
    %v3026 = vadd.f32 %v2936, %v3025
    %v3027 = vpop.f32.mrb[0].mxu0
    %3028 = vdwg.mxu0
    %3029 = vrot.lane.b32.xlu0 %v1770, 64
    %v3030 = vpop.permute.xlu0 %3029
    %v3032 = vmul.f32 %v3008, %v3030
    %3033 = vrot.lane.b32.xlu0 %v1773, 64
    %v3034 = vpop.permute.xlu0 %3033
    %v3036 = vmul.f32 %v3014, %v3034
    %v3037 = vadd.f32 %v3032, %v3036
    %v3038 = vmul.f32 %v3020, %v3030
    %v3039 = vmul.f32 %v3026, %v3034
    %v3040 = vadd.f32 %v3038, %v3039
    %v3041 = vpack.c.bf16 %v3040, %v3037
    %v3042 = vlaneseq
    %v3043 = vshrl.u32 %v3042, 7
    %v3044 = vsub.s32 1, %v3043
    %v3045 = vrot.slane %v57, %v3044
    %v3050 = vunpack.c.l.b16 %v1703
    %v3051 = vunpack.c.l.b16 %v1704
    %v3052 = vunpack.c.l.b16 %v1705
    %v3053 = vunpack.c.l.b16 %v1706
    %v3054 = vpack.c.b16 %v3051, %v3050
    %v3055 = vpack.c.b16 %v3053, %v3052
    %v3059 = vsel %vm100, %v3041, 0
    %3061 = vmatprep.subr.bf16.mxu0 0
    %3062 = vmatpush1.bf16.msra.mxu0 %v3054
    %3063 = vmatprep.subr.bf16.mxu0 0
    %3064 = vmatpush1.bf16.msra.mxu0 %v3055
    %3065 = vmatprep.subr.bf16.mxu0 0
    %3066 = vmatpush1.bf16.msra.mxu0 0
    %3067 = vmatprep.subr.bf16.mxu0 0
    %3068 = vmatpush1.bf16.msra.mxu0 0
    %3069 = vmatprep.subr.bf16.mxu0 0
    %3070 = vmatpush1.bf16.msra.mxu0 0
    %3071 = vmatprep.subr.bf16.mxu0 0
    %3072 = vmatpush1.bf16.msra.mxu0 0
    %3073 = vmatprep.subr.bf16.mxu0 0
    %3074 = vmatpush1.bf16.msra.mxu0 0
    %3075 = vmatprep.subr.bf16.mxu0 0
    %3076 = vmatpush1.bf16.msra.mxu0 0
    %3077 = vmatprep.subr.bf16.mxu0 0
    %3078 = vmatpush1.bf16.msra.mxu0 0
    %3079 = vmatprep.subr.bf16.mxu0 0
    %3080 = vmatpush1.bf16.msra.mxu0 0
    %3081 = vmatprep.subr.bf16.mxu0 0
    %3082 = vmatpush1.bf16.msra.mxu0 0
    %3083 = vmatprep.subr.bf16.mxu0 0
    %3084 = vmatpush1.bf16.msra.mxu0 0
    %3085 = vmatprep.subr.bf16.mxu0 0
    %3086 = vmatpush1.bf16.msra.mxu0 0
    %3087 = vmatprep.subr.bf16.mxu0 0
    %3088 = vmatpush1.bf16.msra.mxu0 0
    %3089 = vmatprep.subr.bf16.mxu0 0
    %3090 = vmatpush1.bf16.msra.mxu0 0
    %3091 = vmatprep.subr.bf16.mxu0 0
    %3092 = vmatpush1.bf16.msra.mxu0 0
    %3093 = vmatprep.mubr.bf16.mxu0 0
    %3094 = vmatmul.mubr.bf16.gmra.mrb[0].mxu0 %v3059
    %v3095 = vpop.f32.mrb[0].mxu0
    %v3096 = vadd.f32 %v3045, %v3095
    %v3097 = vpop.f32.mrb[0].mxu0
    %v3098 = vpop.f32.mrb[0].mxu0
    %v3099 = vadd.f32 %v3045, %v3098
    %v3100 = vpop.f32.mrb[0].mxu0
    %3101 = vdwg.mxu0
    %v3102 = vadd.f32 %v1692, %v3096
    %v3103 = vadd.f32 %v1693, %v3099
    %v3104 = vsel %vm100, %v3102, 0.0
    %3105 = vadd.xlane.f32.xlu0 %v3104
    %v3106 = vpop.xlane.xlu0 %3105
    %v3107 = vsel %vm100, %v3103, 0.0
    %3108 = vadd.xlane.f32.xlu0 %v3107
    %v3109 = vpop.xlane.xlu0 %3108
    %v3110 = vmul.f32 %v3106, %v1484
    %v3111 = vmul.f32 %v3109, %v1484
    %v3112 = vsub.f32 %v3102, %v3110
    %v3113 = vsub.f32 %v3103, %v3111
    %v3114 = vmul.f32 %v3112, %v3112
    %v3115 = vmul.f32 %v3113, %v3113
    %v3116 = vsel %vm100, %v3114, 0.0
    %3117 = vadd.xlane.f32.xlu0 %v3116
    %v3118 = vpop.xlane.xlu0 %3117
    %v3119 = vsel %vm100, %v3115, 0.0
    %3120 = vadd.xlane.f32.xlu0 %v3119
    %v3121 = vpop.xlane.xlu0 %3120
    %v3122 = vmul.f32 %v3118, %v1484
    %v3123 = vmul.f32 %v3121, %v1484
    %v3124 = vadd.f32 %v3122, 1e-05
    %v3125 = vadd.f32 %v3123, 1e-05
    %v3126 = vrsqrt.pop %v3124
    %v3127 = vrsqrt.pop %v3125
    %v3128 = vmul.f32 %v3112, %v3126
    %v3129 = vmul.f32 %v3113, %v3127
    %v3130 = vlaneseq
    %v3131 = vshrl.u32 %v3130, 7
    %v3132 = vsub.s32 4, %v3131
    %v3133 = vrot.slane %v57, %v3132
    %v3134 = vmul.f32 %v3128, %v3133
    %v3135 = vmul.f32 %v3129, %v3133
    %v3136 = vlaneseq
    %v3137 = vshrl.u32 %v3136, 7
    %v3138 = vsub.s32 5, %v3137
    %v3139 = vrot.slane %v57, %v3138
    %v3140 = vadd.f32 %v3134, %v3139
    %v3141 = vadd.f32 %v3135, %v3139
    %v3142 = vpack.c.bf16 %v3141, %v3140
    %v3143 = vlaneseq
    %v3144 = vshrl.u32 %v3143, 7
    %v3145 = vsub.s32 2, %v3144
    %v3146 = vrot.slane %v57, %v3145
    %v3151 = vunpack.c.l.b16 %v1699
    %v3152 = vunpack.c.l.b16 %v1700
    %v3153 = vunpack.c.l.b16 %v1701
    %v3154 = vunpack.c.l.b16 %v1702
    %v3155 = vpack.c.b16 %v3152, %v3151
    %v3156 = vpack.c.b16 %v3154, %v3153
    %v3160 = vsel %vm100, %v3142, 0
    %3162 = vmatprep.subr.bf16.mxu0 0
    %3163 = vmatpush1.bf16.msra.mxu0 %v3155
    %3164 = vmatprep.subr.bf16.mxu0 0
    %3165 = vmatpush1.bf16.msra.mxu0 %v3156
    %3166 = vmatprep.subr.bf16.mxu0 0
    %3167 = vmatpush1.bf16.msra.mxu0 0
    %3168 = vmatprep.subr.bf16.mxu0 0
    %3169 = vmatpush1.bf16.msra.mxu0 0
    %3170 = vmatprep.subr.bf16.mxu0 0
    %3171 = vmatpush1.bf16.msra.mxu0 0
    %3172 = vmatprep.subr.bf16.mxu0 0
    %3173 = vmatpush1.bf16.msra.mxu0 0
    %3174 = vmatprep.subr.bf16.mxu0 0
    %3175 = vmatpush1.bf16.msra.mxu0 0
    %3176 = vmatprep.subr.bf16.mxu0 0
    %3177 = vmatpush1.bf16.msra.mxu0 0
    %3178 = vmatprep.subr.bf16.mxu0 0
    %3179 = vmatpush1.bf16.msra.mxu0 0
    %3180 = vmatprep.subr.bf16.mxu0 0
    %3181 = vmatpush1.bf16.msra.mxu0 0
    %3182 = vmatprep.subr.bf16.mxu0 0
    %3183 = vmatpush1.bf16.msra.mxu0 0
    %3184 = vmatprep.subr.bf16.mxu0 0
    %3185 = vmatpush1.bf16.msra.mxu0 0
    %3186 = vmatprep.subr.bf16.mxu0 0
    %3187 = vmatpush1.bf16.msra.mxu0 0
    %3188 = vmatprep.subr.bf16.mxu0 0
    %3189 = vmatpush1.bf16.msra.mxu0 0
    %3190 = vmatprep.subr.bf16.mxu0 0
    %3191 = vmatpush1.bf16.msra.mxu0 0
    %3192 = vmatprep.subr.bf16.mxu0 0
    %3193 = vmatpush1.bf16.msra.mxu0 0
    %3194 = vmatprep.mubr.bf16.mxu0 0
    %3195 = vmatmul.mubr.bf16.gmra.mrb[0].mxu0 %v3160
    %v3196 = vpop.f32.mrb[0].mxu0
    %v3197 = vadd.f32 %v3146, %v3196
    %v3198 = vpop.f32.mrb[0].mxu0
    %v3199 = vpop.f32.mrb[0].mxu0
    %v3200 = vadd.f32 %v3146, %v3199
    %v3201 = vpop.f32.mrb[0].mxu0
    %3202 = vdwg.mxu0
    %v3203 = vmax.f32 %v3197, 0.0
    %v3204 = vmax.f32 %v3200, 0.0
    %v3205 = vpack.c.bf16 %v3204, %v3203
    %v3206 = vlaneseq
    %v3207 = vshrl.u32 %v3206, 7
    %v3208 = vsub.s32 3, %v3207
    %v3209 = vrot.slane %v57, %v3208
    %v3218 = vunpack.c.l.b16 %v1707
    %v3219 = vunpack.c.l.b16 %v1708
    %v3220 = vunpack.c.l.b16 %v1709
    %v3221 = vunpack.c.l.b16 %v1710
    %v3222 = vunpack.c.l.b16 %v1711
    %v3223 = vunpack.c.l.b16 %v1712
    %v3224 = vunpack.c.l.b16 %v1713
    %v3225 = vunpack.c.l.b16 %v1714
    %v3226 = vpack.c.b16 %v3219, %v3218
    %v3227 = vpack.c.b16 %v3221, %v3220
    %v3228 = vpack.c.b16 %v3223, %v3222
    %v3229 = vpack.c.b16 %v3225, %v3224
    %v3235 = vsel %vm1609, %v3205, 0
    %3237 = vmatprep.subr.bf16.mxu0 0
    %3238 = vmatpush1.bf16.msra.mxu0 %v3226
    %3239 = vmatprep.subr.bf16.mxu0 0
    %3240 = vmatpush1.bf16.msra.mxu0 %v3227
    %3241 = vmatprep.subr.bf16.mxu0 0
    %3242 = vmatpush1.bf16.msra.mxu0 %v3228
    %3243 = vmatprep.subr.bf16.mxu0 0
    %3244 = vmatpush1.bf16.msra.mxu0 %v3229
    %3245 = vmatprep.subr.bf16.mxu0 0
    %3246 = vmatpush1.bf16.msra.mxu0 0
    %3247 = vmatprep.subr.bf16.mxu0 0
    %3248 = vmatpush1.bf16.msra.mxu0 0
    %3249 = vmatprep.subr.bf16.mxu0 0
    %3250 = vmatpush1.bf16.msra.mxu0 0
    %3251 = vmatprep.subr.bf16.mxu0 0
    %3252 = vmatpush1.bf16.msra.mxu0 0
    %3253 = vmatprep.subr.bf16.mxu0 0
    %3254 = vmatpush1.bf16.msra.mxu0 0
    %3255 = vmatprep.subr.bf16.mxu0 0
    %3256 = vmatpush1.bf16.msra.mxu0 0
    %3257 = vmatprep.subr.bf16.mxu0 0
    %3258 = vmatpush1.bf16.msra.mxu0 0
    %3259 = vmatprep.subr.bf16.mxu0 0
    %3260 = vmatpush1.bf16.msra.mxu0 0
    %3261 = vmatprep.subr.bf16.mxu0 0
    %3262 = vmatpush1.bf16.msra.mxu0 0
    %3263 = vmatprep.subr.bf16.mxu0 0
    %3264 = vmatpush1.bf16.msra.mxu0 0
    %3265 = vmatprep.subr.bf16.mxu0 0
    %3266 = vmatpush1.bf16.msra.mxu0 0
    %3267 = vmatprep.subr.bf16.mxu0 0
    %3268 = vmatpush1.bf16.msra.mxu0 0
    %3269 = vmatprep.mubr.bf16.mxu0 0
    %3270 = vmatmul.mubr.bf16.gmra.mrb[0].mxu0 %v3235
    %v3271 = vpop.f32.mrb[0].mxu0
    %v3272 = vadd.f32 %v3209, %v3271
    %v3273 = vpop.f32.mrb[0].mxu0
    %v3274 = vpop.f32.mrb[0].mxu0
    %v3275 = vadd.f32 %v3209, %v3274
    %v3276 = vpop.f32.mrb[0].mxu0
    %3277 = vdwg.mxu0
    %v3278 = vadd.f32 %v3140, %v3272
    %v3279 = vadd.f32 %v3141, %v3275
    %v3280 = vsel %vm100, %v3278, 0.0
    %3281 = vadd.xlane.f32.xlu0 %v3280
    %v3282 = vpop.xlane.xlu0 %3281
    %v3283 = vsel %vm100, %v3279, 0.0
    %3284 = vadd.xlane.f32.xlu0 %v3283
    %v3285 = vpop.xlane.xlu0 %3284
    %v3286 = vmul.f32 %v3282, %v1484
    %v3287 = vmul.f32 %v3285, %v1484
    %v3288 = vsub.f32 %v3278, %v3286
    %v3289 = vsub.f32 %v3279, %v3287
    %v3290 = vmul.f32 %v3288, %v3288
    %v3291 = vmul.f32 %v3289, %v3289
    %v3292 = vsel %vm100, %v3290, 0.0
    %3293 = vadd.xlane.f32.xlu0 %v3292
    %v3294 = vpop.xlane.xlu0 %3293
    %v3295 = vsel %vm100, %v3291, 0.0
    %3296 = vadd.xlane.f32.xlu0 %v3295
    %v3297 = vpop.xlane.xlu0 %3296
    %v3298 = vmul.f32 %v3294, %v1484
    %v3299 = vmul.f32 %v3297, %v1484
    %v3300 = vadd.f32 %v3298, 1e-05
    %v3301 = vadd.f32 %v3299, 1e-05
    %v3302 = vrsqrt.pop %v3300
    %v3303 = vrsqrt.pop %v3301
    %v3304 = vmul.f32 %v3288, %v3302
    %v3305 = vmul.f32 %v3289, %v3303
    %v3306 = vlaneseq
    %v3307 = vshrl.u32 %v3306, 7
    %v3308 = vsub.s32 6, %v3307
    %v3309 = vrot.slane %v57, %v3308
    %v3310 = vmul.f32 %v3304, %v3309
    %v3311 = vmul.f32 %v3305, %v3309
    %v3312 = vlaneseq
    %v3313 = vshrl.u32 %v3312, 7
    %v3314 = vsub.s32 7, %v3313
    %v3315 = vrot.slane %v57, %v3314
    %v3316 = vadd.f32 %v3310, %v3315
    %v3317 = vadd.f32 %v3311, %v3315
    %3318 = vst.msk [vmem:[#allocation7] sm:$0xff] %vm100, %v3316
    %3319 = vst.msk [vmem:[#allocation7 + $0x8] sm:$0xff] %vm100, %v3317
    // Predicated region
    $region22: #{tpu_custom_call.1} parent=1 // pred_check
      _
    $region23: #{tpu_custom_call.1} parent=1 // pred_check_branch
      %3321 = sbr.rel (0) target = $region25
    $region24: #{tpu_custom_call.1} parent=1 // pred_region
      %s3323 = ssub.s32 256, 256
      %3324 = vsyncadd [#allocation4], %s3323
      %s3325 = sshll.u32 [#allocation7], 4
      %s3326 = int_to_ptr.vmem [resolvable:$true] %s3325
      %3331 = dma.vmem_to_hbm [thread:$0]  %s3326, 256, %s3, [#allocation4], 128, 128, 8
    $region25: #{tpu_custom_call.1} parent=1 // pred_fallthru
      _
    // Predicated region
    $region26: #{tpu_custom_call.1} parent=1 // pred_check
      _
    $region27: #{tpu_custom_call.1} parent=1 // pred_check_branch
      %3333 = sbr.rel (0) target = $region29
    $region28: #{tpu_custom_call.1} parent=1 // pred_region
      %3334 = dma.done [#allocation4], 256
    $region29: #{tpu_custom_call.1} parent=1 // pred_fallthru
      _
    %3335 = vsyncpa [#allocation3], 1
    %3336 = vsyncpa [#allocation6], 1
    %3337 = vsyncpa [#allocation4], 1

</llo_original>
